<compile_context>
chip_gen: v6e
topology: v6e:2x2x1
jax: 0.10.0
libtpu: 0.0.40
codegen_flags: <defaults>
</compile_context>

<pallas_src>
import numpy as np
import jax
import jax.numpy as jnp
from jax.experimental import pallas as pl
from jax.experimental.pallas import tpu as pltpu


# ---------------------------------------------------------------------------
# Shape constants (input 13x20 chosen so every adapted stage has integral shapes)
# ---------------------------------------------------------------------------
C_IN, H, W = 3, 13, 20
OH, OW = H - 6, W - 6                   # 7, 14   (AvgPool2d k=7 s=1 p=0)
FLAT1 = C_IN * OH * OW                  # 294     (Flatten after conv2)
N_POOL = (FLAT1 - 8) // 4 + 1           # 72      (MaxPool k=8 s=4 adapter)
N_TAPS = 8                              # max-pool taps
GRP = 128                               # lane group width (one vreg column)
POOLED_W = N_TAPS * GRP                 # 1024    (grouped, lane-aligned pooling layout)
CONV_OUT = 90                           # Conv2d(3->6,k=2) on (3,4,6) -> (6,3,5) -> 90
D_HID, D_OUT = 635, 5
OUT_PAD = 128                           # lane-dense padded output width
TILE_ROWS = 512                         # batch tile (multiple of 256 for v6e/v7x MXU)


# ---------------------------------------------------------------------------
# Single fused kernel: whole forward pass, all intermediates stay in VMEM/vregs
# ---------------------------------------------------------------------------
def fused_forward_kernel(xf_ref, A_ref, bA_ref, Wpc_ref, bC_ref,
                         W1_ref, b1_ref, W2_ref, b2_ref, o_ref):
    # v0..v3: AvgPool2d(7) + Conv2d(3->3,k=1) + Flatten + Dropout(eval) folded into one
    # bf16 (780,1024) matmul whose columns are the pooling taps in a lane-aligned grouped
    # layout: column o*128+j = tap o of pooled window j (pad lanes 72..127 are zero).
    taps = jnp.dot(xf_ref[...], A_ref[...],
                   preferred_element_type=jnp.float32) + bA_ref[...]       # (T,1024) f32

    # v4..v6: 1-D MaxPool(k=8,s=4) + ReLU — elementwise max over 8 vreg-aligned 128-lane
    # slices (pure VPU, no cross-lane rotates).  Pad lanes stay exactly 0.
    m = taps[:, 0:GRP]
    for o in range(1, N_TAPS):
        m = jnp.maximum(m, taps[:, o * GRP:(o + 1) * GRP])                 # (T,128)
    r = jnp.maximum(m, 0.0)

    # v7..v9: Conv2d(3->6,k=2) on the (3,4,6) adapter view + Unflatten/Flatten, folded
    # into a (128,90) matmul (rows 72..127 zero so the pad lanes cannot leak).
    v9 = jnp.dot(r.astype(jnp.bfloat16), Wpc_ref[...],
                 preferred_element_type=jnp.float32) + bC_ref[...]         # (T,90)

    # v10..v12: Dropout x2 (eval -> identity), ReLU.
    v12 = jnp.maximum(v9, 0.0)

    # v13: Linear(805,635) with the weight truncated to its 90 live input rows.
    h = jnp.dot(v12.astype(jnp.bfloat16), W1_ref[...],
                preferred_element_type=jnp.float32) + b1_ref[...]          # (T,635)

    # v14: Linear(635,5) padded to 128 lane-dense output columns (cols 5..127 zero).
    # v15 = sigmoid(v14) is dead code in the original module -> intentionally omitted.
    o_ref[...] = jnp.dot(h.astype(jnp.bfloat16), W2_ref[...],
                         preferred_element_type=jnp.float32) + b2_ref[...]  # (T,128)


def fused_forward(xf, p, tile):
    n_pad, feat = xf.shape
    grid = (n_pad // tile,)

    weight_order = ("A", "bA", "Wpc", "bC", "W1t", "b1", "W2t", "b2")
    # Weights: full-array blocks with a constant index_map -> fetched once, VMEM-resident
    # across all grid steps.
    weight_specs = [pl.BlockSpec(p[k].shape, lambda i: (0, 0)) for k in weight_order]

    flops = 2 * n_pad * (feat * POOLED_W + GRP * CONV_OUT
                         + CONV_OUT * D_HID + D_HID * OUT_PAD)
    weight_bytes = sum(int(np.prod(p[k].shape)) * p[k].dtype.itemsize
                       for k in weight_order)
    bytes_accessed = weight_bytes + n_pad * (feat * xf.dtype.itemsize + OUT_PAD * 4)

    return pl.pallas_call(
        fused_forward_kernel,
        out_shape=jax.ShapeDtypeStruct((n_pad, OUT_PAD), jnp.float32),
        grid_spec=pltpu.PrefetchScalarGridSpec(
            num_scalar_prefetch=0,
            grid=grid,
            in_specs=[pl.BlockSpec((tile, feat), lambda i: (i, 0))] + weight_specs,
            out_specs=pl.BlockSpec((tile, OUT_PAD), lambda i: (i, 0)),
        ),
        compiler_params=pltpu.CompilerParams(dimension_semantics=("parallel",)),
        cost_estimate=pl.CostEstimate(flops=int(flops), transcendentals=0,
                                      bytes_accessed=int(bytes_accessed)),
    )(xf, *[p[k] for k in weight_order])


# ---------------------------------------------------------------------------
# Parameter construction (deterministic PyTorch-style init) + host-side folding
# ---------------------------------------------------------------------------
def make_params(key):
    ks = jax.random.split(key, 8)

    def unif(k, shape, fan_in):
        bound = 1.0 / np.sqrt(float(fan_in))
        return np.asarray(jax.random.uniform(k, shape, jnp.float32, -bound, bound))

    w2 = unif(ks[0], (3, 3), 3)                      # conv2: Conv2d(3,3,k=1) (out,in)
    b2 = unif(ks[1], (3,), 3)
    w3 = unif(ks[2], (72,), 12).reshape(6, 3, 2, 2)  # conv3: Conv2d(3,6,k=2)
    b3 = unif(ks[3], (6,), 12)
    w_l1 = unif(ks[4], (805, 635), 805)              # linear1 stored (in,out)
    b_l1 = unif(ks[5], (1, 635), 805)
    w_l2 = unif(ks[6], (635, 5), 635)                # linear2 stored (in,out)
    b_l2 = unif(ks[7], (1, 5), 635)

    # ---- Fold AvgPool2d(7,s=1) + Conv2d(3->3,k=1) + Flatten into A(780,294), bA ----
    A = np.zeros((C_IN, H, W, C_IN, OH, OW), np.float32)
    for ci in range(C_IN):
        for co in range(C_IN):
            coef = np.float32(w2[co, ci] / 49.0)
            for oh in range(OH):
                for ow in range(OW):
                    A[ci, oh:oh + 7, ow:ow + 7, co, oh, ow] = coef
    A = A.reshape(C_IN * H * W, FLAT1)                                     # (780,294)
    bA = np.repeat(b2, OH * OW).astype(np.float32)                         # (294,)

    # ---- Re-lay-out the pooling taps into lane-aligned 128-wide groups ----
    # TODO(synk): MaxPool2d(8,4) on a 2-D tensor is invalid in PyTorch; it is adapted as
    # 1-D max pooling (k=8,s=4) over the 294 features -> 72 windows.
    # Column o*128+j of A_grp holds tap o of pooled window j (= feature 4j+o); lanes
    # 72..127 of every group are zero so max/ReLU over them stays exactly 0.
    A_grp = np.zeros((C_IN * H * W, N_TAPS, GRP), np.float32)
    b_grp = np.zeros((1, N_TAPS, GRP), np.float32)
    win = 4 * np.arange(N_POOL)
    for o in range(N_TAPS):
        A_grp[:, o, :N_POOL] = A[:, win + o]
        b_grp[0, o, :N_POOL] = bA[win + o]
    A_grp = A_grp.reshape(C_IN * H * W, POOLED_W)                          # (780,1024)
    b_grp = b_grp.reshape(1, POOLED_W)                                     # (1,1024)

    # ---- Fold Conv2d(3->6,k=2) on the (3,4,6) adapter view + flatten into (128,90) ----
    # TODO(synk): Conv2d on a 2-D tensor is invalid in PyTorch; the 72 pooled features
    # are reinterpreted as an NCHW image of shape (3,4,6) before the 2x2 conv.
    Wc = np.zeros((3, 4, 6, 6, 3, 5), np.float32)    # (ci,ih,iw, co,oh,ow)
    for co in range(6):
        for ci in range(3):
            for dh in range(2):
                for dw in range(2):
                    for oh in range(3):
                        for ow in range(5):
                            Wc[ci, oh + dh, ow + dw, co, oh, ow] = w3[co, ci, dh, dw]
    Wc = Wc.reshape(N_POOL, CONV_OUT)                                      # (72,90)
    # TODO(synk): Unflatten(dim=1,(1,90)) requires dim1==90 (v7 has 6); it is applied
    # after flattening (where the 90 total features line up), i.e. it is a no-op here.
    Wpc = np.zeros((GRP, CONV_OUT), np.float32)                            # (128,90)
    Wpc[:N_POOL, :] = Wc                              # pad rows 72..127 stay zero
    bC = np.repeat(b3, 15)[None, :].astype(np.float32)                     # (1,90)

    # ---- Linear1: only the first 90 input features are live (zero-pad adapter). ----
    # TODO(synk): linear1 expects 805 in-features but only 90 are produced upstream;
    # zero-padding is equivalent to truncating the weight to its first 90 input rows.
    W1t = np.ascontiguousarray(w_l1[:CONV_OUT, :])                         # (90,635)

    # ---- Linear2 padded to a lane-dense 128-wide output (cols 5..127 zero). ----
    W2p = np.zeros((D_HID, OUT_PAD), np.float32); W2p[:, :D_OUT] = w_l2
    b2p = np.zeros((1, OUT_PAD), np.float32);     b2p[:, :D_OUT] = b_l2

    # MXU operands in bf16 (halves weight DMA, native MXU rate); biases stay f32.
    return {
        "A":   jnp.asarray(A_grp, jnp.bfloat16),
        "bA":  jnp.asarray(b_grp, jnp.float32),
        "Wpc": jnp.asarray(Wpc, jnp.bfloat16),
        "bC":  jnp.asarray(bC, jnp.float32),
        "W1t": jnp.asarray(W1t, jnp.bfloat16),
        "b1":  jnp.asarray(b_l1, jnp.float32),
        "W2t": jnp.asarray(W2p, jnp.bfloat16),
        "b2":  jnp.asarray(b2p, jnp.float32),
    }


# ---------------------------------------------------------------------------
# Forward pass (mirrors Model.forward)
# ---------------------------------------------------------------------------
def _round_up(x, m):
    return (x + m - 1) // m * m


def model_forward(x, params):
    n = x.shape[0]
    # Input-side layout plumbing only: flatten NCHW to a lane-dense bf16 row vector.
    xf = x.reshape(n, -1).astype(jnp.bfloat16)                             # (N,780)
    # Batch tile: 512 rows fills v6e/v7x 256x256 MXU passes (and is a multiple of 128
    # for v5e); tiny batches use one minimal 8-row-aligned tile.
    tile = TILE_ROWS if n >= TILE_ROWS else _round_up(n, 8)
    n_pad = _round_up(n, tile)
    if n_pad != n:
        xf = jnp.pad(xf, ((0, n_pad - n), (0, 0)))
    out = fused_forward(xf, params, tile)                                  # (n_pad,128)
    return out[:n, :D_OUT]                                                 # (N,5) == v14


if __name__ == "__main__":
    key = jax.random.PRNGKey(0)
    k_x, k_p = jax.random.split(key)

    # N=2, C=3, H=13, W=20: spatial size chosen so every stage of the adapted
    # pipeline has integral shapes (13x20 -> 7x14 -> 294 -> 72 -> 90 -> 635 -> 5).
    x = jax.random.normal(k_x, (2, C_IN, H, W), jnp.float32)
    params = make_params(k_p)

    out = model_forward(x, params)
    out = jax.block_until_ready(out)
    assert out.shape == (2, D_OUT) and out.dtype == jnp.float32
    print("KERNEL_OK")
</pallas_src>

<mosaic_0001>
module attributes {stable_mosaic.version = 11 : i64} {
  func.func @fused_forward_kernel(%arg0: i32, %arg1: memref<8x780xbf16, #tpu.memory_space<vmem>>, %arg2: memref<780x1024xbf16, #tpu.memory_space<vmem>>, %arg3: memref<1x1024xf32, #tpu.memory_space<vmem>>, %arg4: memref<128x90xbf16, #tpu.memory_space<vmem>>, %arg5: memref<1x90xf32, #tpu.memory_space<vmem>>, %arg6: memref<90x635xbf16, #tpu.memory_space<vmem>>, %arg7: memref<1x635xf32, #tpu.memory_space<vmem>>, %arg8: memref<635x128xbf16, #tpu.memory_space<vmem>>, %arg9: memref<1x128xf32, #tpu.memory_space<vmem>>, %arg10: memref<8x128xf32, #tpu.memory_space<vmem>>) attributes {dimension_semantics = [#tpu.dimension_semantics<parallel>], iteration_bounds = array<i64: 1>, scalar_prefetch = 0 : i64, scratch_operands = 0 : i64, tpu.core_type = #tpu.core_type<tc>, window_params = [{transform_indices = @transform_0, window_bounds = array<i64: 8, 780>}, {pipeline_mode = #tpu.pipeline_mode<synchronous>, transform_indices = @transform_1, window_bounds = array<i64: 780, 1024>}, {pipeline_mode = #tpu.pipeline_mode<synchronous>, transform_indices = @transform_2, window_bounds = array<i64: 1, 1024>}, {pipeline_mode = #tpu.pipeline_mode<synchronous>, transform_indices = @transform_3, window_bounds = array<i64: 128, 90>}, {pipeline_mode = #tpu.pipeline_mode<synchronous>, transform_indices = @transform_4, window_bounds = array<i64: 1, 90>}, {pipeline_mode = #tpu.pipeline_mode<synchronous>, transform_indices = @transform_5, window_bounds = array<i64: 90, 635>}, {pipeline_mode = #tpu.pipeline_mode<synchronous>, transform_indices = @transform_6, window_bounds = array<i64: 1, 635>}, {pipeline_mode = #tpu.pipeline_mode<synchronous>, transform_indices = @transform_7, window_bounds = array<i64: 635, 128>}, {pipeline_mode = #tpu.pipeline_mode<synchronous>, transform_indices = @transform_8, window_bounds = array<i64: 1, 128>}, {transform_indices = @transform_9, window_bounds = array<i64: 8, 128>}]} {
    %c0 = arith.constant 0 : index
    %c0_0 = arith.constant 0 : index
    %0 = vector.load %arg1[%c0, %c0_0] : memref<8x780xbf16, #tpu.memory_space<vmem>>, vector<8x780xbf16>
    %c0_1 = arith.constant 0 : index
    %c0_2 = arith.constant 0 : index
    %1 = vector.load %arg2[%c0_1, %c0_2] : memref<780x1024xbf16, #tpu.memory_space<vmem>>, vector<780x1024xbf16>
    %cst = arith.constant dense<0.000000e+00> : vector<8x1024xf32>
    %2 = tpu.matmul %0, %1, %cst {dimension_numbers = #tpu.dot_dimension_numbers<[1], [0], [0], [1], [0, 0, 1, 1], [], []>} : vector<8x780xbf16>, vector<780x1024xbf16>, vector<8x1024xf32> -> vector<8x1024xf32>
    %c0_3 = arith.constant 0 : index
    %c0_4 = arith.constant 0 : index
    %3 = vector.load %arg3[%c0_3, %c0_4] : memref<1x1024xf32, #tpu.memory_space<vmem>>, vector<1x1024xf32>
    %4 = vector.broadcast %3 : vector<1x1024xf32> to vector<8x1024xf32>
    %5 = arith.addf %2, %4 : vector<8x1024xf32>
    %6 = vector.extract_strided_slice %5 {offsets = [0, 0], sizes = [8, 128], strides = [1, 1]} : vector<8x1024xf32> to vector<8x128xf32>
    %7 = vector.extract_strided_slice %5 {offsets = [0, 128], sizes = [8, 128], strides = [1, 1]} : vector<8x1024xf32> to vector<8x128xf32>
    %8 = arith.maximumf %6, %7 : vector<8x128xf32>
    %9 = vector.extract_strided_slice %5 {offsets = [0, 256], sizes = [8, 128], strides = [1, 1]} : vector<8x1024xf32> to vector<8x128xf32>
    %10 = arith.maximumf %8, %9 : vector<8x128xf32>
    %11 = vector.extract_strided_slice %5 {offsets = [0, 384], sizes = [8, 128], strides = [1, 1]} : vector<8x1024xf32> to vector<8x128xf32>
    %12 = arith.maximumf %10, %11 : vector<8x128xf32>
    %13 = vector.extract_strided_slice %5 {offsets = [0, 512], sizes = [8, 128], strides = [1, 1]} : vector<8x1024xf32> to vector<8x128xf32>
    %14 = arith.maximumf %12, %13 : vector<8x128xf32>
    %15 = vector.extract_strided_slice %5 {offsets = [0, 640], sizes = [8, 128], strides = [1, 1]} : vector<8x1024xf32> to vector<8x128xf32>
    %16 = arith.maximumf %14, %15 : vector<8x128xf32>
    %17 = vector.extract_strided_slice %5 {offsets = [0, 768], sizes = [8, 128], strides = [1, 1]} : vector<8x1024xf32> to vector<8x128xf32>
    %18 = arith.maximumf %16, %17 : vector<8x128xf32>
    %19 = vector.extract_strided_slice %5 {offsets = [0, 896], sizes = [8, 128], strides = [1, 1]} : vector<8x1024xf32> to vector<8x128xf32>
    %20 = arith.maximumf %18, %19 : vector<8x128xf32>
    %cst_5 = arith.constant 0.000000e+00 : f32
    %21 = vector.broadcast %cst_5 : f32 to vector<8x128xf32>
    %22 = arith.maximumf %20, %21 : vector<8x128xf32>
    %23 = arith.truncf %22 : vector<8x128xf32> to vector<8x128xbf16>
    %c0_6 = arith.constant 0 : index
    %c0_7 = arith.constant 0 : index
    %24 = vector.load %arg4[%c0_6, %c0_7] : memref<128x90xbf16, #tpu.memory_space<vmem>>, vector<128x90xbf16>
    %cst_8 = arith.constant dense<0.000000e+00> : vector<8x90xf32>
    %25 = tpu.matmul %23, %24, %cst_8 {dimension_numbers = #tpu.dot_dimension_numbers<[1], [0], [0], [1], [0, 0, 1, 1], [], []>} : vector<8x128xbf16>, vector<128x90xbf16>, vector<8x90xf32> -> vector<8x90xf32>
    %c0_9 = arith.constant 0 : index
    %c0_10 = arith.constant 0 : index
    %26 = vector.load %arg5[%c0_9, %c0_10] : memref<1x90xf32, #tpu.memory_space<vmem>>, vector<1x90xf32>
    %27 = vector.broadcast %26 : vector<1x90xf32> to vector<8x90xf32>
    %28 = arith.addf %25, %27 : vector<8x90xf32>
    %cst_11 = arith.constant 0.000000e+00 : f32
    %29 = vector.broadcast %cst_11 : f32 to vector<8x90xf32>
    %30 = arith.maximumf %28, %29 : vector<8x90xf32>
    %31 = arith.truncf %30 : vector<8x90xf32> to vector<8x90xbf16>
    %c0_12 = arith.constant 0 : index
    %c0_13 = arith.constant 0 : index
    %32 = vector.load %arg6[%c0_12, %c0_13] : memref<90x635xbf16, #tpu.memory_space<vmem>>, vector<90x635xbf16>
    %cst_14 = arith.constant dense<0.000000e+00> : vector<8x635xf32>
    %33 = tpu.matmul %31, %32, %cst_14 {dimension_numbers = #tpu.dot_dimension_numbers<[1], [0], [0], [1], [0, 0, 1, 1], [], []>} : vector<8x90xbf16>, vector<90x635xbf16>, vector<8x635xf32> -> vector<8x635xf32>
    %c0_15 = arith.constant 0 : index
    %c0_16 = arith.constant 0 : index
    %34 = vector.load %arg7[%c0_15, %c0_16] : memref<1x635xf32, #tpu.memory_space<vmem>>, vector<1x635xf32>
    %35 = vector.broadcast %34 : vector<1x635xf32> to vector<8x635xf32>
    %36 = arith.addf %33, %35 : vector<8x635xf32>
    %37 = arith.truncf %36 : vector<8x635xf32> to vector<8x635xbf16>
    %c0_17 = arith.constant 0 : index
    %c0_18 = arith.constant 0 : index
    %38 = vector.load %arg8[%c0_17, %c0_18] : memref<635x128xbf16, #tpu.memory_space<vmem>>, vector<635x128xbf16>
    %cst_19 = arith.constant dense<0.000000e+00> : vector<8x128xf32>
    %39 = tpu.matmul %37, %38, %cst_19 {dimension_numbers = #tpu.dot_dimension_numbers<[1], [0], [0], [1], [0, 0, 1, 1], [], []>} : vector<8x635xbf16>, vector<635x128xbf16>, vector<8x128xf32> -> vector<8x128xf32>
    %c0_20 = arith.constant 0 : index
    %c0_21 = arith.constant 0 : index
    %40 = vector.load %arg9[%c0_20, %c0_21] : memref<1x128xf32, #tpu.memory_space<vmem>>, vector<1x128xf32>
    %41 = vector.broadcast %40 : vector<1x128xf32> to vector<8x128xf32>
    %42 = arith.addf %39, %41 : vector<8x128xf32>
    %c0_22 = arith.constant 0 : index
    %c0_23 = arith.constant 0 : index
    %43 = vector.load %arg10[%c0_22, %c0_23] : memref<8x128xf32, #tpu.memory_space<vmem>>, vector<8x128xf32>
    tpu.vector_store %arg10[%c0_22, %c0_23], %42 {strides = array<i32>} : memref<8x128xf32, #tpu.memory_space<vmem>>, vector<8x128xf32>,
    return
  }
  func.func @transform_0(%arg0: i32) -> (i32, i32) {
    %c0_i32 = arith.constant 0 : i32
    %c0_i32_0 = arith.constant 0 : i32
    return %arg0, %c0_i32 : i32, i32
  }
  func.func @transform_1(%arg0: i32) -> (i32, i32) {
    %c0_i32 = arith.constant 0 : i32
    %c0_i32_0 = arith.constant 0 : i32
    %c0_i32_1 = arith.constant 0 : i32
    return %c0_i32, %c0_i32_0 : i32, i32
  }
  func.func @transform_2(%arg0: i32) -> (i32, i32) {
    %c0_i32 = arith.constant 0 : i32
    %c0_i32_0 = arith.constant 0 : i32
    %c0_i32_1 = arith.constant 0 : i32
    return %c0_i32, %c0_i32_0 : i32, i32
  }
  func.func @transform_3(%arg0: i32) -> (i32, i32) {
    %c0_i32 = arith.constant 0 : i32
    %c0_i32_0 = arith.constant 0 : i32
    %c0_i32_1 = arith.constant 0 : i32
    return %c0_i32, %c0_i32_0 : i32, i32
  }
  func.func @transform_4(%arg0: i32) -> (i32, i32) {
    %c0_i32 = arith.constant 0 : i32
    %c0_i32_0 = arith.constant 0 : i32
    %c0_i32_1 = arith.constant 0 : i32
    return %c0_i32, %c0_i32_0 : i32, i32
  }
  func.func @transform_5(%arg0: i32) -> (i32, i32) {
    %c0_i32 = arith.constant 0 : i32
    %c0_i32_0 = arith.constant 0 : i32
    %c0_i32_1 = arith.constant 0 : i32
    return %c0_i32, %c0_i32_0 : i32, i32
  }
  func.func @transform_6(%arg0: i32) -> (i32, i32) {
    %c0_i32 = arith.constant 0 : i32
    %c0_i32_0 = arith.constant 0 : i32
    %c0_i32_1 = arith.constant 0 : i32
    return %c0_i32, %c0_i32_0 : i32, i32
  }
  func.func @transform_7(%arg0: i32) -> (i32, i32) {
    %c0_i32 = arith.constant 0 : i32
    %c0_i32_0 = arith.constant 0 : i32
    %c0_i32_1 = arith.constant 0 : i32
    return %c0_i32, %c0_i32_0 : i32, i32
  }
  func.func @transform_8(%arg0: i32) -> (i32, i32) {
    %c0_i32 = arith.constant 0 : i32
    %c0_i32_0 = arith.constant 0 : i32
    %c0_i32_1 = arith.constant 0 : i32
    return %c0_i32, %c0_i32_0 : i32, i32
  }
  func.func @transform_9(%arg0: i32) -> (i32, i32) {
    %c0_i32 = arith.constant 0 : i32
    %c0_i32_0 = arith.constant 0 : i32
    return %arg0, %c0_i32 : i32, i32
  }
}

</mosaic_0001>

<llo_original>
// kernel: tpu_custom_call.1
$region0: #{tpu_custom_call.1}
  #allocation0 [shape = 'u32[]', space=smem, size = 0x4, offset = 0x4, fixed_abs, tag = 'smem constant byte address 0x4 - core index']
  #allocation1 [shape = 'u32[144,128]{1,0:T(1,128)}', space=vmem, size = 0x12000, scoped, tag = 'internal scratch']
  %s0 = inlined_call_operand.hbm [shape: bf16[8,780], index: 0, kind: input, shape index: {}]
  %s1 = inlined_call_operand.hbm [shape: bf16[780,1024], index: 1, kind: input, shape index: {}]
  %s2 = inlined_call_operand.hbm [shape: f32[1,1024], index: 2, kind: input, shape index: {}]
  %s3 = inlined_call_operand.vmem [shape: bf16[128,90], index: 3, kind: input, shape index: {}]
  %s4 = inlined_call_operand.hbm [shape: f32[1,90], index: 4, kind: input, shape index: {}]
  %s5 = inlined_call_operand.hbm [shape: bf16[90,635], index: 5, kind: input, shape index: {}]
  %s6 = inlined_call_operand.hbm [shape: f32[1,635], index: 6, kind: input, shape index: {}]
  %s7 = inlined_call_operand.hbm [shape: bf16[635,128], index: 7, kind: input, shape index: {}]
  %s8 = inlined_call_operand.hbm [shape: f32[1,128], index: 8, kind: input, shape index: {}]
  %s9 = inlined_call_operand.hbm [shape: f32[8,128], index: 9, kind: output, shape index: {}]
  %s10 = sld [smem:[#allocation0]]
  $region78: #{tpu_custom_call.1} parent=0
    _
  %s12 = ssub.s32 1, %s10
  %s13 = scalar_select 0, %s12, %s10
  $region1: #{tpu_custom_call.1} parent=0
    #allocation2 [shape = 'u8[14336]{0}', space=vmem, size = 0x3800, scoped, tag = 'input window, operand 0, single buffered']
    #allocation3 [shape = 's32[1]{0}', space=sflag, size = 0x4, scoped, tag = 'scoped memory for tpu_custom_call.1']
    #allocation4 [shape = 's32[1]{0}', space=sflag, size = 0x4, scoped, tag = 'scoped memory for tpu_custom_call.1']
    #allocation5 [shape = 'u8[1605632]{0}', space=vmem, size = 0x188000, scoped, tag = 'input window, operand 1, single buffered']
    #allocation6 [shape = 's32[1]{0}', space=sflag, size = 0x4, scoped, tag = 'scoped memory for tpu_custom_call.1']
    #allocation7 [shape = 'u8[4096]{0}', space=vmem, size = 0x1000, scoped, tag = 'input window, operand 2, single buffered']
    #allocation8 [shape = 'u8[512]{0}', space=vmem, size = 0x400, scoped, tag = 'input window, operand 4, single buffered']
    #allocation9 [shape = 's32[1]{0}', space=sflag, size = 0x4, scoped, tag = 'scoped memory for tpu_custom_call.1']
    #allocation10 [shape = 'u8[122880]{0}', space=vmem, size = 0x1e000, scoped, tag = 'input window, operand 5, single buffered']
    #allocation11 [shape = 'u8[2560]{0}', space=vmem, size = 0xc00, scoped, tag = 'input window, operand 6, single buffered']
    #allocation12 [shape = 's32[1]{0}', space=sflag, size = 0x4, scoped, tag = 'scoped memory for tpu_custom_call.1']
    #allocation13 [shape = 'u8[163840]{0}', space=vmem, size = 0x28000, scoped, tag = 'input window, operand 7, single buffered']
    #allocation14 [shape = 'u8[512]{0}', space=vmem, size = 0x400, scoped, tag = 'input window, operand 8, single buffered']
    #allocation15 [shape = 's32[1]{0}', space=sflag, size = 0x4, scoped, tag = 'scoped memory for tpu_custom_call.1']
    #allocation16 [shape = 'u8[4096]{0}', space=vmem, size = 0x1000, scoped, tag = 'output window, operand 0, single buffered']
    %14 = vsyncpa [#allocation3], 0
    %15 = vsyncpa [#allocation6], 0
    %16 = vsyncpa [#allocation9], 0
    %17 = vsyncpa [#allocation12], 0
    %18 = vsyncpa [#allocation15], 0
    %19 = vsyncpa [#allocation4], 0
    // Predicated region
    $region2: #{tpu_custom_call.1} parent=1 // pred_check
      _
    $region3: #{tpu_custom_call.1} parent=1 // pred_check_branch
      %21 = sbr.rel (0) target = $region5
    $region4: #{tpu_custom_call.1} parent=1 // pred_region
      %s23 = ssub.s32 448, 448
      %24 = vsyncadd [#allocation3], %s23
      %s26 = sshll.u32 [#allocation2], 4
      %s27 = int_to_ptr.vmem [resolvable:$true] %s26
      %29 = dma.hbm_to_vmem [thread:$0]  %s0, 448, %s27, [#allocation3]
    $region5: #{tpu_custom_call.1} parent=1 // pred_fallthru
      _
    // Predicated region
    $region6: #{tpu_custom_call.1} parent=1 // pred_check
      _
    $region7: #{tpu_custom_call.1} parent=1 // pred_check_branch
      %31 = sbr.rel (0) target = $region9
    $region8: #{tpu_custom_call.1} parent=1 // pred_region
      %s33 = ssub.s32 50176, 50176
      %34 = vsyncadd [#allocation6], %s33
      %s35 = sshll.u32 [#allocation5], 4
      %s36 = int_to_ptr.vmem [resolvable:$true] %s35
      %41 = dma.hbm_to_vmem [thread:$0]  %s1, 50176, %s36, [#allocation6], 512, 512, 32
    $region9: #{tpu_custom_call.1} parent=1 // pred_fallthru
      _
    // Predicated region
    $region10: #{tpu_custom_call.1} parent=1 // pred_check
      _
    $region11: #{tpu_custom_call.1} parent=1 // pred_check_branch
      %43 = sbr.rel (0) target = $region13
    $region12: #{tpu_custom_call.1} parent=1 // pred_region
      %s45 = ssub.s32 128, 128
      %46 = vsyncadd [#allocation6], %s45
      %s48 = sshll.u32 [#allocation7], 4
      %s49 = int_to_ptr.vmem [resolvable:$true] %s48
      %51 = dma.hbm_to_vmem [thread:$0]  %s2, 128, %s49, [#allocation6]
    $region13: #{tpu_custom_call.1} parent=1 // pred_fallthru
      _
    // Predicated region
    $region14: #{tpu_custom_call.1} parent=1 // pred_check
      _
    $region15: #{tpu_custom_call.1} parent=1 // pred_check_branch
      %53 = sbr.rel (0) target = $region17
    $region16: #{tpu_custom_call.1} parent=1 // pred_region
      _
    $region17: #{tpu_custom_call.1} parent=1 // pred_fallthru
      _
    // Predicated region
    $region18: #{tpu_custom_call.1} parent=1 // pred_check
      _
    $region19: #{tpu_custom_call.1} parent=1 // pred_check_branch
      %55 = sbr.rel (0) target = $region21
    $region20: #{tpu_custom_call.1} parent=1 // pred_region
      %s57 = ssub.s32 16, 16
      %58 = vsyncadd [#allocation9], %s57
      %s60 = sshll.u32 [#allocation8], 4
      %s61 = int_to_ptr.vmem [resolvable:$true] %s60
      %63 = dma.hbm_to_vmem [thread:$0]  %s4, 16, %s61, [#allocation9]
    $region21: #{tpu_custom_call.1} parent=1 // pred_fallthru
      _
    // Predicated region
    $region22: #{tpu_custom_call.1} parent=1 // pred_check
      _
    $region23: #{tpu_custom_call.1} parent=1 // pred_check_branch
      %65 = sbr.rel (0) target = $region25
    $region24: #{tpu_custom_call.1} parent=1 // pred_region
      %s67 = ssub.s32 3840, 3840
      %68 = vsyncadd [#allocation9], %s67
      %s69 = sshll.u32 [#allocation10], 4
      %s70 = int_to_ptr.vmem [resolvable:$true] %s69
      %75 = dma.hbm_to_vmem [thread:$0]  %s5, 3840, %s70, [#allocation9], 320, 320, 20
    $region25: #{tpu_custom_call.1} parent=1 // pred_fallthru
      _
    // Predicated region
    $region26: #{tpu_custom_call.1} parent=1 // pred_check
      _
    $region27: #{tpu_custom_call.1} parent=1 // pred_check_branch
      %77 = sbr.rel (0) target = $region29
    $region28: #{tpu_custom_call.1} parent=1 // pred_region
      %s79 = ssub.s32 80, 80
      %80 = vsyncadd [#allocation12], %s79
      %s82 = sshll.u32 [#allocation11], 4
      %s83 = int_to_ptr.vmem [resolvable:$true] %s82
      %85 = dma.hbm_to_vmem [thread:$0]  %s6, 80, %s83, [#allocation12]
    $region29: #{tpu_custom_call.1} parent=1 // pred_fallthru
      _
    // Predicated region
    $region30: #{tpu_custom_call.1} parent=1 // pred_check
      _
    $region31: #{tpu_custom_call.1} parent=1 // pred_check_branch
      %87 = sbr.rel (0) target = $region33
    $region32: #{tpu_custom_call.1} parent=1 // pred_region
      %s89 = ssub.s32 5120, 5120
      %90 = vsyncadd [#allocation12], %s89
      %s91 = sshll.u32 [#allocation13], 4
      %s92 = int_to_ptr.vmem [resolvable:$true] %s91
      %97 = dma.hbm_to_vmem [thread:$0]  %s7, 5120, %s92, [#allocation12], 64, 64, 4
    $region33: #{tpu_custom_call.1} parent=1 // pred_fallthru
      _
    // Predicated region
    $region34: #{tpu_custom_call.1} parent=1 // pred_check
      _
    $region35: #{tpu_custom_call.1} parent=1 // pred_check_branch
      %99 = sbr.rel (0) target = $region37
    $region36: #{tpu_custom_call.1} parent=1 // pred_region
      %s101 = ssub.s32 16, 16
      %102 = vsyncadd [#allocation15], %s101
      %s104 = sshll.u32 [#allocation14], 4
      %s105 = int_to_ptr.vmem [resolvable:$true] %s104
      %107 = dma.hbm_to_vmem [thread:$0]  %s8, 16, %s105, [#allocation15]
    $region37: #{tpu_custom_call.1} parent=1 // pred_fallthru
      _
    // Predicated region
    $region38: #{tpu_custom_call.1} parent=1 // pred_check
      _
    $region39: #{tpu_custom_call.1} parent=1 // pred_check_branch
      %109 = sbr.rel (0) target = $region41
    $region40: #{tpu_custom_call.1} parent=1 // pred_region
      %110 = dma.done [#allocation3], 448
    $region41: #{tpu_custom_call.1} parent=1 // pred_fallthru
      _
    // Predicated region
    $region42: #{tpu_custom_call.1} parent=1 // pred_check
      _
    $region43: #{tpu_custom_call.1} parent=1 // pred_check_branch
      %112 = sbr.rel (0) target = $region45
    $region44: #{tpu_custom_call.1} parent=1 // pred_region
      %113 = dma.done [#allocation6], 50176
    $region45: #{tpu_custom_call.1} parent=1 // pred_fallthru
      _
    // Predicated region
    $region46: #{tpu_custom_call.1} parent=1 // pred_check
      _
    $region47: #{tpu_custom_call.1} parent=1 // pred_check_branch
      %115 = sbr.rel (0) target = $region49
    $region48: #{tpu_custom_call.1} parent=1 // pred_region
      %116 = dma.done [#allocation6], 128
    $region49: #{tpu_custom_call.1} parent=1 // pred_fallthru
      _
    // Predicated region
    $region50: #{tpu_custom_call.1} parent=1 // pred_check
      _
    $region51: #{tpu_custom_call.1} parent=1 // pred_check_branch
      %118 = sbr.rel (0) target = $region53
    $region52: #{tpu_custom_call.1} parent=1 // pred_region
      %119 = dma.done [#allocation9], 16
    $region53: #{tpu_custom_call.1} parent=1 // pred_fallthru
      _
    // Predicated region
    $region54: #{tpu_custom_call.1} parent=1 // pred_check
      _
    $region55: #{tpu_custom_call.1} parent=1 // pred_check_branch
      %121 = sbr.rel (0) target = $region57
    $region56: #{tpu_custom_call.1} parent=1 // pred_region
      %122 = dma.done [#allocation9], 3840
    $region57: #{tpu_custom_call.1} parent=1 // pred_fallthru
      _
    // Predicated region
    $region58: #{tpu_custom_call.1} parent=1 // pred_check
      _
    $region59: #{tpu_custom_call.1} parent=1 // pred_check_branch
      %124 = sbr.rel (0) target = $region61
    $region60: #{tpu_custom_call.1} parent=1 // pred_region
      %125 = dma.done [#allocation12], 80
    $region61: #{tpu_custom_call.1} parent=1 // pred_fallthru
      _
    // Predicated region
    $region62: #{tpu_custom_call.1} parent=1 // pred_check
      _
    $region63: #{tpu_custom_call.1} parent=1 // pred_check_branch
      %127 = sbr.rel (0) target = $region65
    $region64: #{tpu_custom_call.1} parent=1 // pred_region
      %128 = dma.done [#allocation12], 5120
    $region65: #{tpu_custom_call.1} parent=1 // pred_fallthru
      _
    // Predicated region
    $region66: #{tpu_custom_call.1} parent=1 // pred_check
      _
    $region67: #{tpu_custom_call.1} parent=1 // pred_check_branch
      %130 = sbr.rel (0) target = $region69
    $region68: #{tpu_custom_call.1} parent=1 // pred_region
      %131 = dma.done [#allocation15], 16
    $region69: #{tpu_custom_call.1} parent=1 // pred_fallthru
      _
    %v133 = vld [vmem:[#allocation2] sm:$0xff]
    %v134 = vld [vmem:[#allocation2 + $0x8] sm:$0xff]
    %v135 = vld [vmem:[#allocation2 + $0x10] sm:$0xff]
    %v136 = vld [vmem:[#allocation2 + $0x18] sm:$0xf]
    %v137 = vld [vmem:[#allocation5] sm:$0xff]
    %v138 = vld [vmem:[#allocation5 + $0x8] sm:$0xff]
    %v139 = vld [vmem:[#allocation5 + $0x10] sm:$0xff]
    %v140 = vld [vmem:[#allocation5 + $0x18] sm:$0xff]
    %v141 = vld [vmem:[#allocation5 + $0x20] sm:$0xff]
    %v142 = vld [vmem:[#allocation5 + $0x28] sm:$0xff]
    %v143 = vld [vmem:[#allocation5 + $0x30] sm:$0xff]
    %v144 = vld [vmem:[#allocation5 + $0x38] sm:$0xff]
    %v145 = vld [vmem:[#allocation5 + $0x40] sm:$0xff]
    %v146 = vld [vmem:[#allocation5 + $0x48] sm:$0xff]
    %v147 = vld [vmem:[#allocation5 + $0x50] sm:$0xff]
    %v148 = vld [vmem:[#allocation5 + $0x58] sm:$0xff]
    %v149 = vld [vmem:[#allocation5 + $0x60] sm:$0xff]
    %v150 = vld [vmem:[#allocation5 + $0x68] sm:$0xff]
    %v151 = vld [vmem:[#allocation5 + $0x70] sm:$0xff]
    %v152 = vld [vmem:[#allocation5 + $0x78] sm:$0xff]
    %v153 = vld [vmem:[#allocation5 + $0x80] sm:$0xff]
    %v154 = vld [vmem:[#allocation5 + $0x88] sm:$0xff]
    %v155 = vld [vmem:[#allocation5 + $0x90] sm:$0xff]
    %v156 = vld [vmem:[#allocation5 + $0x98] sm:$0xff]
    %v157 = vld [vmem:[#allocation5 + $0xa0] sm:$0xff]
    %v158 = vld [vmem:[#allocation5 + $0xa8] sm:$0xff]
    %v159 = vld [vmem:[#allocation5 + $0xb0] sm:$0xff]
    %v160 = vld [vmem:[#allocation5 + $0xb8] sm:$0xff]
    %v161 = vld [vmem:[#allocation5 + $0xc0] sm:$0xff]
    %v162 = vld [vmem:[#allocation5 + $0xc8] sm:$0xff]
    %v163 = vld [vmem:[#allocation5 + $0xd0] sm:$0xff]
    %v164 = vld [vmem:[#allocation5 + $0xd8] sm:$0xff]
    %v165 = vld [vmem:[#allocation5 + $0xe0] sm:$0xff]
    %v166 = vld [vmem:[#allocation5 + $0xe8] sm:$0xff]
    %v167 = vld [vmem:[#allocation5 + $0xf0] sm:$0xff]
    %v168 = vld [vmem:[#allocation5 + $0xf8] sm:$0xff]
    %v169 = vld [vmem:[#allocation5 + $0x100] sm:$0xff]
    %v170 = vld [vmem:[#allocation5 + $0x108] sm:$0xff]
    %v171 = vld [vmem:[#allocation5 + $0x110] sm:$0xff]
    %v172 = vld [vmem:[#allocation5 + $0x118] sm:$0xff]
    %v173 = vld [vmem:[#allocation5 + $0x120] sm:$0xff]
    %v174 = vld [vmem:[#allocation5 + $0x128] sm:$0xff]
    %v175 = vld [vmem:[#allocation5 + $0x130] sm:$0xff]
    %v176 = vld [vmem:[#allocation5 + $0x138] sm:$0xff]
    %v177 = vld [vmem:[#allocation5 + $0x140] sm:$0xff]
    %v178 = vld [vmem:[#allocation5 + $0x148] sm:$0xff]
    %v179 = vld [vmem:[#allocation5 + $0x150] sm:$0xff]
    %v180 = vld [vmem:[#allocation5 + $0x158] sm:$0xff]
    %v181 = vld [vmem:[#allocation5 + $0x160] sm:$0xff]
    %v182 = vld [vmem:[#allocation5 + $0x168] sm:$0xff]
    %v183 = vld [vmem:[#allocation5 + $0x170] sm:$0xff]
    %v184 = vld [vmem:[#allocation5 + $0x178] sm:$0xff]
    %v185 = vld [vmem:[#allocation5 + $0x180] sm:$0xff]
    %v186 = vld [vmem:[#allocation5 + $0x188] sm:$0xff]
    %v187 = vld [vmem:[#allocation5 + $0x190] sm:$0xff]
    %v188 = vld [vmem:[#allocation5 + $0x198] sm:$0xff]
    %v189 = vld [vmem:[#allocation5 + $0x1a0] sm:$0xff]
    %v190 = vld [vmem:[#allocation5 + $0x1a8] sm:$0xff]
    %v191 = vld [vmem:[#allocation5 + $0x1b0] sm:$0xff]
    %v192 = vld [vmem:[#allocation5 + $0x1b8] sm:$0xff]
    %v193 = vld [vmem:[#allocation5 + $0x1c0] sm:$0xff]
    %v194 = vld [vmem:[#allocation5 + $0x1c8] sm:$0xff]
    %v195 = vld [vmem:[#allocation5 + $0x1d0] sm:$0xff]
    %v196 = vld [vmem:[#allocation5 + $0x1d8] sm:$0xff]
    %v197 = vld [vmem:[#allocation5 + $0x1e0] sm:$0xff]
    %v198 = vld [vmem:[#allocation5 + $0x1e8] sm:$0xff]
    %v199 = vld [vmem:[#allocation5 + $0x1f0] sm:$0xff]
    %v200 = vld [vmem:[#allocation5 + $0x1f8] sm:$0xff]
    %v201 = vld [vmem:[#allocation5 + $0x200] sm:$0xff]
    %v202 = vld [vmem:[#allocation5 + $0x208] sm:$0xff]
    %v203 = vld [vmem:[#allocation5 + $0x210] sm:$0xff]
    %v204 = vld [vmem:[#allocation5 + $0x218] sm:$0xff]
    %v205 = vld [vmem:[#allocation5 + $0x220] sm:$0xff]
    %v206 = vld [vmem:[#allocation5 + $0x228] sm:$0xff]
    %v207 = vld [vmem:[#allocation5 + $0x230] sm:$0xff]
    %v208 = vld [vmem:[#allocation5 + $0x238] sm:$0xff]
    %v209 = vld [vmem:[#allocation5 + $0x240] sm:$0xff]
    %v210 = vld [vmem:[#allocation5 + $0x248] sm:$0xff]
    %v211 = vld [vmem:[#allocation5 + $0x250] sm:$0xff]
    %v212 = vld [vmem:[#allocation5 + $0x258] sm:$0xff]
    %v213 = vld [vmem:[#allocation5 + $0x260] sm:$0xff]
    %v214 = vld [vmem:[#allocation5 + $0x268] sm:$0xff]
    %v215 = vld [vmem:[#allocation5 + $0x270] sm:$0xff]
    %v216 = vld [vmem:[#allocation5 + $0x278] sm:$0xff]
    %v217 = vld [vmem:[#allocation5 + $0x280] sm:$0xff]
    %v218 = vld [vmem:[#allocation5 + $0x288] sm:$0xff]
    %v219 = vld [vmem:[#allocation5 + $0x290] sm:$0xff]
    %v220 = vld [vmem:[#allocation5 + $0x298] sm:$0xff]
    %v221 = vld [vmem:[#allocation5 + $0x2a0] sm:$0xff]
    %v222 = vld [vmem:[#allocation5 + $0x2a8] sm:$0xff]
    %v223 = vld [vmem:[#allocation5 + $0x2b0] sm:$0xff]
    %v224 = vld [vmem:[#allocation5 + $0x2b8] sm:$0xff]
    %v225 = vld [vmem:[#allocation5 + $0x2c0] sm:$0xff]
    %v226 = vld [vmem:[#allocation5 + $0x2c8] sm:$0xff]
    %v227 = vld [vmem:[#allocation5 + $0x2d0] sm:$0xff]
    %v228 = vld [vmem:[#allocation5 + $0x2d8] sm:$0xff]
    %v229 = vld [vmem:[#allocation5 + $0x2e0] sm:$0xff]
    %v230 = vld [vmem:[#allocation5 + $0x2e8] sm:$0xff]
    %v231 = vld [vmem:[#allocation5 + $0x2f0] sm:$0xff]
    %v232 = vld [vmem:[#allocation5 + $0x2f8] sm:$0xff]
    %v233 = vld [vmem:[#allocation5 + $0x300] sm:$0xff]
    %v234 = vld [vmem:[#allocation5 + $0x308] sm:$0xff]
    %v235 = vld [vmem:[#allocation5 + $0x310] sm:$0xff]
    %v236 = vld [vmem:[#allocation5 + $0x318] sm:$0xff]
    %v237 = vld [vmem:[#allocation5 + $0x320] sm:$0xff]
    %v238 = vld [vmem:[#allocation5 + $0x328] sm:$0xff]
    %v239 = vld [vmem:[#allocation5 + $0x330] sm:$0xff]
    %v240 = vld [vmem:[#allocation5 + $0x338] sm:$0xff]
    %v241 = vld [vmem:[#allocation5 + $0x340] sm:$0xff]
    %v242 = vld [vmem:[#allocation5 + $0x348] sm:$0xff]
    %v243 = vld [vmem:[#allocation5 + $0x350] sm:$0xff]
    %v244 = vld [vmem:[#allocation5 + $0x358] sm:$0xff]
    %v245 = vld [vmem:[#allocation5 + $0x360] sm:$0xff]
    %v246 = vld [vmem:[#allocation5 + $0x368] sm:$0xff]
    %v247 = vld [vmem:[#allocation5 + $0x370] sm:$0xff]
    %v248 = vld [vmem:[#allocation5 + $0x378] sm:$0xff]
    %v249 = vld [vmem:[#allocation5 + $0x380] sm:$0xff]
    %v250 = vld [vmem:[#allocation5 + $0x388] sm:$0xff]
    %v251 = vld [vmem:[#allocation5 + $0x390] sm:$0xff]
    %v252 = vld [vmem:[#allocation5 + $0x398] sm:$0xff]
    %v253 = vld [vmem:[#allocation5 + $0x3a0] sm:$0xff]
    %v254 = vld [vmem:[#allocation5 + $0x3a8] sm:$0xff]
    %v255 = vld [vmem:[#allocation5 + $0x3b0] sm:$0xff]
    %v256 = vld [vmem:[#allocation5 + $0x3b8] sm:$0xff]
    %v257 = vld [vmem:[#allocation5 + $0x3c0] sm:$0xff]
    %v258 = vld [vmem:[#allocation5 + $0x3c8] sm:$0xff]
    %v259 = vld [vmem:[#allocation5 + $0x3d0] sm:$0xff]
    %v260 = vld [vmem:[#allocation5 + $0x3d8] sm:$0xff]
    %v261 = vld [vmem:[#allocation5 + $0x3e0] sm:$0xff]
    %v262 = vld [vmem:[#allocation5 + $0x3e8] sm:$0xff]
    %v263 = vld [vmem:[#allocation5 + $0x3f0] sm:$0xff]
    %v264 = vld [vmem:[#allocation5 + $0x3f8] sm:$0xff]
    %v265 = vld [vmem:[#allocation5 + $0x400] sm:$0xff]
    %v266 = vld [vmem:[#allocation5 + $0x408] sm:$0xff]
    %v267 = vld [vmem:[#allocation5 + $0x410] sm:$0xff]
    %v268 = vld [vmem:[#allocation5 + $0x418] sm:$0xff]
    %v269 = vld [vmem:[#allocation5 + $0x420] sm:$0xff]
    %v270 = vld [vmem:[#allocation5 + $0x428] sm:$0xff]
    %v271 = vld [vmem:[#allocation5 + $0x430] sm:$0xff]
    %v272 = vld [vmem:[#allocation5 + $0x438] sm:$0xff]
    %v273 = vld [vmem:[#allocation5 + $0x440] sm:$0xff]
    %v274 = vld [vmem:[#allocation5 + $0x448] sm:$0xff]
    %v275 = vld [vmem:[#allocation5 + $0x450] sm:$0xff]
    %v276 = vld [vmem:[#allocation5 + $0x458] sm:$0xff]
    %v277 = vld [vmem:[#allocation5 + $0x460] sm:$0xff]
    %v278 = vld [vmem:[#allocation5 + $0x468] sm:$0xff]
    %v279 = vld [vmem:[#allocation5 + $0x470] sm:$0xff]
    %v280 = vld [vmem:[#allocation5 + $0x478] sm:$0xff]
    %v281 = vld [vmem:[#allocation5 + $0x480] sm:$0xff]
    %v282 = vld [vmem:[#allocation5 + $0x488] sm:$0xff]
    %v283 = vld [vmem:[#allocation5 + $0x490] sm:$0xff]
    %v284 = vld [vmem:[#allocation5 + $0x498] sm:$0xff]
    %v285 = vld [vmem:[#allocation5 + $0x4a0] sm:$0xff]
    %v286 = vld [vmem:[#allocation5 + $0x4a8] sm:$0xff]
    %v287 = vld [vmem:[#allocation5 + $0x4b0] sm:$0xff]
    %v288 = vld [vmem:[#allocation5 + $0x4b8] sm:$0xff]
    %v289 = vld [vmem:[#allocation5 + $0x4c0] sm:$0xff]
    %v290 = vld [vmem:[#allocation5 + $0x4c8] sm:$0xff]
    %v291 = vld [vmem:[#allocation5 + $0x4d0] sm:$0xff]
    %v292 = vld [vmem:[#allocation5 + $0x4d8] sm:$0xff]
    %v293 = vld [vmem:[#allocation5 + $0x4e0] sm:$0xff]
    %v294 = vld [vmem:[#allocation5 + $0x4e8] sm:$0xff]
    %v295 = vld [vmem:[#allocation5 + $0x4f0] sm:$0xff]
    %v296 = vld [vmem:[#allocation5 + $0x4f8] sm:$0xff]
    %v297 = vld [vmem:[#allocation5 + $0x500] sm:$0xff]
    %v298 = vld [vmem:[#allocation5 + $0x508] sm:$0xff]
    %v299 = vld [vmem:[#allocation5 + $0x510] sm:$0xff]
    %v300 = vld [vmem:[#allocation5 + $0x518] sm:$0xff]
    %v301 = vld [vmem:[#allocation5 + $0x520] sm:$0xff]
    %v302 = vld [vmem:[#allocation5 + $0x528] sm:$0xff]
    %v303 = vld [vmem:[#allocation5 + $0x530] sm:$0xff]
    %v304 = vld [vmem:[#allocation5 + $0x538] sm:$0xff]
    %v305 = vld [vmem:[#allocation5 + $0x540] sm:$0xff]
    %v306 = vld [vmem:[#allocation5 + $0x548] sm:$0xff]
    %v307 = vld [vmem:[#allocation5 + $0x550] sm:$0xff]
    %v308 = vld [vmem:[#allocation5 + $0x558] sm:$0xff]
    %v309 = vld [vmem:[#allocation5 + $0x560] sm:$0xff]
    %v310 = vld [vmem:[#allocation5 + $0x568] sm:$0xff]
    %v311 = vld [vmem:[#allocation5 + $0x570] sm:$0xff]
    %v312 = vld [vmem:[#allocation5 + $0x578] sm:$0xff]
    %v313 = vld [vmem:[#allocation5 + $0x580] sm:$0xff]
    %v314 = vld [vmem:[#allocation5 + $0x588] sm:$0xff]
    %v315 = vld [vmem:[#allocation5 + $0x590] sm:$0xff]
    %v316 = vld [vmem:[#allocation5 + $0x598] sm:$0xff]
    %v317 = vld [vmem:[#allocation5 + $0x5a0] sm:$0xff]
    %v318 = vld [vmem:[#allocation5 + $0x5a8] sm:$0xff]
    %v319 = vld [vmem:[#allocation5 + $0x5b0] sm:$0xff]
    %v320 = vld [vmem:[#allocation5 + $0x5b8] sm:$0xff]
    %v321 = vld [vmem:[#allocation5 + $0x5c0] sm:$0xff]
    %v322 = vld [vmem:[#allocation5 + $0x5c8] sm:$0xff]
    %v323 = vld [vmem:[#allocation5 + $0x5d0] sm:$0xff]
    %v324 = vld [vmem:[#allocation5 + $0x5d8] sm:$0xff]
    %v325 = vld [vmem:[#allocation5 + $0x5e0] sm:$0xff]
    %v326 = vld [vmem:[#allocation5 + $0x5e8] sm:$0xff]
    %v327 = vld [vmem:[#allocation5 + $0x5f0] sm:$0xff]
    %v328 = vld [vmem:[#allocation5 + $0x5f8] sm:$0xff]
    %v329 = vld [vmem:[#allocation5 + $0x600] sm:$0xff]
    %v330 = vld [vmem:[#allocation5 + $0x608] sm:$0xff]
    %v331 = vld [vmem:[#allocation5 + $0x610] sm:$0xff]
    %v332 = vld [vmem:[#allocation5 + $0x618] sm:$0xff]
    %v333 = vld [vmem:[#allocation5 + $0x620] sm:$0xff]
    %v334 = vld [vmem:[#allocation5 + $0x628] sm:$0xff]
    %v335 = vld [vmem:[#allocation5 + $0x630] sm:$0xff]
    %v336 = vld [vmem:[#allocation5 + $0x638] sm:$0xff]
    %v337 = vld [vmem:[#allocation5 + $0x640] sm:$0xff]
    %v338 = vld [vmem:[#allocation5 + $0x648] sm:$0xff]
    %v339 = vld [vmem:[#allocation5 + $0x650] sm:$0xff]
    %v340 = vld [vmem:[#allocation5 + $0x658] sm:$0xff]
    %v341 = vld [vmem:[#allocation5 + $0x660] sm:$0xff]
    %v342 = vld [vmem:[#allocation5 + $0x668] sm:$0xff]
    %v343 = vld [vmem:[#allocation5 + $0x670] sm:$0xff]
    %v344 = vld [vmem:[#allocation5 + $0x678] sm:$0xff]
    %v345 = vld [vmem:[#allocation5 + $0x680] sm:$0xff]
    %v346 = vld [vmem:[#allocation5 + $0x688] sm:$0xff]
    %v347 = vld [vmem:[#allocation5 + $0x690] sm:$0xff]
    %v348 = vld [vmem:[#allocation5 + $0x698] sm:$0xff]
    %v349 = vld [vmem:[#allocation5 + $0x6a0] sm:$0xff]
    %v350 = vld [vmem:[#allocation5 + $0x6a8] sm:$0xff]
    %v351 = vld [vmem:[#allocation5 + $0x6b0] sm:$0xff]
    %v352 = vld [vmem:[#allocation5 + $0x6b8] sm:$0xff]
    %v353 = vld [vmem:[#allocation5 + $0x6c0] sm:$0xff]
    %v354 = vld [vmem:[#allocation5 + $0x6c8] sm:$0xff]
    %v355 = vld [vmem:[#allocation5 + $0x6d0] sm:$0xff]
    %v356 = vld [vmem:[#allocation5 + $0x6d8] sm:$0xff]
    %v357 = vld [vmem:[#allocation5 + $0x6e0] sm:$0xff]
    %v358 = vld [vmem:[#allocation5 + $0x6e8] sm:$0xff]
    %v359 = vld [vmem:[#allocation5 + $0x6f0] sm:$0xff]
    %v360 = vld [vmem:[#allocation5 + $0x6f8] sm:$0xff]
    %v361 = vld [vmem:[#allocation5 + $0x700] sm:$0xff]
    %v362 = vld [vmem:[#allocation5 + $0x708] sm:$0xff]
    %v363 = vld [vmem:[#allocation5 + $0x710] sm:$0xff]
    %v364 = vld [vmem:[#allocation5 + $0x718] sm:$0xff]
    %v365 = vld [vmem:[#allocation5 + $0x720] sm:$0xff]
    %v366 = vld [vmem:[#allocation5 + $0x728] sm:$0xff]
    %v367 = vld [vmem:[#allocation5 + $0x730] sm:$0xff]
    %v368 = vld [vmem:[#allocation5 + $0x738] sm:$0xff]
    %v369 = vld [vmem:[#allocation5 + $0x740] sm:$0xff]
    %v370 = vld [vmem:[#allocation5 + $0x748] sm:$0xff]
    %v371 = vld [vmem:[#allocation5 + $0x750] sm:$0xff]
    %v372 = vld [vmem:[#allocation5 + $0x758] sm:$0xff]
    %v373 = vld [vmem:[#allocation5 + $0x760] sm:$0xff]
    %v374 = vld [vmem:[#allocation5 + $0x768] sm:$0xff]
    %v375 = vld [vmem:[#allocation5 + $0x770] sm:$0xff]
    %v376 = vld [vmem:[#allocation5 + $0x778] sm:$0xff]
    %v377 = vld [vmem:[#allocation5 + $0x780] sm:$0xff]
    %v378 = vld [vmem:[#allocation5 + $0x788] sm:$0xff]
    %v379 = vld [vmem:[#allocation5 + $0x790] sm:$0xff]
    %v380 = vld [vmem:[#allocation5 + $0x798] sm:$0xff]
    %v381 = vld [vmem:[#allocation5 + $0x7a0] sm:$0xff]
    %v382 = vld [vmem:[#allocation5 + $0x7a8] sm:$0xff]
    %v383 = vld [vmem:[#allocation5 + $0x7b0] sm:$0xff]
    %v384 = vld [vmem:[#allocation5 + $0x7b8] sm:$0xff]
    %v385 = vld [vmem:[#allocation5 + $0x7c0] sm:$0xff]
    %v386 = vld [vmem:[#allocation5 + $0x7c8] sm:$0xff]
    %v387 = vld [vmem:[#allocation5 + $0x7d0] sm:$0xff]
    %v388 = vld [vmem:[#allocation5 + $0x7d8] sm:$0xff]
    %v389 = vld [vmem:[#allocation5 + $0x7e0] sm:$0xff]
    %v390 = vld [vmem:[#allocation5 + $0x7e8] sm:$0xff]
    %v391 = vld [vmem:[#allocation5 + $0x7f0] sm:$0xff]
    %v392 = vld [vmem:[#allocation5 + $0x7f8] sm:$0xff]
    %v393 = vld [vmem:[#allocation5 + $0x800] sm:$0xff]
    %v394 = vld [vmem:[#allocation5 + $0x808] sm:$0xff]
    %v395 = vld [vmem:[#allocation5 + $0x810] sm:$0xff]
    %v396 = vld [vmem:[#allocation5 + $0x818] sm:$0xff]
    %v397 = vld [vmem:[#allocation5 + $0x820] sm:$0xff]
    %v398 = vld [vmem:[#allocation5 + $0x828] sm:$0xff]
    %v399 = vld [vmem:[#allocation5 + $0x830] sm:$0xff]
    %v400 = vld [vmem:[#allocation5 + $0x838] sm:$0xff]
    %v401 = vld [vmem:[#allocation5 + $0x840] sm:$0xff]
    %v402 = vld [vmem:[#allocation5 + $0x848] sm:$0xff]
    %v403 = vld [vmem:[#allocation5 + $0x850] sm:$0xff]
    %v404 = vld [vmem:[#allocation5 + $0x858] sm:$0xff]
    %v405 = vld [vmem:[#allocation5 + $0x860] sm:$0xff]
    %v406 = vld [vmem:[#allocation5 + $0x868] sm:$0xff]
    %v407 = vld [vmem:[#allocation5 + $0x870] sm:$0xff]
    %v408 = vld [vmem:[#allocation5 + $0x878] sm:$0xff]
    %v409 = vld [vmem:[#allocation5 + $0x880] sm:$0xff]
    %v410 = vld [vmem:[#allocation5 + $0x888] sm:$0xff]
    %v411 = vld [vmem:[#allocation5 + $0x890] sm:$0xff]
    %v412 = vld [vmem:[#allocation5 + $0x898] sm:$0xff]
    %v413 = vld [vmem:[#allocation5 + $0x8a0] sm:$0xff]
    %v414 = vld [vmem:[#allocation5 + $0x8a8] sm:$0xff]
    %v415 = vld [vmem:[#allocation5 + $0x8b0] sm:$0xff]
    %v416 = vld [vmem:[#allocation5 + $0x8b8] sm:$0xff]
    %v417 = vld [vmem:[#allocation5 + $0x8c0] sm:$0xff]
    %v418 = vld [vmem:[#allocation5 + $0x8c8] sm:$0xff]
    %v419 = vld [vmem:[#allocation5 + $0x8d0] sm:$0xff]
    %v420 = vld [vmem:[#allocation5 + $0x8d8] sm:$0xff]
    %v421 = vld [vmem:[#allocation5 + $0x8e0] sm:$0xff]
    %v422 = vld [vmem:[#allocation5 + $0x8e8] sm:$0xff]
    %v423 = vld [vmem:[#allocation5 + $0x8f0] sm:$0xff]
    %v424 = vld [vmem:[#allocation5 + $0x8f8] sm:$0xff]
    %v425 = vld [vmem:[#allocation5 + $0x900] sm:$0xff]
    %v426 = vld [vmem:[#allocation5 + $0x908] sm:$0xff]
    %v427 = vld [vmem:[#allocation5 + $0x910] sm:$0xff]
    %v428 = vld [vmem:[#allocation5 + $0x918] sm:$0xff]
    %v429 = vld [vmem:[#allocation5 + $0x920] sm:$0xff]
    %v430 = vld [vmem:[#allocation5 + $0x928] sm:$0xff]
    %v431 = vld [vmem:[#allocation5 + $0x930] sm:$0xff]
    %v432 = vld [vmem:[#allocation5 + $0x938] sm:$0xff]
    %v433 = vld [vmem:[#allocation5 + $0x940] sm:$0xff]
    %v434 = vld [vmem:[#allocation5 + $0x948] sm:$0xff]
    %v435 = vld [vmem:[#allocation5 + $0x950] sm:$0xff]
    %v436 = vld [vmem:[#allocation5 + $0x958] sm:$0xff]
    %v437 = vld [vmem:[#allocation5 + $0x960] sm:$0xff]
    %v438 = vld [vmem:[#allocation5 + $0x968] sm:$0xff]
    %v439 = vld [vmem:[#allocation5 + $0x970] sm:$0xff]
    %v440 = vld [vmem:[#allocation5 + $0x978] sm:$0xff]
    %v441 = vld [vmem:[#allocation5 + $0x980] sm:$0xff]
    %v442 = vld [vmem:[#allocation5 + $0x988] sm:$0xff]
    %v443 = vld [vmem:[#allocation5 + $0x990] sm:$0xff]
    %v444 = vld [vmem:[#allocation5 + $0x998] sm:$0xff]
    %v445 = vld [vmem:[#allocation5 + $0x9a0] sm:$0xff]
    %v446 = vld [vmem:[#allocation5 + $0x9a8] sm:$0xff]
    %v447 = vld [vmem:[#allocation5 + $0x9b0] sm:$0xff]
    %v448 = vld [vmem:[#allocation5 + $0x9b8] sm:$0xff]
    %v449 = vld [vmem:[#allocation5 + $0x9c0] sm:$0xff]
    %v450 = vld [vmem:[#allocation5 + $0x9c8] sm:$0xff]
    %v451 = vld [vmem:[#allocation5 + $0x9d0] sm:$0xff]
    %v452 = vld [vmem:[#allocation5 + $0x9d8] sm:$0xff]
    %v453 = vld [vmem:[#allocation5 + $0x9e0] sm:$0xff]
    %v454 = vld [vmem:[#allocation5 + $0x9e8] sm:$0xff]
    %v455 = vld [vmem:[#allocation5 + $0x9f0] sm:$0xff]
    %v456 = vld [vmem:[#allocation5 + $0x9f8] sm:$0xff]
    %v457 = vld [vmem:[#allocation5 + $0xa00] sm:$0xff]
    %v458 = vld [vmem:[#allocation5 + $0xa08] sm:$0xff]
    %v459 = vld [vmem:[#allocation5 + $0xa10] sm:$0xff]
    %v460 = vld [vmem:[#allocation5 + $0xa18] sm:$0xff]
    %v461 = vld [vmem:[#allocation5 + $0xa20] sm:$0xff]
    %v462 = vld [vmem:[#allocation5 + $0xa28] sm:$0xff]
    %v463 = vld [vmem:[#allocation5 + $0xa30] sm:$0xff]
    %v464 = vld [vmem:[#allocation5 + $0xa38] sm:$0xff]
    %v465 = vld [vmem:[#allocation5 + $0xa40] sm:$0xff]
    %v466 = vld [vmem:[#allocation5 + $0xa48] sm:$0xff]
    %v467 = vld [vmem:[#allocation5 + $0xa50] sm:$0xff]
    %v468 = vld [vmem:[#allocation5 + $0xa58] sm:$0xff]
    %v469 = vld [vmem:[#allocation5 + $0xa60] sm:$0xff]
    %v470 = vld [vmem:[#allocation5 + $0xa68] sm:$0xff]
    %v471 = vld [vmem:[#allocation5 + $0xa70] sm:$0xff]
    %v472 = vld [vmem:[#allocation5 + $0xa78] sm:$0xff]
    %v473 = vld [vmem:[#allocation5 + $0xa80] sm:$0xff]
    %v474 = vld [vmem:[#allocation5 + $0xa88] sm:$0xff]
    %v475 = vld [vmem:[#allocation5 + $0xa90] sm:$0xff]
    %v476 = vld [vmem:[#allocation5 + $0xa98] sm:$0xff]
    %v477 = vld [vmem:[#allocation5 + $0xaa0] sm:$0xff]
    %v478 = vld [vmem:[#allocation5 + $0xaa8] sm:$0xff]
    %v479 = vld [vmem:[#allocation5 + $0xab0] sm:$0xff]
    %v480 = vld [vmem:[#allocation5 + $0xab8] sm:$0xff]
    %v481 = vld [vmem:[#allocation5 + $0xac0] sm:$0xff]
    %v482 = vld [vmem:[#allocation5 + $0xac8] sm:$0xff]
    %v483 = vld [vmem:[#allocation5 + $0xad0] sm:$0xff]
    %v484 = vld [vmem:[#allocation5 + $0xad8] sm:$0xff]
    %v485 = vld [vmem:[#allocation5 + $0xae0] sm:$0xff]
    %v486 = vld [vmem:[#allocation5 + $0xae8] sm:$0xff]
    %v487 = vld [vmem:[#allocation5 + $0xaf0] sm:$0xff]
    %v488 = vld [vmem:[#allocation5 + $0xaf8] sm:$0xff]
    %v489 = vld [vmem:[#allocation5 + $0xb00] sm:$0xff]
    %v490 = vld [vmem:[#allocation5 + $0xb08] sm:$0xff]
    %v491 = vld [vmem:[#allocation5 + $0xb10] sm:$0xff]
    %v492 = vld [vmem:[#allocation5 + $0xb18] sm:$0xff]
    %v493 = vld [vmem:[#allocation5 + $0xb20] sm:$0xff]
    %v494 = vld [vmem:[#allocation5 + $0xb28] sm:$0xff]
    %v495 = vld [vmem:[#allocation5 + $0xb30] sm:$0xff]
    %v496 = vld [vmem:[#allocation5 + $0xb38] sm:$0xff]
    %v497 = vld [vmem:[#allocation5 + $0xb40] sm:$0xff]
    %v498 = vld [vmem:[#allocation5 + $0xb48] sm:$0xff]
    %v499 = vld [vmem:[#allocation5 + $0xb50] sm:$0xff]
    %v500 = vld [vmem:[#allocation5 + $0xb58] sm:$0xff]
    %v501 = vld [vmem:[#allocation5 + $0xb60] sm:$0xff]
    %v502 = vld [vmem:[#allocation5 + $0xb68] sm:$0xff]
    %v503 = vld [vmem:[#allocation5 + $0xb70] sm:$0xff]
    %v504 = vld [vmem:[#allocation5 + $0xb78] sm:$0xff]
    %v505 = vld [vmem:[#allocation5 + $0xb80] sm:$0xff]
    %v506 = vld [vmem:[#allocation5 + $0xb88] sm:$0xff]
    %v507 = vld [vmem:[#allocation5 + $0xb90] sm:$0xff]
    %v508 = vld [vmem:[#allocation5 + $0xb98] sm:$0xff]
    %v509 = vld [vmem:[#allocation5 + $0xba0] sm:$0xff]
    %v510 = vld [vmem:[#allocation5 + $0xba8] sm:$0xff]
    %v511 = vld [vmem:[#allocation5 + $0xbb0] sm:$0xff]
    %v512 = vld [vmem:[#allocation5 + $0xbb8] sm:$0xff]
    %v513 = vld [vmem:[#allocation5 + $0xbc0] sm:$0xff]
    %v514 = vld [vmem:[#allocation5 + $0xbc8] sm:$0xff]
    %v515 = vld [vmem:[#allocation5 + $0xbd0] sm:$0xff]
    %v516 = vld [vmem:[#allocation5 + $0xbd8] sm:$0xff]
    %v517 = vld [vmem:[#allocation5 + $0xbe0] sm:$0xff]
    %v518 = vld [vmem:[#allocation5 + $0xbe8] sm:$0xff]
    %v519 = vld [vmem:[#allocation5 + $0xbf0] sm:$0xff]
    %v520 = vld [vmem:[#allocation5 + $0xbf8] sm:$0xff]
    %v521 = vld [vmem:[#allocation5 + $0xc00] sm:$0xff]
    %v522 = vld [vmem:[#allocation5 + $0xc08] sm:$0xff]
    %v523 = vld [vmem:[#allocation5 + $0xc10] sm:$0xff]
    %v524 = vld [vmem:[#allocation5 + $0xc18] sm:$0xff]
    %v525 = vld [vmem:[#allocation5 + $0xc20] sm:$0x33]
    %v526 = vld [vmem:[#allocation5 + $0xc28] sm:$0x33]
    %v527 = vld [vmem:[#allocation5 + $0xc30] sm:$0x33]
    %v528 = vld [vmem:[#allocation5 + $0xc38] sm:$0x33]
    %v529 = vld [vmem:[#allocation7] sm:$0xff]
    %v531 = vlaneseq
    %v532 = vshrl.u32 %v531, 7
    %v533 = vsub.s32 0, %v532
    %v534 = vrot.slane %v529, %v533
    %v535 = vlaneseq
    %v536 = vshrl.u32 %v535, 7
    %v537 = vsub.s32 1, %v536
    %v538 = vrot.slane %v529, %v537
    %v539 = vlaneseq
    %v540 = vshrl.u32 %v539, 7
    %v541 = vsub.s32 2, %v540
    %v542 = vrot.slane %v529, %v541
    %v543 = vlaneseq
    %v544 = vshrl.u32 %v543, 7
    %v545 = vsub.s32 3, %v544
    %v546 = vrot.slane %v529, %v545
    %v547 = vlaneseq
    %v548 = vshrl.u32 %v547, 7
    %v549 = vsub.s32 4, %v548
    %v550 = vrot.slane %v529, %v549
    %v551 = vlaneseq
    %v552 = vshrl.u32 %v551, 7
    %v553 = vsub.s32 5, %v552
    %v554 = vrot.slane %v529, %v553
    %v555 = vlaneseq
    %v556 = vshrl.u32 %v555, 7
    %v557 = vsub.s32 6, %v556
    %v558 = vrot.slane %v529, %v557
    %v559 = vlaneseq
    %v560 = vshrl.u32 %v559, 7
    %v561 = vsub.s32 7, %v560
    %v562 = vrot.slane %v529, %v561
    %v575 = vunpack.c.l.b16 %v133
    %v576 = vunpack.c.h.b16 %v133
    %v577 = vunpack.c.l.b16 %v134
    %v578 = vunpack.c.h.b16 %v134
    %v579 = vunpack.c.l.b16 %v135
    %v580 = vunpack.c.h.b16 %v135
    %v581 = vunpack.c.l.b16 %v136
    %v582 = vpack.c.b16 %v575, %v575
    %v583 = vpack.c.b16 %v576, %v576
    %v584 = vpack.c.b16 %v577, %v577
    %v585 = vpack.c.b16 %v578, %v578
    %v586 = vpack.c.b16 %v579, %v579
    %v587 = vpack.c.b16 %v580, %v580
    %v588 = vpack.c.b16 %v581, %v581
    %v987 = vunpack.c.l.b16 %v137
    %v988 = vunpack.c.h.b16 %v137
    %v989 = vunpack.c.l.b16 %v138
    %v990 = vunpack.c.h.b16 %v138
    %v991 = vunpack.c.l.b16 %v139
    %v992 = vunpack.c.h.b16 %v139
    %v993 = vunpack.c.l.b16 %v140
    %v994 = vunpack.c.h.b16 %v140
    %v995 = vunpack.c.l.b16 %v141
    %v996 = vunpack.c.h.b16 %v141
    %v997 = vunpack.c.l.b16 %v142
    %v998 = vunpack.c.h.b16 %v142
    %v999 = vunpack.c.l.b16 %v143
    %v1000 = vunpack.c.h.b16 %v143
    %v1001 = vunpack.c.l.b16 %v144
    %v1002 = vunpack.c.h.b16 %v144
    %v1003 = vunpack.c.l.b16 %v145
    %v1004 = vunpack.c.h.b16 %v145
    %v1005 = vunpack.c.l.b16 %v146
    %v1006 = vunpack.c.h.b16 %v146
    %v1007 = vunpack.c.l.b16 %v147
    %v1008 = vunpack.c.h.b16 %v147
    %v1009 = vunpack.c.l.b16 %v148
    %v1010 = vunpack.c.h.b16 %v148
    %v1011 = vunpack.c.l.b16 %v149
    %v1012 = vunpack.c.h.b16 %v149
    %v1013 = vunpack.c.l.b16 %v150
    %v1014 = vunpack.c.h.b16 %v150
    %v1015 = vunpack.c.l.b16 %v151
    %v1016 = vunpack.c.h.b16 %v151
    %v1017 = vunpack.c.l.b16 %v152
    %v1018 = vunpack.c.h.b16 %v152
    %v1019 = vunpack.c.l.b16 %v153
    %v1020 = vunpack.c.h.b16 %v153
    %v1021 = vunpack.c.l.b16 %v154
    %v1022 = vunpack.c.h.b16 %v154
    %v1023 = vunpack.c.l.b16 %v155
    %v1024 = vunpack.c.h.b16 %v155
    %v1025 = vunpack.c.l.b16 %v156
    %v1026 = vunpack.c.h.b16 %v156
    %v1027 = vunpack.c.l.b16 %v157
    %v1028 = vunpack.c.h.b16 %v157
    %v1029 = vunpack.c.l.b16 %v158
    %v1030 = vunpack.c.h.b16 %v158
    %v1031 = vunpack.c.l.b16 %v159
    %v1032 = vunpack.c.h.b16 %v159
    %v1033 = vunpack.c.l.b16 %v160
    %v1034 = vunpack.c.h.b16 %v160
    %v1035 = vunpack.c.l.b16 %v161
    %v1036 = vunpack.c.h.b16 %v161
    %v1037 = vunpack.c.l.b16 %v162
    %v1038 = vunpack.c.h.b16 %v162
    %v1039 = vunpack.c.l.b16 %v163
    %v1040 = vunpack.c.h.b16 %v163
    %v1041 = vunpack.c.l.b16 %v164
    %v1042 = vunpack.c.h.b16 %v164
    %v1043 = vunpack.c.l.b16 %v165
    %v1044 = vunpack.c.h.b16 %v165
    %v1045 = vunpack.c.l.b16 %v166
    %v1046 = vunpack.c.h.b16 %v166
    %v1047 = vunpack.c.l.b16 %v167
    %v1048 = vunpack.c.h.b16 %v167
    %v1049 = vunpack.c.l.b16 %v168
    %v1050 = vunpack.c.h.b16 %v168
    %v1051 = vunpack.c.l.b16 %v169
    %v1052 = vunpack.c.h.b16 %v169
    %v1053 = vunpack.c.l.b16 %v170
    %v1054 = vunpack.c.h.b16 %v170
    %v1055 = vunpack.c.l.b16 %v171
    %v1056 = vunpack.c.h.b16 %v171
    %v1057 = vunpack.c.l.b16 %v172
    %v1058 = vunpack.c.h.b16 %v172
    %v1059 = vunpack.c.l.b16 %v173
    %v1060 = vunpack.c.h.b16 %v173
    %v1061 = vunpack.c.l.b16 %v174
    %v1062 = vunpack.c.h.b16 %v174
    %v1063 = vunpack.c.l.b16 %v175
    %v1064 = vunpack.c.h.b16 %v175
    %v1065 = vunpack.c.l.b16 %v176
    %v1066 = vunpack.c.h.b16 %v176
    %v1067 = vunpack.c.l.b16 %v177
    %v1068 = vunpack.c.h.b16 %v177
    %v1069 = vunpack.c.l.b16 %v178
    %v1070 = vunpack.c.h.b16 %v178
    %v1071 = vunpack.c.l.b16 %v179
    %v1072 = vunpack.c.h.b16 %v179
    %v1073 = vunpack.c.l.b16 %v180
    %v1074 = vunpack.c.h.b16 %v180
    %v1075 = vunpack.c.l.b16 %v181
    %v1076 = vunpack.c.h.b16 %v181
    %v1077 = vunpack.c.l.b16 %v182
    %v1078 = vunpack.c.h.b16 %v182
    %v1079 = vunpack.c.l.b16 %v183
    %v1080 = vunpack.c.h.b16 %v183
    %v1081 = vunpack.c.l.b16 %v184
    %v1082 = vunpack.c.h.b16 %v184
    %v1083 = vunpack.c.l.b16 %v185
    %v1084 = vunpack.c.h.b16 %v185
    %v1085 = vunpack.c.l.b16 %v186
    %v1086 = vunpack.c.h.b16 %v186
    %v1087 = vunpack.c.l.b16 %v187
    %v1088 = vunpack.c.h.b16 %v187
    %v1089 = vunpack.c.l.b16 %v188
    %v1090 = vunpack.c.h.b16 %v188
    %v1091 = vunpack.c.l.b16 %v189
    %v1092 = vunpack.c.h.b16 %v189
    %v1093 = vunpack.c.l.b16 %v190
    %v1094 = vunpack.c.h.b16 %v190
    %v1095 = vunpack.c.l.b16 %v191
    %v1096 = vunpack.c.h.b16 %v191
    %v1097 = vunpack.c.l.b16 %v192
    %v1098 = vunpack.c.h.b16 %v192
    %v1099 = vunpack.c.l.b16 %v193
    %v1100 = vunpack.c.h.b16 %v193
    %v1101 = vunpack.c.l.b16 %v194
    %v1102 = vunpack.c.h.b16 %v194
    %v1103 = vunpack.c.l.b16 %v195
    %v1104 = vunpack.c.h.b16 %v195
    %v1105 = vunpack.c.l.b16 %v196
    %v1106 = vunpack.c.h.b16 %v196
    %v1107 = vunpack.c.l.b16 %v197
    %v1108 = vunpack.c.h.b16 %v197
    %v1109 = vunpack.c.l.b16 %v198
    %v1110 = vunpack.c.h.b16 %v198
    %v1111 = vunpack.c.l.b16 %v199
    %v1112 = vunpack.c.h.b16 %v199
    %v1113 = vunpack.c.l.b16 %v200
    %v1114 = vunpack.c.h.b16 %v200
    %v1115 = vunpack.c.l.b16 %v201
    %v1116 = vunpack.c.h.b16 %v201
    %v1117 = vunpack.c.l.b16 %v202
    %v1118 = vunpack.c.h.b16 %v202
    %v1119 = vunpack.c.l.b16 %v203
    %v1120 = vunpack.c.h.b16 %v203
    %v1121 = vunpack.c.l.b16 %v204
    %v1122 = vunpack.c.h.b16 %v204
    %v1123 = vunpack.c.l.b16 %v205
    %v1124 = vunpack.c.h.b16 %v205
    %v1125 = vunpack.c.l.b16 %v206
    %v1126 = vunpack.c.h.b16 %v206
    %v1127 = vunpack.c.l.b16 %v207
    %v1128 = vunpack.c.h.b16 %v207
    %v1129 = vunpack.c.l.b16 %v208
    %v1130 = vunpack.c.h.b16 %v208
    %v1131 = vunpack.c.l.b16 %v209
    %v1132 = vunpack.c.h.b16 %v209
    %v1133 = vunpack.c.l.b16 %v210
    %v1134 = vunpack.c.h.b16 %v210
    %v1135 = vunpack.c.l.b16 %v211
    %v1136 = vunpack.c.h.b16 %v211
    %v1137 = vunpack.c.l.b16 %v212
    %v1138 = vunpack.c.h.b16 %v212
    %v1139 = vunpack.c.l.b16 %v213
    %v1140 = vunpack.c.h.b16 %v213
    %v1141 = vunpack.c.l.b16 %v214
    %v1142 = vunpack.c.h.b16 %v214
    %v1143 = vunpack.c.l.b16 %v215
    %v1144 = vunpack.c.h.b16 %v215
    %v1145 = vunpack.c.l.b16 %v216
    %v1146 = vunpack.c.h.b16 %v216
    %v1147 = vunpack.c.l.b16 %v217
    %v1148 = vunpack.c.h.b16 %v217
    %v1149 = vunpack.c.l.b16 %v218
    %v1150 = vunpack.c.h.b16 %v218
    %v1151 = vunpack.c.l.b16 %v219
    %v1152 = vunpack.c.h.b16 %v219
    %v1153 = vunpack.c.l.b16 %v220
    %v1154 = vunpack.c.h.b16 %v220
    %v1155 = vunpack.c.l.b16 %v221
    %v1156 = vunpack.c.h.b16 %v221
    %v1157 = vunpack.c.l.b16 %v222
    %v1158 = vunpack.c.h.b16 %v222
    %v1159 = vunpack.c.l.b16 %v223
    %v1160 = vunpack.c.h.b16 %v223
    %v1161 = vunpack.c.l.b16 %v224
    %v1162 = vunpack.c.h.b16 %v224
    %v1163 = vunpack.c.l.b16 %v225
    %v1164 = vunpack.c.h.b16 %v225
    %v1165 = vunpack.c.l.b16 %v226
    %v1166 = vunpack.c.h.b16 %v226
    %v1167 = vunpack.c.l.b16 %v227
    %v1168 = vunpack.c.h.b16 %v227
    %v1169 = vunpack.c.l.b16 %v228
    %v1170 = vunpack.c.h.b16 %v228
    %v1171 = vunpack.c.l.b16 %v229
    %v1172 = vunpack.c.h.b16 %v229
    %v1173 = vunpack.c.l.b16 %v230
    %v1174 = vunpack.c.h.b16 %v230
    %v1175 = vunpack.c.l.b16 %v231
    %v1176 = vunpack.c.h.b16 %v231
    %v1177 = vunpack.c.l.b16 %v232
    %v1178 = vunpack.c.h.b16 %v232
    %v1179 = vunpack.c.l.b16 %v233
    %v1180 = vunpack.c.h.b16 %v233
    %v1181 = vunpack.c.l.b16 %v234
    %v1182 = vunpack.c.h.b16 %v234
    %v1183 = vunpack.c.l.b16 %v235
    %v1184 = vunpack.c.h.b16 %v235
    %v1185 = vunpack.c.l.b16 %v236
    %v1186 = vunpack.c.h.b16 %v236
    %v1187 = vunpack.c.l.b16 %v237
    %v1188 = vunpack.c.h.b16 %v237
    %v1189 = vunpack.c.l.b16 %v238
    %v1190 = vunpack.c.h.b16 %v238
    %v1191 = vunpack.c.l.b16 %v239
    %v1192 = vunpack.c.h.b16 %v239
    %v1193 = vunpack.c.l.b16 %v240
    %v1194 = vunpack.c.h.b16 %v240
    %v1195 = vunpack.c.l.b16 %v241
    %v1196 = vunpack.c.h.b16 %v241
    %v1197 = vunpack.c.l.b16 %v242
    %v1198 = vunpack.c.h.b16 %v242
    %v1199 = vunpack.c.l.b16 %v243
    %v1200 = vunpack.c.h.b16 %v243
    %v1201 = vunpack.c.l.b16 %v244
    %v1202 = vunpack.c.h.b16 %v244
    %v1203 = vunpack.c.l.b16 %v245
    %v1204 = vunpack.c.h.b16 %v245
    %v1205 = vunpack.c.l.b16 %v246
    %v1206 = vunpack.c.h.b16 %v246
    %v1207 = vunpack.c.l.b16 %v247
    %v1208 = vunpack.c.h.b16 %v247
    %v1209 = vunpack.c.l.b16 %v248
    %v1210 = vunpack.c.h.b16 %v248
    %v1211 = vunpack.c.l.b16 %v249
    %v1212 = vunpack.c.h.b16 %v249
    %v1213 = vunpack.c.l.b16 %v250
    %v1214 = vunpack.c.h.b16 %v250
    %v1215 = vunpack.c.l.b16 %v251
    %v1216 = vunpack.c.h.b16 %v251
    %v1217 = vunpack.c.l.b16 %v252
    %v1218 = vunpack.c.h.b16 %v252
    %v1219 = vunpack.c.l.b16 %v253
    %v1220 = vunpack.c.h.b16 %v253
    %v1221 = vunpack.c.l.b16 %v254
    %v1222 = vunpack.c.h.b16 %v254
    %v1223 = vunpack.c.l.b16 %v255
    %v1224 = vunpack.c.h.b16 %v255
    %v1225 = vunpack.c.l.b16 %v256
    %v1226 = vunpack.c.h.b16 %v256
    %v1227 = vunpack.c.l.b16 %v257
    %v1228 = vunpack.c.h.b16 %v257
    %v1229 = vunpack.c.l.b16 %v258
    %v1230 = vunpack.c.h.b16 %v258
    %v1231 = vunpack.c.l.b16 %v259
    %v1232 = vunpack.c.h.b16 %v259
    %v1233 = vunpack.c.l.b16 %v260
    %v1234 = vunpack.c.h.b16 %v260
    %v1235 = vunpack.c.l.b16 %v261
    %v1236 = vunpack.c.h.b16 %v261
    %v1237 = vunpack.c.l.b16 %v262
    %v1238 = vunpack.c.h.b16 %v262
    %v1239 = vunpack.c.l.b16 %v263
    %v1240 = vunpack.c.h.b16 %v263
    %v1241 = vunpack.c.l.b16 %v264
    %v1242 = vunpack.c.h.b16 %v264
    %v1243 = vunpack.c.l.b16 %v265
    %v1244 = vunpack.c.h.b16 %v265
    %v1245 = vunpack.c.l.b16 %v266
    %v1246 = vunpack.c.h.b16 %v266
    %v1247 = vunpack.c.l.b16 %v267
    %v1248 = vunpack.c.h.b16 %v267
    %v1249 = vunpack.c.l.b16 %v268
    %v1250 = vunpack.c.h.b16 %v268
    %v1251 = vunpack.c.l.b16 %v269
    %v1252 = vunpack.c.h.b16 %v269
    %v1253 = vunpack.c.l.b16 %v270
    %v1254 = vunpack.c.h.b16 %v270
    %v1255 = vunpack.c.l.b16 %v271
    %v1256 = vunpack.c.h.b16 %v271
    %v1257 = vunpack.c.l.b16 %v272
    %v1258 = vunpack.c.h.b16 %v272
    %v1259 = vunpack.c.l.b16 %v273
    %v1260 = vunpack.c.h.b16 %v273
    %v1261 = vunpack.c.l.b16 %v274
    %v1262 = vunpack.c.h.b16 %v274
    %v1263 = vunpack.c.l.b16 %v275
    %v1264 = vunpack.c.h.b16 %v275
    %v1265 = vunpack.c.l.b16 %v276
    %v1266 = vunpack.c.h.b16 %v276
    %v1267 = vunpack.c.l.b16 %v277
    %v1268 = vunpack.c.h.b16 %v277
    %v1269 = vunpack.c.l.b16 %v278
    %v1270 = vunpack.c.h.b16 %v278
    %v1271 = vunpack.c.l.b16 %v279
    %v1272 = vunpack.c.h.b16 %v279
    %v1273 = vunpack.c.l.b16 %v280
    %v1274 = vunpack.c.h.b16 %v280
    %v1275 = vunpack.c.l.b16 %v281
    %v1276 = vunpack.c.h.b16 %v281
    %v1277 = vunpack.c.l.b16 %v282
    %v1278 = vunpack.c.h.b16 %v282
    %v1279 = vunpack.c.l.b16 %v283
    %v1280 = vunpack.c.h.b16 %v283
    %v1281 = vunpack.c.l.b16 %v284
    %v1282 = vunpack.c.h.b16 %v284
    %v1283 = vunpack.c.l.b16 %v285
    %v1284 = vunpack.c.h.b16 %v285
    %v1285 = vunpack.c.l.b16 %v286
    %v1286 = vunpack.c.h.b16 %v286
    %v1287 = vunpack.c.l.b16 %v287
    %v1288 = vunpack.c.h.b16 %v287
    %v1289 = vunpack.c.l.b16 %v288
    %v1290 = vunpack.c.h.b16 %v288
    %v1291 = vunpack.c.l.b16 %v289
    %v1292 = vunpack.c.h.b16 %v289
    %v1293 = vunpack.c.l.b16 %v290
    %v1294 = vunpack.c.h.b16 %v290
    %v1295 = vunpack.c.l.b16 %v291
    %v1296 = vunpack.c.h.b16 %v291
    %v1297 = vunpack.c.l.b16 %v292
    %v1298 = vunpack.c.h.b16 %v292
    %v1299 = vunpack.c.l.b16 %v293
    %v1300 = vunpack.c.h.b16 %v293
    %v1301 = vunpack.c.l.b16 %v294
    %v1302 = vunpack.c.h.b16 %v294
    %v1303 = vunpack.c.l.b16 %v295
    %v1304 = vunpack.c.h.b16 %v295
    %v1305 = vunpack.c.l.b16 %v296
    %v1306 = vunpack.c.h.b16 %v296
    %v1307 = vunpack.c.l.b16 %v297
    %v1308 = vunpack.c.h.b16 %v297
    %v1309 = vunpack.c.l.b16 %v298
    %v1310 = vunpack.c.h.b16 %v298
    %v1311 = vunpack.c.l.b16 %v299
    %v1312 = vunpack.c.h.b16 %v299
    %v1313 = vunpack.c.l.b16 %v300
    %v1314 = vunpack.c.h.b16 %v300
    %v1315 = vunpack.c.l.b16 %v301
    %v1316 = vunpack.c.h.b16 %v301
    %v1317 = vunpack.c.l.b16 %v302
    %v1318 = vunpack.c.h.b16 %v302
    %v1319 = vunpack.c.l.b16 %v303
    %v1320 = vunpack.c.h.b16 %v303
    %v1321 = vunpack.c.l.b16 %v304
    %v1322 = vunpack.c.h.b16 %v304
    %v1323 = vunpack.c.l.b16 %v305
    %v1324 = vunpack.c.h.b16 %v305
    %v1325 = vunpack.c.l.b16 %v306
    %v1326 = vunpack.c.h.b16 %v306
    %v1327 = vunpack.c.l.b16 %v307
    %v1328 = vunpack.c.h.b16 %v307
    %v1329 = vunpack.c.l.b16 %v308
    %v1330 = vunpack.c.h.b16 %v308
    %v1331 = vunpack.c.l.b16 %v309
    %v1332 = vunpack.c.h.b16 %v309
    %v1333 = vunpack.c.l.b16 %v310
    %v1334 = vunpack.c.h.b16 %v310
    %v1335 = vunpack.c.l.b16 %v311
    %v1336 = vunpack.c.h.b16 %v311
    %v1337 = vunpack.c.l.b16 %v312
    %v1338 = vunpack.c.h.b16 %v312
    %v1339 = vunpack.c.l.b16 %v313
    %v1340 = vunpack.c.h.b16 %v313
    %v1341 = vunpack.c.l.b16 %v314
    %v1342 = vunpack.c.h.b16 %v314
    %v1343 = vunpack.c.l.b16 %v315
    %v1344 = vunpack.c.h.b16 %v315
    %v1345 = vunpack.c.l.b16 %v316
    %v1346 = vunpack.c.h.b16 %v316
    %v1347 = vunpack.c.l.b16 %v317
    %v1348 = vunpack.c.h.b16 %v317
    %v1349 = vunpack.c.l.b16 %v318
    %v1350 = vunpack.c.h.b16 %v318
    %v1351 = vunpack.c.l.b16 %v319
    %v1352 = vunpack.c.h.b16 %v319
    %v1353 = vunpack.c.l.b16 %v320
    %v1354 = vunpack.c.h.b16 %v320
    %v1355 = vunpack.c.l.b16 %v321
    %v1356 = vunpack.c.h.b16 %v321
    %v1357 = vunpack.c.l.b16 %v322
    %v1358 = vunpack.c.h.b16 %v322
    %v1359 = vunpack.c.l.b16 %v323
    %v1360 = vunpack.c.h.b16 %v323
    %v1361 = vunpack.c.l.b16 %v324
    %v1362 = vunpack.c.h.b16 %v324
    %v1363 = vunpack.c.l.b16 %v325
    %v1364 = vunpack.c.h.b16 %v325
    %v1365 = vunpack.c.l.b16 %v326
    %v1366 = vunpack.c.h.b16 %v326
    %v1367 = vunpack.c.l.b16 %v327
    %v1368 = vunpack.c.h.b16 %v327
    %v1369 = vunpack.c.l.b16 %v328
    %v1370 = vunpack.c.h.b16 %v328
    %v1371 = vunpack.c.l.b16 %v329
    %v1372 = vunpack.c.h.b16 %v329
    %v1373 = vunpack.c.l.b16 %v330
    %v1374 = vunpack.c.h.b16 %v330
    %v1375 = vunpack.c.l.b16 %v331
    %v1376 = vunpack.c.h.b16 %v331
    %v1377 = vunpack.c.l.b16 %v332
    %v1378 = vunpack.c.h.b16 %v332
    %v1379 = vunpack.c.l.b16 %v333
    %v1380 = vunpack.c.h.b16 %v333
    %v1381 = vunpack.c.l.b16 %v334
    %v1382 = vunpack.c.h.b16 %v334
    %v1383 = vunpack.c.l.b16 %v335
    %v1384 = vunpack.c.h.b16 %v335
    %v1385 = vunpack.c.l.b16 %v336
    %v1386 = vunpack.c.h.b16 %v336
    %v1387 = vunpack.c.l.b16 %v337
    %v1388 = vunpack.c.h.b16 %v337
    %v1389 = vunpack.c.l.b16 %v338
    %v1390 = vunpack.c.h.b16 %v338
    %v1391 = vunpack.c.l.b16 %v339
    %v1392 = vunpack.c.h.b16 %v339
    %v1393 = vunpack.c.l.b16 %v340
    %v1394 = vunpack.c.h.b16 %v340
    %v1395 = vunpack.c.l.b16 %v341
    %v1396 = vunpack.c.h.b16 %v341
    %v1397 = vunpack.c.l.b16 %v342
    %v1398 = vunpack.c.h.b16 %v342
    %v1399 = vunpack.c.l.b16 %v343
    %v1400 = vunpack.c.h.b16 %v343
    %v1401 = vunpack.c.l.b16 %v344
    %v1402 = vunpack.c.h.b16 %v344
    %v1403 = vunpack.c.l.b16 %v345
    %v1404 = vunpack.c.h.b16 %v345
    %v1405 = vunpack.c.l.b16 %v346
    %v1406 = vunpack.c.h.b16 %v346
    %v1407 = vunpack.c.l.b16 %v347
    %v1408 = vunpack.c.h.b16 %v347
    %v1409 = vunpack.c.l.b16 %v348
    %v1410 = vunpack.c.h.b16 %v348
    %v1411 = vunpack.c.l.b16 %v349
    %v1412 = vunpack.c.h.b16 %v349
    %v1413 = vunpack.c.l.b16 %v350
    %v1414 = vunpack.c.h.b16 %v350
    %v1415 = vunpack.c.l.b16 %v351
    %v1416 = vunpack.c.h.b16 %v351
    %v1417 = vunpack.c.l.b16 %v352
    %v1418 = vunpack.c.h.b16 %v352
    %v1419 = vunpack.c.l.b16 %v353
    %v1420 = vunpack.c.h.b16 %v353
    %v1421 = vunpack.c.l.b16 %v354
    %v1422 = vunpack.c.h.b16 %v354
    %v1423 = vunpack.c.l.b16 %v355
    %v1424 = vunpack.c.h.b16 %v355
    %v1425 = vunpack.c.l.b16 %v356
    %v1426 = vunpack.c.h.b16 %v356
    %v1427 = vunpack.c.l.b16 %v357
    %v1428 = vunpack.c.h.b16 %v357
    %v1429 = vunpack.c.l.b16 %v358
    %v1430 = vunpack.c.h.b16 %v358
    %v1431 = vunpack.c.l.b16 %v359
    %v1432 = vunpack.c.h.b16 %v359
    %v1433 = vunpack.c.l.b16 %v360
    %v1434 = vunpack.c.h.b16 %v360
    %v1435 = vunpack.c.l.b16 %v361
    %v1436 = vunpack.c.h.b16 %v361
    %v1437 = vunpack.c.l.b16 %v362
    %v1438 = vunpack.c.h.b16 %v362
    %v1439 = vunpack.c.l.b16 %v363
    %v1440 = vunpack.c.h.b16 %v363
    %v1441 = vunpack.c.l.b16 %v364
    %v1442 = vunpack.c.h.b16 %v364
    %v1443 = vunpack.c.l.b16 %v365
    %v1444 = vunpack.c.h.b16 %v365
    %v1445 = vunpack.c.l.b16 %v366
    %v1446 = vunpack.c.h.b16 %v366
    %v1447 = vunpack.c.l.b16 %v367
    %v1448 = vunpack.c.h.b16 %v367
    %v1449 = vunpack.c.l.b16 %v368
    %v1450 = vunpack.c.h.b16 %v368
    %v1451 = vunpack.c.l.b16 %v369
    %v1452 = vunpack.c.h.b16 %v369
    %v1453 = vunpack.c.l.b16 %v370
    %v1454 = vunpack.c.h.b16 %v370
    %v1455 = vunpack.c.l.b16 %v371
    %v1456 = vunpack.c.h.b16 %v371
    %v1457 = vunpack.c.l.b16 %v372
    %v1458 = vunpack.c.h.b16 %v372
    %v1459 = vunpack.c.l.b16 %v373
    %v1460 = vunpack.c.h.b16 %v373
    %v1461 = vunpack.c.l.b16 %v374
    %v1462 = vunpack.c.h.b16 %v374
    %v1463 = vunpack.c.l.b16 %v375
    %v1464 = vunpack.c.h.b16 %v375
    %v1465 = vunpack.c.l.b16 %v376
    %v1466 = vunpack.c.h.b16 %v376
    %v1467 = vunpack.c.l.b16 %v377
    %v1468 = vunpack.c.h.b16 %v377
    %v1469 = vunpack.c.l.b16 %v378
    %v1470 = vunpack.c.h.b16 %v378
    %v1471 = vunpack.c.l.b16 %v379
    %v1472 = vunpack.c.h.b16 %v379
    %v1473 = vunpack.c.l.b16 %v380
    %v1474 = vunpack.c.h.b16 %v380
    %v1475 = vunpack.c.l.b16 %v381
    %v1476 = vunpack.c.h.b16 %v381
    %v1477 = vunpack.c.l.b16 %v382
    %v1478 = vunpack.c.h.b16 %v382
    %v1479 = vunpack.c.l.b16 %v383
    %v1480 = vunpack.c.h.b16 %v383
    %v1481 = vunpack.c.l.b16 %v384
    %v1482 = vunpack.c.h.b16 %v384
    %v1483 = vunpack.c.l.b16 %v385
    %v1484 = vunpack.c.h.b16 %v385
    %v1485 = vunpack.c.l.b16 %v386
    %v1486 = vunpack.c.h.b16 %v386
    %v1487 = vunpack.c.l.b16 %v387
    %v1488 = vunpack.c.h.b16 %v387
    %v1489 = vunpack.c.l.b16 %v388
    %v1490 = vunpack.c.h.b16 %v388
    %v1491 = vunpack.c.l.b16 %v389
    %v1492 = vunpack.c.h.b16 %v389
    %v1493 = vunpack.c.l.b16 %v390
    %v1494 = vunpack.c.h.b16 %v390
    %v1495 = vunpack.c.l.b16 %v391
    %v1496 = vunpack.c.h.b16 %v391
    %v1497 = vunpack.c.l.b16 %v392
    %v1498 = vunpack.c.h.b16 %v392
    %v1499 = vunpack.c.l.b16 %v393
    %v1500 = vunpack.c.h.b16 %v393
    %v1501 = vunpack.c.l.b16 %v394
    %v1502 = vunpack.c.h.b16 %v394
    %v1503 = vunpack.c.l.b16 %v395
    %v1504 = vunpack.c.h.b16 %v395
    %v1505 = vunpack.c.l.b16 %v396
    %v1506 = vunpack.c.h.b16 %v396
    %v1507 = vunpack.c.l.b16 %v397
    %v1508 = vunpack.c.h.b16 %v397
    %v1509 = vunpack.c.l.b16 %v398
    %v1510 = vunpack.c.h.b16 %v398
    %v1511 = vunpack.c.l.b16 %v399
    %v1512 = vunpack.c.h.b16 %v399
    %v1513 = vunpack.c.l.b16 %v400
    %v1514 = vunpack.c.h.b16 %v400
    %v1515 = vunpack.c.l.b16 %v401
    %v1516 = vunpack.c.h.b16 %v401
    %v1517 = vunpack.c.l.b16 %v402
    %v1518 = vunpack.c.h.b16 %v402
    %v1519 = vunpack.c.l.b16 %v403
    %v1520 = vunpack.c.h.b16 %v403
    %v1521 = vunpack.c.l.b16 %v404
    %v1522 = vunpack.c.h.b16 %v404
    %v1523 = vunpack.c.l.b16 %v405
    %v1524 = vunpack.c.h.b16 %v405
    %v1525 = vunpack.c.l.b16 %v406
    %v1526 = vunpack.c.h.b16 %v406
    %v1527 = vunpack.c.l.b16 %v407
    %v1528 = vunpack.c.h.b16 %v407
    %v1529 = vunpack.c.l.b16 %v408
    %v1530 = vunpack.c.h.b16 %v408
    %v1531 = vunpack.c.l.b16 %v409
    %v1532 = vunpack.c.h.b16 %v409
    %v1533 = vunpack.c.l.b16 %v410
    %v1534 = vunpack.c.h.b16 %v410
    %v1535 = vunpack.c.l.b16 %v411
    %v1536 = vunpack.c.h.b16 %v411
    %v1537 = vunpack.c.l.b16 %v412
    %v1538 = vunpack.c.h.b16 %v412
    %v1539 = vunpack.c.l.b16 %v413
    %v1540 = vunpack.c.h.b16 %v413
    %v1541 = vunpack.c.l.b16 %v414
    %v1542 = vunpack.c.h.b16 %v414
    %v1543 = vunpack.c.l.b16 %v415
    %v1544 = vunpack.c.h.b16 %v415
    %v1545 = vunpack.c.l.b16 %v416
    %v1546 = vunpack.c.h.b16 %v416
    %v1547 = vunpack.c.l.b16 %v417
    %v1548 = vunpack.c.h.b16 %v417
    %v1549 = vunpack.c.l.b16 %v418
    %v1550 = vunpack.c.h.b16 %v418
    %v1551 = vunpack.c.l.b16 %v419
    %v1552 = vunpack.c.h.b16 %v419
    %v1553 = vunpack.c.l.b16 %v420
    %v1554 = vunpack.c.h.b16 %v420
    %v1555 = vunpack.c.l.b16 %v421
    %v1556 = vunpack.c.h.b16 %v421
    %v1557 = vunpack.c.l.b16 %v422
    %v1558 = vunpack.c.h.b16 %v422
    %v1559 = vunpack.c.l.b16 %v423
    %v1560 = vunpack.c.h.b16 %v423
    %v1561 = vunpack.c.l.b16 %v424
    %v1562 = vunpack.c.h.b16 %v424
    %v1563 = vunpack.c.l.b16 %v425
    %v1564 = vunpack.c.h.b16 %v425
    %v1565 = vunpack.c.l.b16 %v426
    %v1566 = vunpack.c.h.b16 %v426
    %v1567 = vunpack.c.l.b16 %v427
    %v1568 = vunpack.c.h.b16 %v427
    %v1569 = vunpack.c.l.b16 %v428
    %v1570 = vunpack.c.h.b16 %v428
    %v1571 = vunpack.c.l.b16 %v429
    %v1572 = vunpack.c.h.b16 %v429
    %v1573 = vunpack.c.l.b16 %v430
    %v1574 = vunpack.c.h.b16 %v430
    %v1575 = vunpack.c.l.b16 %v431
    %v1576 = vunpack.c.h.b16 %v431
    %v1577 = vunpack.c.l.b16 %v432
    %v1578 = vunpack.c.h.b16 %v432
    %v1579 = vunpack.c.l.b16 %v433
    %v1580 = vunpack.c.h.b16 %v433
    %v1581 = vunpack.c.l.b16 %v434
    %v1582 = vunpack.c.h.b16 %v434
    %v1583 = vunpack.c.l.b16 %v435
    %v1584 = vunpack.c.h.b16 %v435
    %v1585 = vunpack.c.l.b16 %v436
    %v1586 = vunpack.c.h.b16 %v436
    %v1587 = vunpack.c.l.b16 %v437
    %v1588 = vunpack.c.h.b16 %v437
    %v1589 = vunpack.c.l.b16 %v438
    %v1590 = vunpack.c.h.b16 %v438
    %v1591 = vunpack.c.l.b16 %v439
    %v1592 = vunpack.c.h.b16 %v439
    %v1593 = vunpack.c.l.b16 %v440
    %v1594 = vunpack.c.h.b16 %v440
    %v1595 = vunpack.c.l.b16 %v441
    %v1596 = vunpack.c.h.b16 %v441
    %v1597 = vunpack.c.l.b16 %v442
    %v1598 = vunpack.c.h.b16 %v442
    %v1599 = vunpack.c.l.b16 %v443
    %v1600 = vunpack.c.h.b16 %v443
    %v1601 = vunpack.c.l.b16 %v444
    %v1602 = vunpack.c.h.b16 %v444
    %v1603 = vunpack.c.l.b16 %v445
    %v1604 = vunpack.c.h.b16 %v445
    %v1605 = vunpack.c.l.b16 %v446
    %v1606 = vunpack.c.h.b16 %v446
    %v1607 = vunpack.c.l.b16 %v447
    %v1608 = vunpack.c.h.b16 %v447
    %v1609 = vunpack.c.l.b16 %v448
    %v1610 = vunpack.c.h.b16 %v448
    %v1611 = vunpack.c.l.b16 %v449
    %v1612 = vunpack.c.h.b16 %v449
    %v1613 = vunpack.c.l.b16 %v450
    %v1614 = vunpack.c.h.b16 %v450
    %v1615 = vunpack.c.l.b16 %v451
    %v1616 = vunpack.c.h.b16 %v451
    %v1617 = vunpack.c.l.b16 %v452
    %v1618 = vunpack.c.h.b16 %v452
    %v1619 = vunpack.c.l.b16 %v453
    %v1620 = vunpack.c.h.b16 %v453
    %v1621 = vunpack.c.l.b16 %v454
    %v1622 = vunpack.c.h.b16 %v454
    %v1623 = vunpack.c.l.b16 %v455
    %v1624 = vunpack.c.h.b16 %v455
    %v1625 = vunpack.c.l.b16 %v456
    %v1626 = vunpack.c.h.b16 %v456
    %v1627 = vunpack.c.l.b16 %v457
    %v1628 = vunpack.c.h.b16 %v457
    %v1629 = vunpack.c.l.b16 %v458
    %v1630 = vunpack.c.h.b16 %v458
    %v1631 = vunpack.c.l.b16 %v459
    %v1632 = vunpack.c.h.b16 %v459
    %v1633 = vunpack.c.l.b16 %v460
    %v1634 = vunpack.c.h.b16 %v460
    %v1635 = vunpack.c.l.b16 %v461
    %v1636 = vunpack.c.h.b16 %v461
    %v1637 = vunpack.c.l.b16 %v462
    %v1638 = vunpack.c.h.b16 %v462
    %v1639 = vunpack.c.l.b16 %v463
    %v1640 = vunpack.c.h.b16 %v463
    %v1641 = vunpack.c.l.b16 %v464
    %v1642 = vunpack.c.h.b16 %v464
    %v1643 = vunpack.c.l.b16 %v465
    %v1644 = vunpack.c.h.b16 %v465
    %v1645 = vunpack.c.l.b16 %v466
    %v1646 = vunpack.c.h.b16 %v466
    %v1647 = vunpack.c.l.b16 %v467
    %v1648 = vunpack.c.h.b16 %v467
    %v1649 = vunpack.c.l.b16 %v468
    %v1650 = vunpack.c.h.b16 %v468
    %v1651 = vunpack.c.l.b16 %v469
    %v1652 = vunpack.c.h.b16 %v469
    %v1653 = vunpack.c.l.b16 %v470
    %v1654 = vunpack.c.h.b16 %v470
    %v1655 = vunpack.c.l.b16 %v471
    %v1656 = vunpack.c.h.b16 %v471
    %v1657 = vunpack.c.l.b16 %v472
    %v1658 = vunpack.c.h.b16 %v472
    %v1659 = vunpack.c.l.b16 %v473
    %v1660 = vunpack.c.h.b16 %v473
    %v1661 = vunpack.c.l.b16 %v474
    %v1662 = vunpack.c.h.b16 %v474
    %v1663 = vunpack.c.l.b16 %v475
    %v1664 = vunpack.c.h.b16 %v475
    %v1665 = vunpack.c.l.b16 %v476
    %v1666 = vunpack.c.h.b16 %v476
    %v1667 = vunpack.c.l.b16 %v477
    %v1668 = vunpack.c.h.b16 %v477
    %v1669 = vunpack.c.l.b16 %v478
    %v1670 = vunpack.c.h.b16 %v478
    %v1671 = vunpack.c.l.b16 %v479
    %v1672 = vunpack.c.h.b16 %v479
    %v1673 = vunpack.c.l.b16 %v480
    %v1674 = vunpack.c.h.b16 %v480
    %v1675 = vunpack.c.l.b16 %v481
    %v1676 = vunpack.c.h.b16 %v481
    %v1677 = vunpack.c.l.b16 %v482
    %v1678 = vunpack.c.h.b16 %v482
    %v1679 = vunpack.c.l.b16 %v483
    %v1680 = vunpack.c.h.b16 %v483
    %v1681 = vunpack.c.l.b16 %v484
    %v1682 = vunpack.c.h.b16 %v484
    %v1683 = vunpack.c.l.b16 %v485
    %v1684 = vunpack.c.h.b16 %v485
    %v1685 = vunpack.c.l.b16 %v486
    %v1686 = vunpack.c.h.b16 %v486
    %v1687 = vunpack.c.l.b16 %v487
    %v1688 = vunpack.c.h.b16 %v487
    %v1689 = vunpack.c.l.b16 %v488
    %v1690 = vunpack.c.h.b16 %v488
    %v1691 = vunpack.c.l.b16 %v489
    %v1692 = vunpack.c.h.b16 %v489
    %v1693 = vunpack.c.l.b16 %v490
    %v1694 = vunpack.c.h.b16 %v490
    %v1695 = vunpack.c.l.b16 %v491
    %v1696 = vunpack.c.h.b16 %v491
    %v1697 = vunpack.c.l.b16 %v492
    %v1698 = vunpack.c.h.b16 %v492
    %v1699 = vunpack.c.l.b16 %v493
    %v1700 = vunpack.c.h.b16 %v493
    %v1701 = vunpack.c.l.b16 %v494
    %v1702 = vunpack.c.h.b16 %v494
    %v1703 = vunpack.c.l.b16 %v495
    %v1704 = vunpack.c.h.b16 %v495
    %v1705 = vunpack.c.l.b16 %v496
    %v1706 = vunpack.c.h.b16 %v496
    %v1707 = vunpack.c.l.b16 %v497
    %v1708 = vunpack.c.h.b16 %v497
    %v1709 = vunpack.c.l.b16 %v498
    %v1710 = vunpack.c.h.b16 %v498
    %v1711 = vunpack.c.l.b16 %v499
    %v1712 = vunpack.c.h.b16 %v499
    %v1713 = vunpack.c.l.b16 %v500
    %v1714 = vunpack.c.h.b16 %v500
    %v1715 = vunpack.c.l.b16 %v501
    %v1716 = vunpack.c.h.b16 %v501
    %v1717 = vunpack.c.l.b16 %v502
    %v1718 = vunpack.c.h.b16 %v502
    %v1719 = vunpack.c.l.b16 %v503
    %v1720 = vunpack.c.h.b16 %v503
    %v1721 = vunpack.c.l.b16 %v504
    %v1722 = vunpack.c.h.b16 %v504
    %v1723 = vunpack.c.l.b16 %v505
    %v1724 = vunpack.c.h.b16 %v505
    %v1725 = vunpack.c.l.b16 %v506
    %v1726 = vunpack.c.h.b16 %v506
    %v1727 = vunpack.c.l.b16 %v507
    %v1728 = vunpack.c.h.b16 %v507
    %v1729 = vunpack.c.l.b16 %v508
    %v1730 = vunpack.c.h.b16 %v508
    %v1731 = vunpack.c.l.b16 %v509
    %v1732 = vunpack.c.h.b16 %v509
    %v1733 = vunpack.c.l.b16 %v510
    %v1734 = vunpack.c.h.b16 %v510
    %v1735 = vunpack.c.l.b16 %v511
    %v1736 = vunpack.c.h.b16 %v511
    %v1737 = vunpack.c.l.b16 %v512
    %v1738 = vunpack.c.h.b16 %v512
    %v1739 = vunpack.c.l.b16 %v513
    %v1740 = vunpack.c.h.b16 %v513
    %v1741 = vunpack.c.l.b16 %v514
    %v1742 = vunpack.c.h.b16 %v514
    %v1743 = vunpack.c.l.b16 %v515
    %v1744 = vunpack.c.h.b16 %v515
    %v1745 = vunpack.c.l.b16 %v516
    %v1746 = vunpack.c.h.b16 %v516
    %v1747 = vunpack.c.l.b16 %v517
    %v1748 = vunpack.c.h.b16 %v517
    %v1749 = vunpack.c.l.b16 %v518
    %v1750 = vunpack.c.h.b16 %v518
    %v1751 = vunpack.c.l.b16 %v519
    %v1752 = vunpack.c.h.b16 %v519
    %v1753 = vunpack.c.l.b16 %v520
    %v1754 = vunpack.c.h.b16 %v520
    %v1755 = vunpack.c.l.b16 %v521
    %v1756 = vunpack.c.h.b16 %v521
    %v1757 = vunpack.c.l.b16 %v522
    %v1758 = vunpack.c.h.b16 %v522
    %v1759 = vunpack.c.l.b16 %v523
    %v1760 = vunpack.c.h.b16 %v523
    %v1761 = vunpack.c.l.b16 %v524
    %v1762 = vunpack.c.h.b16 %v524
    %v1763 = vunpack.c.l.b16 %v525
    %v1764 = vunpack.c.h.b16 %v525
    %v1765 = vunpack.c.l.b16 %v526
    %v1766 = vunpack.c.h.b16 %v526
    %v1767 = vunpack.c.l.b16 %v527
    %v1768 = vunpack.c.h.b16 %v527
    %v1769 = vunpack.c.l.b16 %v528
    %v1770 = vunpack.c.h.b16 %v528
    %v1771 = vpack.c.b16 %v995, %v987
    %v1772 = vpack.c.b16 %v996, %v988
    %v1773 = vpack.c.b16 %v997, %v989
    %v1774 = vpack.c.b16 %v998, %v990
    %v1775 = vpack.c.b16 %v999, %v991
    %v1776 = vpack.c.b16 %v1000, %v992
    %v1777 = vpack.c.b16 %v1001, %v993
    %v1778 = vpack.c.b16 %v1002, %v994
    %v1779 = vpack.c.b16 %v1011, %v1003
    %v1780 = vpack.c.b16 %v1012, %v1004
    %v1781 = vpack.c.b16 %v1013, %v1005
    %v1782 = vpack.c.b16 %v1014, %v1006
    %v1783 = vpack.c.b16 %v1015, %v1007
    %v1784 = vpack.c.b16 %v1016, %v1008
    %v1785 = vpack.c.b16 %v1017, %v1009
    %v1786 = vpack.c.b16 %v1018, %v1010
    %v1787 = vpack.c.b16 %v1027, %v1019
    %v1788 = vpack.c.b16 %v1028, %v1020
    %v1789 = vpack.c.b16 %v1029, %v1021
    %v1790 = vpack.c.b16 %v1030, %v1022
    %v1791 = vpack.c.b16 %v1031, %v1023
    %v1792 = vpack.c.b16 %v1032, %v1024
    %v1793 = vpack.c.b16 %v1033, %v1025
    %v1794 = vpack.c.b16 %v1034, %v1026
    %v1795 = vpack.c.b16 %v1043, %v1035
    %v1796 = vpack.c.b16 %v1044, %v1036
    %v1797 = vpack.c.b16 %v1045, %v1037
    %v1798 = vpack.c.b16 %v1046, %v1038
    %v1799 = vpack.c.b16 %v1047, %v1039
    %v1800 = vpack.c.b16 %v1048, %v1040
    %v1801 = vpack.c.b16 %v1049, %v1041
    %v1802 = vpack.c.b16 %v1050, %v1042
    %v1803 = vpack.c.b16 %v1059, %v1051
    %v1804 = vpack.c.b16 %v1060, %v1052
    %v1805 = vpack.c.b16 %v1061, %v1053
    %v1806 = vpack.c.b16 %v1062, %v1054
    %v1807 = vpack.c.b16 %v1063, %v1055
    %v1808 = vpack.c.b16 %v1064, %v1056
    %v1809 = vpack.c.b16 %v1065, %v1057
    %v1810 = vpack.c.b16 %v1066, %v1058
    %v1811 = vpack.c.b16 %v1075, %v1067
    %v1812 = vpack.c.b16 %v1076, %v1068
    %v1813 = vpack.c.b16 %v1077, %v1069
    %v1814 = vpack.c.b16 %v1078, %v1070
    %v1815 = vpack.c.b16 %v1079, %v1071
    %v1816 = vpack.c.b16 %v1080, %v1072
    %v1817 = vpack.c.b16 %v1081, %v1073
    %v1818 = vpack.c.b16 %v1082, %v1074
    %v1819 = vpack.c.b16 %v1091, %v1083
    %v1820 = vpack.c.b16 %v1092, %v1084
    %v1821 = vpack.c.b16 %v1093, %v1085
    %v1822 = vpack.c.b16 %v1094, %v1086
    %v1823 = vpack.c.b16 %v1095, %v1087
    %v1824 = vpack.c.b16 %v1096, %v1088
    %v1825 = vpack.c.b16 %v1097, %v1089
    %v1826 = vpack.c.b16 %v1098, %v1090
    %v1827 = vpack.c.b16 %v1107, %v1099
    %v1828 = vpack.c.b16 %v1108, %v1100
    %v1829 = vpack.c.b16 %v1109, %v1101
    %v1830 = vpack.c.b16 %v1110, %v1102
    %v1831 = vpack.c.b16 %v1111, %v1103
    %v1832 = vpack.c.b16 %v1112, %v1104
    %v1833 = vpack.c.b16 %v1113, %v1105
    %v1834 = vpack.c.b16 %v1114, %v1106
    %v1835 = vpack.c.b16 %v1123, %v1115
    %v1836 = vpack.c.b16 %v1124, %v1116
    %v1837 = vpack.c.b16 %v1125, %v1117
    %v1838 = vpack.c.b16 %v1126, %v1118
    %v1839 = vpack.c.b16 %v1127, %v1119
    %v1840 = vpack.c.b16 %v1128, %v1120
    %v1841 = vpack.c.b16 %v1129, %v1121
    %v1842 = vpack.c.b16 %v1130, %v1122
    %v1843 = vpack.c.b16 %v1139, %v1131
    %v1844 = vpack.c.b16 %v1140, %v1132
    %v1845 = vpack.c.b16 %v1141, %v1133
    %v1846 = vpack.c.b16 %v1142, %v1134
    %v1847 = vpack.c.b16 %v1143, %v1135
    %v1848 = vpack.c.b16 %v1144, %v1136
    %v1849 = vpack.c.b16 %v1145, %v1137
    %v1850 = vpack.c.b16 %v1146, %v1138
    %v1851 = vpack.c.b16 %v1155, %v1147
    %v1852 = vpack.c.b16 %v1156, %v1148
    %v1853 = vpack.c.b16 %v1157, %v1149
    %v1854 = vpack.c.b16 %v1158, %v1150
    %v1855 = vpack.c.b16 %v1159, %v1151
    %v1856 = vpack.c.b16 %v1160, %v1152
    %v1857 = vpack.c.b16 %v1161, %v1153
    %v1858 = vpack.c.b16 %v1162, %v1154
    %v1859 = vpack.c.b16 %v1171, %v1163
    %v1860 = vpack.c.b16 %v1172, %v1164
    %v1861 = vpack.c.b16 %v1173, %v1165
    %v1862 = vpack.c.b16 %v1174, %v1166
    %v1863 = vpack.c.b16 %v1175, %v1167
    %v1864 = vpack.c.b16 %v1176, %v1168
    %v1865 = vpack.c.b16 %v1177, %v1169
    %v1866 = vpack.c.b16 %v1178, %v1170
    %v1867 = vpack.c.b16 %v1187, %v1179
    %v1868 = vpack.c.b16 %v1188, %v1180
    %v1869 = vpack.c.b16 %v1189, %v1181
    %v1870 = vpack.c.b16 %v1190, %v1182
    %v1871 = vpack.c.b16 %v1191, %v1183
    %v1872 = vpack.c.b16 %v1192, %v1184
    %v1873 = vpack.c.b16 %v1193, %v1185
    %v1874 = vpack.c.b16 %v1194, %v1186
    %v1875 = vpack.c.b16 %v1203, %v1195
    %v1876 = vpack.c.b16 %v1204, %v1196
    %v1877 = vpack.c.b16 %v1205, %v1197
    %v1878 = vpack.c.b16 %v1206, %v1198
    %v1879 = vpack.c.b16 %v1207, %v1199
    %v1880 = vpack.c.b16 %v1208, %v1200
    %v1881 = vpack.c.b16 %v1209, %v1201
    %v1882 = vpack.c.b16 %v1210, %v1202
    %v1883 = vpack.c.b16 %v1219, %v1211
    %v1884 = vpack.c.b16 %v1220, %v1212
    %v1885 = vpack.c.b16 %v1221, %v1213
    %v1886 = vpack.c.b16 %v1222, %v1214
    %v1887 = vpack.c.b16 %v1223, %v1215
    %v1888 = vpack.c.b16 %v1224, %v1216
    %v1889 = vpack.c.b16 %v1225, %v1217
    %v1890 = vpack.c.b16 %v1226, %v1218
    %v1891 = vpack.c.b16 %v1235, %v1227
    %v1892 = vpack.c.b16 %v1236, %v1228
    %v1893 = vpack.c.b16 %v1237, %v1229
    %v1894 = vpack.c.b16 %v1238, %v1230
    %v1895 = vpack.c.b16 %v1239, %v1231
    %v1896 = vpack.c.b16 %v1240, %v1232
    %v1897 = vpack.c.b16 %v1241, %v1233
    %v1898 = vpack.c.b16 %v1242, %v1234
    %v1899 = vpack.c.b16 %v1251, %v1243
    %v1900 = vpack.c.b16 %v1252, %v1244
    %v1901 = vpack.c.b16 %v1253, %v1245
    %v1902 = vpack.c.b16 %v1254, %v1246
    %v1903 = vpack.c.b16 %v1255, %v1247
    %v1904 = vpack.c.b16 %v1256, %v1248
    %v1905 = vpack.c.b16 %v1257, %v1249
    %v1906 = vpack.c.b16 %v1258, %v1250
    %v1907 = vpack.c.b16 %v1267, %v1259
    %v1908 = vpack.c.b16 %v1268, %v1260
    %v1909 = vpack.c.b16 %v1269, %v1261
    %v1910 = vpack.c.b16 %v1270, %v1262
    %v1911 = vpack.c.b16 %v1271, %v1263
    %v1912 = vpack.c.b16 %v1272, %v1264
    %v1913 = vpack.c.b16 %v1273, %v1265
    %v1914 = vpack.c.b16 %v1274, %v1266
    %v1915 = vpack.c.b16 %v1283, %v1275
    %v1916 = vpack.c.b16 %v1284, %v1276
    %v1917 = vpack.c.b16 %v1285, %v1277
    %v1918 = vpack.c.b16 %v1286, %v1278
    %v1919 = vpack.c.b16 %v1287, %v1279
    %v1920 = vpack.c.b16 %v1288, %v1280
    %v1921 = vpack.c.b16 %v1289, %v1281
    %v1922 = vpack.c.b16 %v1290, %v1282
    %v1923 = vpack.c.b16 %v1299, %v1291
    %v1924 = vpack.c.b16 %v1300, %v1292
    %v1925 = vpack.c.b16 %v1301, %v1293
    %v1926 = vpack.c.b16 %v1302, %v1294
    %v1927 = vpack.c.b16 %v1303, %v1295
    %v1928 = vpack.c.b16 %v1304, %v1296
    %v1929 = vpack.c.b16 %v1305, %v1297
    %v1930 = vpack.c.b16 %v1306, %v1298
    %v1931 = vpack.c.b16 %v1315, %v1307
    %v1932 = vpack.c.b16 %v1316, %v1308
    %v1933 = vpack.c.b16 %v1317, %v1309
    %v1934 = vpack.c.b16 %v1318, %v1310
    %v1935 = vpack.c.b16 %v1319, %v1311
    %v1936 = vpack.c.b16 %v1320, %v1312
    %v1937 = vpack.c.b16 %v1321, %v1313
    %v1938 = vpack.c.b16 %v1322, %v1314
    %v1939 = vpack.c.b16 %v1331, %v1323
    %v1940 = vpack.c.b16 %v1332, %v1324
    %v1941 = vpack.c.b16 %v1333, %v1325
    %v1942 = vpack.c.b16 %v1334, %v1326
    %v1943 = vpack.c.b16 %v1335, %v1327
    %v1944 = vpack.c.b16 %v1336, %v1328
    %v1945 = vpack.c.b16 %v1337, %v1329
    %v1946 = vpack.c.b16 %v1338, %v1330
    %v1947 = vpack.c.b16 %v1347, %v1339
    %v1948 = vpack.c.b16 %v1348, %v1340
    %v1949 = vpack.c.b16 %v1349, %v1341
    %v1950 = vpack.c.b16 %v1350, %v1342
    %v1951 = vpack.c.b16 %v1351, %v1343
    %v1952 = vpack.c.b16 %v1352, %v1344
    %v1953 = vpack.c.b16 %v1353, %v1345
    %v1954 = vpack.c.b16 %v1354, %v1346
    %v1955 = vpack.c.b16 %v1363, %v1355
    %v1956 = vpack.c.b16 %v1364, %v1356
    %v1957 = vpack.c.b16 %v1365, %v1357
    %v1958 = vpack.c.b16 %v1366, %v1358
    %v1959 = vpack.c.b16 %v1367, %v1359
    %v1960 = vpack.c.b16 %v1368, %v1360
    %v1961 = vpack.c.b16 %v1369, %v1361
    %v1962 = vpack.c.b16 %v1370, %v1362
    %v1963 = vpack.c.b16 %v1379, %v1371
    %v1964 = vpack.c.b16 %v1380, %v1372
    %v1965 = vpack.c.b16 %v1381, %v1373
    %v1966 = vpack.c.b16 %v1382, %v1374
    %v1967 = vpack.c.b16 %v1383, %v1375
    %v1968 = vpack.c.b16 %v1384, %v1376
    %v1969 = vpack.c.b16 %v1385, %v1377
    %v1970 = vpack.c.b16 %v1386, %v1378
    %v1971 = vpack.c.b16 %v1395, %v1387
    %v1972 = vpack.c.b16 %v1396, %v1388
    %v1973 = vpack.c.b16 %v1397, %v1389
    %v1974 = vpack.c.b16 %v1398, %v1390
    %v1975 = vpack.c.b16 %v1399, %v1391
    %v1976 = vpack.c.b16 %v1400, %v1392
    %v1977 = vpack.c.b16 %v1401, %v1393
    %v1978 = vpack.c.b16 %v1402, %v1394
    %v1979 = vpack.c.b16 %v1411, %v1403
    %v1980 = vpack.c.b16 %v1412, %v1404
    %v1981 = vpack.c.b16 %v1413, %v1405
    %v1982 = vpack.c.b16 %v1414, %v1406
    %v1983 = vpack.c.b16 %v1415, %v1407
    %v1984 = vpack.c.b16 %v1416, %v1408
    %v1985 = vpack.c.b16 %v1417, %v1409
    %v1986 = vpack.c.b16 %v1418, %v1410
    %v1987 = vpack.c.b16 %v1427, %v1419
    %v1988 = vpack.c.b16 %v1428, %v1420
    %v1989 = vpack.c.b16 %v1429, %v1421
    %v1990 = vpack.c.b16 %v1430, %v1422
    %v1991 = vpack.c.b16 %v1431, %v1423
    %v1992 = vpack.c.b16 %v1432, %v1424
    %v1993 = vpack.c.b16 %v1433, %v1425
    %v1994 = vpack.c.b16 %v1434, %v1426
    %v1995 = vpack.c.b16 %v1443, %v1435
    %v1996 = vpack.c.b16 %v1444, %v1436
    %v1997 = vpack.c.b16 %v1445, %v1437
    %v1998 = vpack.c.b16 %v1446, %v1438
    %v1999 = vpack.c.b16 %v1447, %v1439
    %v2000 = vpack.c.b16 %v1448, %v1440
    %v2001 = vpack.c.b16 %v1449, %v1441
    %v2002 = vpack.c.b16 %v1450, %v1442
    %v2003 = vpack.c.b16 %v1459, %v1451
    %v2004 = vpack.c.b16 %v1460, %v1452
    %v2005 = vpack.c.b16 %v1461, %v1453
    %v2006 = vpack.c.b16 %v1462, %v1454
    %v2007 = vpack.c.b16 %v1463, %v1455
    %v2008 = vpack.c.b16 %v1464, %v1456
    %v2009 = vpack.c.b16 %v1465, %v1457
    %v2010 = vpack.c.b16 %v1466, %v1458
    %v2011 = vpack.c.b16 %v1475, %v1467
    %v2012 = vpack.c.b16 %v1476, %v1468
    %v2013 = vpack.c.b16 %v1477, %v1469
    %v2014 = vpack.c.b16 %v1478, %v1470
    %v2015 = vpack.c.b16 %v1479, %v1471
    %v2016 = vpack.c.b16 %v1480, %v1472
    %v2017 = vpack.c.b16 %v1481, %v1473
    %v2018 = vpack.c.b16 %v1482, %v1474
    %v2019 = vpack.c.b16 %v1491, %v1483
    %v2020 = vpack.c.b16 %v1492, %v1484
    %v2021 = vpack.c.b16 %v1493, %v1485
    %v2022 = vpack.c.b16 %v1494, %v1486
    %v2023 = vpack.c.b16 %v1495, %v1487
    %v2024 = vpack.c.b16 %v1496, %v1488
    %v2025 = vpack.c.b16 %v1497, %v1489
    %v2026 = vpack.c.b16 %v1498, %v1490
    %v2027 = vpack.c.b16 %v1507, %v1499
    %v2028 = vpack.c.b16 %v1508, %v1500
    %v2029 = vpack.c.b16 %v1509, %v1501
    %v2030 = vpack.c.b16 %v1510, %v1502
    %v2031 = vpack.c.b16 %v1511, %v1503
    %v2032 = vpack.c.b16 %v1512, %v1504
    %v2033 = vpack.c.b16 %v1513, %v1505
    %v2034 = vpack.c.b16 %v1514, %v1506
    %v2035 = vpack.c.b16 %v1523, %v1515
    %v2036 = vpack.c.b16 %v1524, %v1516
    %v2037 = vpack.c.b16 %v1525, %v1517
    %v2038 = vpack.c.b16 %v1526, %v1518
    %v2039 = vpack.c.b16 %v1527, %v1519
    %v2040 = vpack.c.b16 %v1528, %v1520
    %v2041 = vpack.c.b16 %v1529, %v1521
    %v2042 = vpack.c.b16 %v1530, %v1522
    %v2043 = vpack.c.b16 %v1539, %v1531
    %v2044 = vpack.c.b16 %v1540, %v1532
    %v2045 = vpack.c.b16 %v1541, %v1533
    %v2046 = vpack.c.b16 %v1542, %v1534
    %v2047 = vpack.c.b16 %v1543, %v1535
    %v2048 = vpack.c.b16 %v1544, %v1536
    %v2049 = vpack.c.b16 %v1545, %v1537
    %v2050 = vpack.c.b16 %v1546, %v1538
    %v2051 = vpack.c.b16 %v1555, %v1547
    %v2052 = vpack.c.b16 %v1556, %v1548
    %v2053 = vpack.c.b16 %v1557, %v1549
    %v2054 = vpack.c.b16 %v1558, %v1550
    %v2055 = vpack.c.b16 %v1559, %v1551
    %v2056 = vpack.c.b16 %v1560, %v1552
    %v2057 = vpack.c.b16 %v1561, %v1553
    %v2058 = vpack.c.b16 %v1562, %v1554
    %v2059 = vpack.c.b16 %v1571, %v1563
    %v2060 = vpack.c.b16 %v1572, %v1564
    %v2061 = vpack.c.b16 %v1573, %v1565
    %v2062 = vpack.c.b16 %v1574, %v1566
    %v2063 = vpack.c.b16 %v1575, %v1567
    %v2064 = vpack.c.b16 %v1576, %v1568
    %v2065 = vpack.c.b16 %v1577, %v1569
    %v2066 = vpack.c.b16 %v1578, %v1570
    %v2067 = vpack.c.b16 %v1587, %v1579
    %v2068 = vpack.c.b16 %v1588, %v1580
    %v2069 = vpack.c.b16 %v1589, %v1581
    %v2070 = vpack.c.b16 %v1590, %v1582
    %v2071 = vpack.c.b16 %v1591, %v1583
    %v2072 = vpack.c.b16 %v1592, %v1584
    %v2073 = vpack.c.b16 %v1593, %v1585
    %v2074 = vpack.c.b16 %v1594, %v1586
    %v2075 = vpack.c.b16 %v1603, %v1595
    %v2076 = vpack.c.b16 %v1604, %v1596
    %v2077 = vpack.c.b16 %v1605, %v1597
    %v2078 = vpack.c.b16 %v1606, %v1598
    %v2079 = vpack.c.b16 %v1607, %v1599
    %v2080 = vpack.c.b16 %v1608, %v1600
    %v2081 = vpack.c.b16 %v1609, %v1601
    %v2082 = vpack.c.b16 %v1610, %v1602
    %v2083 = vpack.c.b16 %v1619, %v1611
    %v2084 = vpack.c.b16 %v1620, %v1612
    %v2085 = vpack.c.b16 %v1621, %v1613
    %v2086 = vpack.c.b16 %v1622, %v1614
    %v2087 = vpack.c.b16 %v1623, %v1615
    %v2088 = vpack.c.b16 %v1624, %v1616
    %v2089 = vpack.c.b16 %v1625, %v1617
    %v2090 = vpack.c.b16 %v1626, %v1618
    %v2091 = vpack.c.b16 %v1635, %v1627
    %v2092 = vpack.c.b16 %v1636, %v1628
    %v2093 = vpack.c.b16 %v1637, %v1629
    %v2094 = vpack.c.b16 %v1638, %v1630
    %v2095 = vpack.c.b16 %v1639, %v1631
    %v2096 = vpack.c.b16 %v1640, %v1632
    %v2097 = vpack.c.b16 %v1641, %v1633
    %v2098 = vpack.c.b16 %v1642, %v1634
    %v2099 = vpack.c.b16 %v1651, %v1643
    %v2100 = vpack.c.b16 %v1652, %v1644
    %v2101 = vpack.c.b16 %v1653, %v1645
    %v2102 = vpack.c.b16 %v1654, %v1646
    %v2103 = vpack.c.b16 %v1655, %v1647
    %v2104 = vpack.c.b16 %v1656, %v1648
    %v2105 = vpack.c.b16 %v1657, %v1649
    %v2106 = vpack.c.b16 %v1658, %v1650
    %v2107 = vpack.c.b16 %v1667, %v1659
    %v2108 = vpack.c.b16 %v1668, %v1660
    %v2109 = vpack.c.b16 %v1669, %v1661
    %v2110 = vpack.c.b16 %v1670, %v1662
    %v2111 = vpack.c.b16 %v1671, %v1663
    %v2112 = vpack.c.b16 %v1672, %v1664
    %v2113 = vpack.c.b16 %v1673, %v1665
    %v2114 = vpack.c.b16 %v1674, %v1666
    %v2115 = vpack.c.b16 %v1683, %v1675
    %v2116 = vpack.c.b16 %v1684, %v1676
    %v2117 = vpack.c.b16 %v1685, %v1677
    %v2118 = vpack.c.b16 %v1686, %v1678
    %v2119 = vpack.c.b16 %v1687, %v1679
    %v2120 = vpack.c.b16 %v1688, %v1680
    %v2121 = vpack.c.b16 %v1689, %v1681
    %v2122 = vpack.c.b16 %v1690, %v1682
    %v2123 = vpack.c.b16 %v1699, %v1691
    %v2124 = vpack.c.b16 %v1700, %v1692
    %v2125 = vpack.c.b16 %v1701, %v1693
    %v2126 = vpack.c.b16 %v1702, %v1694
    %v2127 = vpack.c.b16 %v1703, %v1695
    %v2128 = vpack.c.b16 %v1704, %v1696
    %v2129 = vpack.c.b16 %v1705, %v1697
    %v2130 = vpack.c.b16 %v1706, %v1698
    %v2131 = vpack.c.b16 %v1715, %v1707
    %v2132 = vpack.c.b16 %v1716, %v1708
    %v2133 = vpack.c.b16 %v1717, %v1709
    %v2134 = vpack.c.b16 %v1718, %v1710
    %v2135 = vpack.c.b16 %v1719, %v1711
    %v2136 = vpack.c.b16 %v1720, %v1712
    %v2137 = vpack.c.b16 %v1721, %v1713
    %v2138 = vpack.c.b16 %v1722, %v1714
    %v2139 = vpack.c.b16 %v1731, %v1723
    %v2140 = vpack.c.b16 %v1732, %v1724
    %v2141 = vpack.c.b16 %v1733, %v1725
    %v2142 = vpack.c.b16 %v1734, %v1726
    %v2143 = vpack.c.b16 %v1735, %v1727
    %v2144 = vpack.c.b16 %v1736, %v1728
    %v2145 = vpack.c.b16 %v1737, %v1729
    %v2146 = vpack.c.b16 %v1738, %v1730
    %v2147 = vpack.c.b16 %v1747, %v1739
    %v2148 = vpack.c.b16 %v1748, %v1740
    %v2149 = vpack.c.b16 %v1749, %v1741
    %v2150 = vpack.c.b16 %v1750, %v1742
    %v2151 = vpack.c.b16 %v1751, %v1743
    %v2152 = vpack.c.b16 %v1752, %v1744
    %v2153 = vpack.c.b16 %v1753, %v1745
    %v2154 = vpack.c.b16 %v1754, %v1746
    %v2155 = vpack.c.b16 %v1763, %v1755
    %v2156 = vpack.c.b16 %v1764, %v1756
    %v2157 = vpack.c.b16 %v1765, %v1757
    %v2158 = vpack.c.b16 %v1766, %v1758
    %v2159 = vpack.c.b16 %v1767, %v1759
    %v2160 = vpack.c.b16 %v1768, %v1760
    %v2161 = vpack.c.b16 %v1769, %v1761
    %v2162 = vpack.c.b16 %v1770, %v1762
    %vm2547 = vcmask 97280
    %v2549 = vsel %vm2547, %v588, 0
    %vm2551 = vcmask 1045504
    %v2553 = vsel %vm2551, %v2155, 0
    %v2556 = vsel %vm2551, %v2156, 0
    %v2559 = vsel %vm2551, %v2157, 0
    %v2562 = vsel %vm2551, %v2158, 0
    %v2565 = vsel %vm2551, %v2159, 0
    %v2568 = vsel %vm2551, %v2160, 0
    %v2571 = vsel %vm2551, %v2161, 0
    %v2574 = vsel %vm2551, %v2162, 0
    %2576 = vmatprep.subr.bf16.mxu0 %v1828
    %2577 = vmatpush1.bf16.msra.mxu0 %v1827
    %2578 = vmatprep.subr.bf16.mxu0 %v1820
    %2579 = vmatpush1.bf16.msra.mxu0 %v1819
    %2580 = vmatprep.subr.bf16.mxu0 %v1812
    %2581 = vmatpush1.bf16.msra.mxu0 %v1811
    %2582 = vmatprep.subr.bf16.mxu0 %v1804
    %2583 = vmatpush1.bf16.msra.mxu0 %v1803
    %2584 = vmatprep.subr.bf16.mxu0 %v1796
    %2585 = vmatpush1.bf16.msra.mxu0 %v1795
    %2586 = vmatprep.subr.bf16.mxu0 %v1788
    %2587 = vmatpush1.bf16.msra.mxu0 %v1787
    %2588 = vmatprep.subr.bf16.mxu0 %v1780
    %2589 = vmatpush1.bf16.msra.mxu0 %v1779
    %2590 = vmatprep.subr.bf16.mxu0 %v1772
    %2591 = vmatpush1.bf16.msra.mxu0 %v1771
    %2592 = vmatprep.subr.bf16.mxu0 %v1892
    %2593 = vmatpush2.bf16.msra.mxu0 %v1891
    %2594 = vmatprep.subr.bf16.mxu0 %v1884
    %2595 = vmatpush2.bf16.msra.mxu0 %v1883
    %2596 = vmatprep.subr.bf16.mxu0 %v1876
    %2597 = vmatpush2.bf16.msra.mxu0 %v1875
    %2598 = vmatprep.subr.bf16.mxu0 %v1868
    %2599 = vmatpush2.bf16.msra.mxu0 %v1867
    %2600 = vmatprep.subr.bf16.mxu0 %v1860
    %2601 = vmatpush2.bf16.msra.mxu0 %v1859
    %2602 = vmatprep.subr.bf16.mxu0 %v1852
    %2603 = vmatpush2.bf16.msra.mxu0 %v1851
    %2604 = vmatprep.subr.bf16.mxu0 %v1844
    %2605 = vmatpush2.bf16.msra.mxu0 %v1843
    %2606 = vmatprep.subr.bf16.mxu0 %v1836
    %2607 = vmatpush2.bf16.msra.mxu0 %v1835
    %2608 = vmatprep.mubr.bf16.mxu0 %v583
    %2609 = vmatmul.mubr.bf16.gmra.mxu0 %v582
    %v2610 = vpop.f32.mrf.mxu0
    %v2611 = vadd.f32 %v534, %v2610
    %v2612 = vpop.f32.mrf.mxu0
    %v2613 = vadd.f32 %v538, %v2612
    %v2614 = vpop.f32.mrf.mxu0
    %v2615 = vpop.f32.mrf.mxu0
    %2616 = vdwg.mxu0
    %2617 = vmatprep.subr.bf16.mxu0 %v1956
    %2618 = vmatpush1.bf16.msra.mxu0 %v1955
    %2619 = vmatprep.subr.bf16.mxu0 %v1948
    %2620 = vmatpush1.bf16.msra.mxu0 %v1947
    %2621 = vmatprep.subr.bf16.mxu0 %v1940
    %2622 = vmatpush1.bf16.msra.mxu0 %v1939
    %2623 = vmatprep.subr.bf16.mxu0 %v1932
    %2624 = vmatpush1.bf16.msra.mxu0 %v1931
    %2625 = vmatprep.subr.bf16.mxu0 %v1924
    %2626 = vmatpush1.bf16.msra.mxu0 %v1923
    %2627 = vmatprep.subr.bf16.mxu0 %v1916
    %2628 = vmatpush1.bf16.msra.mxu0 %v1915
    %2629 = vmatprep.subr.bf16.mxu0 %v1908
    %2630 = vmatpush1.bf16.msra.mxu0 %v1907
    %2631 = vmatprep.subr.bf16.mxu0 %v1900
    %2632 = vmatpush1.bf16.msra.mxu0 %v1899
    %2633 = vmatprep.subr.bf16.mxu0 %v2020
    %2634 = vmatpush2.bf16.msra.mxu0 %v2019
    %2635 = vmatprep.subr.bf16.mxu0 %v2012
    %2636 = vmatpush2.bf16.msra.mxu0 %v2011
    %2637 = vmatprep.subr.bf16.mxu0 %v2004
    %2638 = vmatpush2.bf16.msra.mxu0 %v2003
    %2639 = vmatprep.subr.bf16.mxu0 %v1996
    %2640 = vmatpush2.bf16.msra.mxu0 %v1995
    %2641 = vmatprep.subr.bf16.mxu0 %v1988
    %2642 = vmatpush2.bf16.msra.mxu0 %v1987
    %2643 = vmatprep.subr.bf16.mxu0 %v1980
    %2644 = vmatpush2.bf16.msra.mxu0 %v1979
    %2645 = vmatprep.subr.bf16.mxu0 %v1972
    %2646 = vmatpush2.bf16.msra.mxu0 %v1971
    %2647 = vmatprep.subr.bf16.mxu0 %v1964
    %2648 = vmatpush2.bf16.msra.mxu0 %v1963
    %2649 = vmatprep.mubr.bf16.mxu0 %v585
    %2650 = vmatmul.mubr.bf16.gmra.mxu0 %v584
    %v2651 = vpop.f32.mrf.mxu0
    %v2652 = vadd.f32 %v2611, %v2651
    %v2653 = vpop.f32.mrf.mxu0
    %v2654 = vadd.f32 %v2613, %v2653
    %v2655 = vpop.f32.mrf.mxu0
    %v2656 = vpop.f32.mrf.mxu0
    %2657 = vdwg.mxu0
    %2658 = vmatprep.subr.bf16.mxu0 %v2084
    %2659 = vmatpush1.bf16.msra.mxu0 %v2083
    %2660 = vmatprep.subr.bf16.mxu0 %v2076
    %2661 = vmatpush1.bf16.msra.mxu0 %v2075
    %2662 = vmatprep.subr.bf16.mxu0 %v2068
    %2663 = vmatpush1.bf16.msra.mxu0 %v2067
    %2664 = vmatprep.subr.bf16.mxu0 %v2060
    %2665 = vmatpush1.bf16.msra.mxu0 %v2059
    %2666 = vmatprep.subr.bf16.mxu0 %v2052
    %2667 = vmatpush1.bf16.msra.mxu0 %v2051
    %2668 = vmatprep.subr.bf16.mxu0 %v2044
    %2669 = vmatpush1.bf16.msra.mxu0 %v2043
    %2670 = vmatprep.subr.bf16.mxu0 %v2036
    %2671 = vmatpush1.bf16.msra.mxu0 %v2035
    %2672 = vmatprep.subr.bf16.mxu0 %v2028
    %2673 = vmatpush1.bf16.msra.mxu0 %v2027
    %2674 = vmatprep.subr.bf16.mxu0 %v2148
    %2675 = vmatpush2.bf16.msra.mxu0 %v2147
    %2676 = vmatprep.subr.bf16.mxu0 %v2140
    %2677 = vmatpush2.bf16.msra.mxu0 %v2139
    %2678 = vmatprep.subr.bf16.mxu0 %v2132
    %2679 = vmatpush2.bf16.msra.mxu0 %v2131
    %2680 = vmatprep.subr.bf16.mxu0 %v2124
    %2681 = vmatpush2.bf16.msra.mxu0 %v2123
    %2682 = vmatprep.subr.bf16.mxu0 %v2116
    %2683 = vmatpush2.bf16.msra.mxu0 %v2115
    %2684 = vmatprep.subr.bf16.mxu0 %v2108
    %2685 = vmatpush2.bf16.msra.mxu0 %v2107
    %2686 = vmatprep.subr.bf16.mxu0 %v2100
    %2687 = vmatpush2.bf16.msra.mxu0 %v2099
    %2688 = vmatprep.subr.bf16.mxu0 %v2092
    %2689 = vmatpush2.bf16.msra.mxu0 %v2091
    %2690 = vmatprep.mubr.bf16.mxu0 %v587
    %2691 = vmatmul.mubr.bf16.gmra.mxu0 %v586
    %v2692 = vpop.f32.mrf.mxu0
    %v2693 = vadd.f32 %v2652, %v2692
    %v2694 = vpop.f32.mrf.mxu0
    %v2695 = vadd.f32 %v2654, %v2694
    %v2696 = vpop.f32.mrf.mxu0
    %v2697 = vpop.f32.mrf.mxu0
    %2698 = vdwg.mxu0
    %2699 = vmatprep.subr.bf16.mxu0 0
    %2700 = vmatpush1.bf16.msra.mxu0 0
    %2701 = vmatprep.subr.bf16.mxu0 0
    %2702 = vmatpush1.bf16.msra.mxu0 0
    %2703 = vmatprep.subr.bf16.mxu0 0
    %2704 = vmatpush1.bf16.msra.mxu0 0
    %2705 = vmatprep.subr.bf16.mxu0 0
    %2706 = vmatpush1.bf16.msra.mxu0 0
    %2707 = vmatprep.subr.bf16.mxu0 0
    %2708 = vmatpush1.bf16.msra.mxu0 0
    %2709 = vmatprep.subr.bf16.mxu0 0
    %2710 = vmatpush1.bf16.msra.mxu0 0
    %2711 = vmatprep.subr.bf16.mxu0 0
    %2712 = vmatpush1.bf16.msra.mxu0 0
    %2713 = vmatprep.subr.bf16.mxu0 %v2556
    %2714 = vmatpush1.bf16.msra.mxu0 %v2553
    %2715 = vmatprep.subr.bf16.mxu0 0
    %2716 = vmatpush2.bf16.msra.mxu0 0
    %2717 = vmatprep.subr.bf16.mxu0 0
    %2718 = vmatpush2.bf16.msra.mxu0 0
    %2719 = vmatprep.subr.bf16.mxu0 0
    %2720 = vmatpush2.bf16.msra.mxu0 0
    %2721 = vmatprep.subr.bf16.mxu0 0
    %2722 = vmatpush2.bf16.msra.mxu0 0
    %2723 = vmatprep.subr.bf16.mxu0 0
    %2724 = vmatpush2.bf16.msra.mxu0 0
    %2725 = vmatprep.subr.bf16.mxu0 0
    %2726 = vmatpush2.bf16.msra.mxu0 0
    %2727 = vmatprep.subr.bf16.mxu0 0
    %2728 = vmatpush2.bf16.msra.mxu0 0
    %2729 = vmatprep.subr.bf16.mxu0 0
    %2730 = vmatpush2.bf16.msra.mxu0 0
    %2731 = vmatprep.mubr.bf16.mxu0 0
    %2732 = vmatmul.mubr.bf16.gmra.mxu0 %v2549
    %v2733 = vpop.f32.mrf.mxu0
    %v2734 = vadd.f32 %v2693, %v2733
    %v2735 = vpop.f32.mrf.mxu0
    %v2736 = vadd.f32 %v2695, %v2735
    %v2737 = vpop.f32.mrf.mxu0
    %v2738 = vpop.f32.mrf.mxu0
    %2739 = vdwg.mxu0
    %2740 = vmatprep.subr.bf16.mxu0 %v1830
    %2741 = vmatpush1.bf16.msra.mxu0 %v1829
    %2742 = vmatprep.subr.bf16.mxu0 %v1822
    %2743 = vmatpush1.bf16.msra.mxu0 %v1821
    %2744 = vmatprep.subr.bf16.mxu0 %v1814
    %2745 = vmatpush1.bf16.msra.mxu0 %v1813
    %2746 = vmatprep.subr.bf16.mxu0 %v1806
    %2747 = vmatpush1.bf16.msra.mxu0 %v1805
    %2748 = vmatprep.subr.bf16.mxu0 %v1798
    %2749 = vmatpush1.bf16.msra.mxu0 %v1797
    %2750 = vmatprep.subr.bf16.mxu0 %v1790
    %2751 = vmatpush1.bf16.msra.mxu0 %v1789
    %2752 = vmatprep.subr.bf16.mxu0 %v1782
    %2753 = vmatpush1.bf16.msra.mxu0 %v1781
    %2754 = vmatprep.subr.bf16.mxu0 %v1774
    %2755 = vmatpush1.bf16.msra.mxu0 %v1773
    %2756 = vmatprep.subr.bf16.mxu0 %v1894
    %2757 = vmatpush2.bf16.msra.mxu0 %v1893
    %2758 = vmatprep.subr.bf16.mxu0 %v1886
    %2759 = vmatpush2.bf16.msra.mxu0 %v1885
    %2760 = vmatprep.subr.bf16.mxu0 %v1878
    %2761 = vmatpush2.bf16.msra.mxu0 %v1877
    %2762 = vmatprep.subr.bf16.mxu0 %v1870
    %2763 = vmatpush2.bf16.msra.mxu0 %v1869
    %2764 = vmatprep.subr.bf16.mxu0 %v1862
    %2765 = vmatpush2.bf16.msra.mxu0 %v1861
    %2766 = vmatprep.subr.bf16.mxu0 %v1854
    %2767 = vmatpush2.bf16.msra.mxu0 %v1853
    %2768 = vmatprep.subr.bf16.mxu0 %v1846
    %2769 = vmatpush2.bf16.msra.mxu0 %v1845
    %2770 = vmatprep.subr.bf16.mxu0 %v1838
    %2771 = vmatpush2.bf16.msra.mxu0 %v1837
    %2772 = vmatprep.mubr.bf16.mxu0 %v583
    %2773 = vmatmul.mubr.bf16.gmra.mxu0 %v582
    %v2774 = vpop.f32.mrf.mxu0
    %v2775 = vadd.f32 %v542, %v2774
    %v2776 = vpop.f32.mrf.mxu0
    %v2777 = vadd.f32 %v546, %v2776
    %v2778 = vpop.f32.mrf.mxu0
    %v2779 = vpop.f32.mrf.mxu0
    %2780 = vdwg.mxu0
    %2781 = vmatprep.subr.bf16.mxu0 %v1958
    %2782 = vmatpush1.bf16.msra.mxu0 %v1957
    %2783 = vmatprep.subr.bf16.mxu0 %v1950
    %2784 = vmatpush1.bf16.msra.mxu0 %v1949
    %2785 = vmatprep.subr.bf16.mxu0 %v1942
    %2786 = vmatpush1.bf16.msra.mxu0 %v1941
    %2787 = vmatprep.subr.bf16.mxu0 %v1934
    %2788 = vmatpush1.bf16.msra.mxu0 %v1933
    %2789 = vmatprep.subr.bf16.mxu0 %v1926
    %2790 = vmatpush1.bf16.msra.mxu0 %v1925
    %2791 = vmatprep.subr.bf16.mxu0 %v1918
    %2792 = vmatpush1.bf16.msra.mxu0 %v1917
    %2793 = vmatprep.subr.bf16.mxu0 %v1910
    %2794 = vmatpush1.bf16.msra.mxu0 %v1909
    %2795 = vmatprep.subr.bf16.mxu0 %v1902
    %2796 = vmatpush1.bf16.msra.mxu0 %v1901
    %2797 = vmatprep.subr.bf16.mxu0 %v2022
    %2798 = vmatpush2.bf16.msra.mxu0 %v2021
    %2799 = vmatprep.subr.bf16.mxu0 %v2014
    %2800 = vmatpush2.bf16.msra.mxu0 %v2013
    %2801 = vmatprep.subr.bf16.mxu0 %v2006
    %2802 = vmatpush2.bf16.msra.mxu0 %v2005
    %2803 = vmatprep.subr.bf16.mxu0 %v1998
    %2804 = vmatpush2.bf16.msra.mxu0 %v1997
    %2805 = vmatprep.subr.bf16.mxu0 %v1990
    %2806 = vmatpush2.bf16.msra.mxu0 %v1989
    %2807 = vmatprep.subr.bf16.mxu0 %v1982
    %2808 = vmatpush2.bf16.msra.mxu0 %v1981
    %2809 = vmatprep.subr.bf16.mxu0 %v1974
    %2810 = vmatpush2.bf16.msra.mxu0 %v1973
    %2811 = vmatprep.subr.bf16.mxu0 %v1966
    %2812 = vmatpush2.bf16.msra.mxu0 %v1965
    %2813 = vmatprep.mubr.bf16.mxu0 %v585
    %2814 = vmatmul.mubr.bf16.gmra.mxu0 %v584
    %v2815 = vpop.f32.mrf.mxu0
    %v2816 = vadd.f32 %v2775, %v2815
    %v2817 = vpop.f32.mrf.mxu0
    %v2818 = vadd.f32 %v2777, %v2817
    %v2819 = vpop.f32.mrf.mxu0
    %v2820 = vpop.f32.mrf.mxu0
    %2821 = vdwg.mxu0
    %2822 = vmatprep.subr.bf16.mxu0 %v2086
    %2823 = vmatpush1.bf16.msra.mxu0 %v2085
    %2824 = vmatprep.subr.bf16.mxu0 %v2078
    %2825 = vmatpush1.bf16.msra.mxu0 %v2077
    %2826 = vmatprep.subr.bf16.mxu0 %v2070
    %2827 = vmatpush1.bf16.msra.mxu0 %v2069
    %2828 = vmatprep.subr.bf16.mxu0 %v2062
    %2829 = vmatpush1.bf16.msra.mxu0 %v2061
    %2830 = vmatprep.subr.bf16.mxu0 %v2054
    %2831 = vmatpush1.bf16.msra.mxu0 %v2053
    %2832 = vmatprep.subr.bf16.mxu0 %v2046
    %2833 = vmatpush1.bf16.msra.mxu0 %v2045
    %2834 = vmatprep.subr.bf16.mxu0 %v2038
    %2835 = vmatpush1.bf16.msra.mxu0 %v2037
    %2836 = vmatprep.subr.bf16.mxu0 %v2030
    %2837 = vmatpush1.bf16.msra.mxu0 %v2029
    %2838 = vmatprep.subr.bf16.mxu0 %v2150
    %2839 = vmatpush2.bf16.msra.mxu0 %v2149
    %2840 = vmatprep.subr.bf16.mxu0 %v2142
    %2841 = vmatpush2.bf16.msra.mxu0 %v2141
    %2842 = vmatprep.subr.bf16.mxu0 %v2134
    %2843 = vmatpush2.bf16.msra.mxu0 %v2133
    %2844 = vmatprep.subr.bf16.mxu0 %v2126
    %2845 = vmatpush2.bf16.msra.mxu0 %v2125
    %2846 = vmatprep.subr.bf16.mxu0 %v2118
    %2847 = vmatpush2.bf16.msra.mxu0 %v2117
    %2848 = vmatprep.subr.bf16.mxu0 %v2110
    %2849 = vmatpush2.bf16.msra.mxu0 %v2109
    %2850 = vmatprep.subr.bf16.mxu0 %v2102
    %2851 = vmatpush2.bf16.msra.mxu0 %v2101
    %2852 = vmatprep.subr.bf16.mxu0 %v2094
    %2853 = vmatpush2.bf16.msra.mxu0 %v2093
    %2854 = vmatprep.mubr.bf16.mxu0 %v587
    %2855 = vmatmul.mubr.bf16.gmra.mxu0 %v586
    %v2856 = vpop.f32.mrf.mxu0
    %v2857 = vadd.f32 %v2816, %v2856
    %v2858 = vpop.f32.mrf.mxu0
    %v2859 = vadd.f32 %v2818, %v2858
    %v2860 = vpop.f32.mrf.mxu0
    %v2861 = vpop.f32.mrf.mxu0
    %2862 = vdwg.mxu0
    %2863 = vmatprep.subr.bf16.mxu0 0
    %2864 = vmatpush1.bf16.msra.mxu0 0
    %2865 = vmatprep.subr.bf16.mxu0 0
    %2866 = vmatpush1.bf16.msra.mxu0 0
    %2867 = vmatprep.subr.bf16.mxu0 0
    %2868 = vmatpush1.bf16.msra.mxu0 0
    %2869 = vmatprep.subr.bf16.mxu0 0
    %2870 = vmatpush1.bf16.msra.mxu0 0
    %2871 = vmatprep.subr.bf16.mxu0 0
    %2872 = vmatpush1.bf16.msra.mxu0 0
    %2873 = vmatprep.subr.bf16.mxu0 0
    %2874 = vmatpush1.bf16.msra.mxu0 0
    %2875 = vmatprep.subr.bf16.mxu0 0
    %2876 = vmatpush1.bf16.msra.mxu0 0
    %2877 = vmatprep.subr.bf16.mxu0 %v2562
    %2878 = vmatpush1.bf16.msra.mxu0 %v2559
    %2879 = vmatprep.subr.bf16.mxu0 0
    %2880 = vmatpush2.bf16.msra.mxu0 0
    %2881 = vmatprep.subr.bf16.mxu0 0
    %2882 = vmatpush2.bf16.msra.mxu0 0
    %2883 = vmatprep.subr.bf16.mxu0 0
    %2884 = vmatpush2.bf16.msra.mxu0 0
    %2885 = vmatprep.subr.bf16.mxu0 0
    %2886 = vmatpush2.bf16.msra.mxu0 0
    %2887 = vmatprep.subr.bf16.mxu0 0
    %2888 = vmatpush2.bf16.msra.mxu0 0
    %2889 = vmatprep.subr.bf16.mxu0 0
    %2890 = vmatpush2.bf16.msra.mxu0 0
    %2891 = vmatprep.subr.bf16.mxu0 0
    %2892 = vmatpush2.bf16.msra.mxu0 0
    %2893 = vmatprep.subr.bf16.mxu0 0
    %2894 = vmatpush2.bf16.msra.mxu0 0
    %2895 = vmatprep.mubr.bf16.mxu0 0
    %2896 = vmatmul.mubr.bf16.gmra.mxu0 %v2549
    %v2897 = vpop.f32.mrf.mxu0
    %v2898 = vadd.f32 %v2857, %v2897
    %v2899 = vpop.f32.mrf.mxu0
    %v2900 = vadd.f32 %v2859, %v2899
    %v2901 = vpop.f32.mrf.mxu0
    %v2902 = vpop.f32.mrf.mxu0
    %2903 = vdwg.mxu0
    %2904 = vmatprep.subr.bf16.mxu0 %v1832
    %2905 = vmatpush1.bf16.msra.mxu0 %v1831
    %2906 = vmatprep.subr.bf16.mxu0 %v1824
    %2907 = vmatpush1.bf16.msra.mxu0 %v1823
    %2908 = vmatprep.subr.bf16.mxu0 %v1816
    %2909 = vmatpush1.bf16.msra.mxu0 %v1815
    %2910 = vmatprep.subr.bf16.mxu0 %v1808
    %2911 = vmatpush1.bf16.msra.mxu0 %v1807
    %2912 = vmatprep.subr.bf16.mxu0 %v1800
    %2913 = vmatpush1.bf16.msra.mxu0 %v1799
    %2914 = vmatprep.subr.bf16.mxu0 %v1792
    %2915 = vmatpush1.bf16.msra.mxu0 %v1791
    %2916 = vmatprep.subr.bf16.mxu0 %v1784
    %2917 = vmatpush1.bf16.msra.mxu0 %v1783
    %2918 = vmatprep.subr.bf16.mxu0 %v1776
    %2919 = vmatpush1.bf16.msra.mxu0 %v1775
    %2920 = vmatprep.subr.bf16.mxu0 %v1896
    %2921 = vmatpush2.bf16.msra.mxu0 %v1895
    %2922 = vmatprep.subr.bf16.mxu0 %v1888
    %2923 = vmatpush2.bf16.msra.mxu0 %v1887
    %2924 = vmatprep.subr.bf16.mxu0 %v1880
    %2925 = vmatpush2.bf16.msra.mxu0 %v1879
    %2926 = vmatprep.subr.bf16.mxu0 %v1872
    %2927 = vmatpush2.bf16.msra.mxu0 %v1871
    %2928 = vmatprep.subr.bf16.mxu0 %v1864
    %2929 = vmatpush2.bf16.msra.mxu0 %v1863
    %2930 = vmatprep.subr.bf16.mxu0 %v1856
    %2931 = vmatpush2.bf16.msra.mxu0 %v1855
    %2932 = vmatprep.subr.bf16.mxu0 %v1848
    %2933 = vmatpush2.bf16.msra.mxu0 %v1847
    %2934 = vmatprep.subr.bf16.mxu0 %v1840
    %2935 = vmatpush2.bf16.msra.mxu0 %v1839
    %2936 = vmatprep.mubr.bf16.mxu0 %v583
    %2937 = vmatmul.mubr.bf16.gmra.mxu0 %v582
    %v2938 = vpop.f32.mrf.mxu0
    %v2939 = vadd.f32 %v550, %v2938
    %v2940 = vpop.f32.mrf.mxu0
    %v2941 = vadd.f32 %v554, %v2940
    %v2942 = vpop.f32.mrf.mxu0
    %v2943 = vpop.f32.mrf.mxu0
    %2944 = vdwg.mxu0
    %2945 = vmatprep.subr.bf16.mxu0 %v1960
    %2946 = vmatpush1.bf16.msra.mxu0 %v1959
    %2947 = vmatprep.subr.bf16.mxu0 %v1952
    %2948 = vmatpush1.bf16.msra.mxu0 %v1951
    %2949 = vmatprep.subr.bf16.mxu0 %v1944
    %2950 = vmatpush1.bf16.msra.mxu0 %v1943
    %2951 = vmatprep.subr.bf16.mxu0 %v1936
    %2952 = vmatpush1.bf16.msra.mxu0 %v1935
    %2953 = vmatprep.subr.bf16.mxu0 %v1928
    %2954 = vmatpush1.bf16.msra.mxu0 %v1927
    %2955 = vmatprep.subr.bf16.mxu0 %v1920
    %2956 = vmatpush1.bf16.msra.mxu0 %v1919
    %2957 = vmatprep.subr.bf16.mxu0 %v1912
    %2958 = vmatpush1.bf16.msra.mxu0 %v1911
    %2959 = vmatprep.subr.bf16.mxu0 %v1904
    %2960 = vmatpush1.bf16.msra.mxu0 %v1903
    %2961 = vmatprep.subr.bf16.mxu0 %v2024
    %2962 = vmatpush2.bf16.msra.mxu0 %v2023
    %2963 = vmatprep.subr.bf16.mxu0 %v2016
    %2964 = vmatpush2.bf16.msra.mxu0 %v2015
    %2965 = vmatprep.subr.bf16.mxu0 %v2008
    %2966 = vmatpush2.bf16.msra.mxu0 %v2007
    %2967 = vmatprep.subr.bf16.mxu0 %v2000
    %2968 = vmatpush2.bf16.msra.mxu0 %v1999
    %2969 = vmatprep.subr.bf16.mxu0 %v1992
    %2970 = vmatpush2.bf16.msra.mxu0 %v1991
    %2971 = vmatprep.subr.bf16.mxu0 %v1984
    %2972 = vmatpush2.bf16.msra.mxu0 %v1983
    %2973 = vmatprep.subr.bf16.mxu0 %v1976
    %2974 = vmatpush2.bf16.msra.mxu0 %v1975
    %2975 = vmatprep.subr.bf16.mxu0 %v1968
    %2976 = vmatpush2.bf16.msra.mxu0 %v1967
    %2977 = vmatprep.mubr.bf16.mxu0 %v585
    %2978 = vmatmul.mubr.bf16.gmra.mxu0 %v584
    %v2979 = vpop.f32.mrf.mxu0
    %v2980 = vadd.f32 %v2939, %v2979
    %v2981 = vpop.f32.mrf.mxu0
    %v2982 = vadd.f32 %v2941, %v2981
    %v2983 = vpop.f32.mrf.mxu0
    %v2984 = vpop.f32.mrf.mxu0
    %2985 = vdwg.mxu0
    %2986 = vmatprep.subr.bf16.mxu0 %v2088
    %2987 = vmatpush1.bf16.msra.mxu0 %v2087
    %2988 = vmatprep.subr.bf16.mxu0 %v2080
    %2989 = vmatpush1.bf16.msra.mxu0 %v2079
    %2990 = vmatprep.subr.bf16.mxu0 %v2072
    %2991 = vmatpush1.bf16.msra.mxu0 %v2071
    %2992 = vmatprep.subr.bf16.mxu0 %v2064
    %2993 = vmatpush1.bf16.msra.mxu0 %v2063
    %2994 = vmatprep.subr.bf16.mxu0 %v2056
    %2995 = vmatpush1.bf16.msra.mxu0 %v2055
    %2996 = vmatprep.subr.bf16.mxu0 %v2048
    %2997 = vmatpush1.bf16.msra.mxu0 %v2047
    %2998 = vmatprep.subr.bf16.mxu0 %v2040
    %2999 = vmatpush1.bf16.msra.mxu0 %v2039
    %3000 = vmatprep.subr.bf16.mxu0 %v2032
    %3001 = vmatpush1.bf16.msra.mxu0 %v2031
    %3002 = vmatprep.subr.bf16.mxu0 %v2152
    %3003 = vmatpush2.bf16.msra.mxu0 %v2151
    %3004 = vmatprep.subr.bf16.mxu0 %v2144
    %3005 = vmatpush2.bf16.msra.mxu0 %v2143
    %3006 = vmatprep.subr.bf16.mxu0 %v2136
    %3007 = vmatpush2.bf16.msra.mxu0 %v2135
    %3008 = vmatprep.subr.bf16.mxu0 %v2128
    %3009 = vmatpush2.bf16.msra.mxu0 %v2127
    %3010 = vmatprep.subr.bf16.mxu0 %v2120
    %3011 = vmatpush2.bf16.msra.mxu0 %v2119
    %3012 = vmatprep.subr.bf16.mxu0 %v2112
    %3013 = vmatpush2.bf16.msra.mxu0 %v2111
    %3014 = vmatprep.subr.bf16.mxu0 %v2104
    %3015 = vmatpush2.bf16.msra.mxu0 %v2103
    %3016 = vmatprep.subr.bf16.mxu0 %v2096
    %3017 = vmatpush2.bf16.msra.mxu0 %v2095
    %3018 = vmatprep.mubr.bf16.mxu0 %v587
    %3019 = vmatmul.mubr.bf16.gmra.mxu0 %v586
    %v3020 = vpop.f32.mrf.mxu0
    %v3021 = vadd.f32 %v2980, %v3020
    %v3022 = vpop.f32.mrf.mxu0
    %v3023 = vadd.f32 %v2982, %v3022
    %v3024 = vpop.f32.mrf.mxu0
    %v3025 = vpop.f32.mrf.mxu0
    %3026 = vdwg.mxu0
    %3027 = vmatprep.subr.bf16.mxu0 0
    %3028 = vmatpush1.bf16.msra.mxu0 0
    %3029 = vmatprep.subr.bf16.mxu0 0
    %3030 = vmatpush1.bf16.msra.mxu0 0
    %3031 = vmatprep.subr.bf16.mxu0 0
    %3032 = vmatpush1.bf16.msra.mxu0 0
    %3033 = vmatprep.subr.bf16.mxu0 0
    %3034 = vmatpush1.bf16.msra.mxu0 0
    %3035 = vmatprep.subr.bf16.mxu0 0
    %3036 = vmatpush1.bf16.msra.mxu0 0
    %3037 = vmatprep.subr.bf16.mxu0 0
    %3038 = vmatpush1.bf16.msra.mxu0 0
    %3039 = vmatprep.subr.bf16.mxu0 0
    %3040 = vmatpush1.bf16.msra.mxu0 0
    %3041 = vmatprep.subr.bf16.mxu0 %v2568
    %3042 = vmatpush1.bf16.msra.mxu0 %v2565
    %3043 = vmatprep.subr.bf16.mxu0 0
    %3044 = vmatpush2.bf16.msra.mxu0 0
    %3045 = vmatprep.subr.bf16.mxu0 0
    %3046 = vmatpush2.bf16.msra.mxu0 0
    %3047 = vmatprep.subr.bf16.mxu0 0
    %3048 = vmatpush2.bf16.msra.mxu0 0
    %3049 = vmatprep.subr.bf16.mxu0 0
    %3050 = vmatpush2.bf16.msra.mxu0 0
    %3051 = vmatprep.subr.bf16.mxu0 0
    %3052 = vmatpush2.bf16.msra.mxu0 0
    %3053 = vmatprep.subr.bf16.mxu0 0
    %3054 = vmatpush2.bf16.msra.mxu0 0
    %3055 = vmatprep.subr.bf16.mxu0 0
    %3056 = vmatpush2.bf16.msra.mxu0 0
    %3057 = vmatprep.subr.bf16.mxu0 0
    %3058 = vmatpush2.bf16.msra.mxu0 0
    %3059 = vmatprep.mubr.bf16.mxu0 0
    %3060 = vmatmul.mubr.bf16.gmra.mxu0 %v2549
    %v3061 = vpop.f32.mrf.mxu0
    %v3062 = vadd.f32 %v3021, %v3061
    %v3063 = vpop.f32.mrf.mxu0
    %v3064 = vadd.f32 %v3023, %v3063
    %v3065 = vpop.f32.mrf.mxu0
    %v3066 = vpop.f32.mrf.mxu0
    %3067 = vdwg.mxu0
    %3068 = vmatprep.subr.bf16.mxu0 %v1834
    %3069 = vmatpush1.bf16.msra.mxu0 %v1833
    %3070 = vmatprep.subr.bf16.mxu0 %v1826
    %3071 = vmatpush1.bf16.msra.mxu0 %v1825
    %3072 = vmatprep.subr.bf16.mxu0 %v1818
    %3073 = vmatpush1.bf16.msra.mxu0 %v1817
    %3074 = vmatprep.subr.bf16.mxu0 %v1810
    %3075 = vmatpush1.bf16.msra.mxu0 %v1809
    %3076 = vmatprep.subr.bf16.mxu0 %v1802
    %3077 = vmatpush1.bf16.msra.mxu0 %v1801
    %3078 = vmatprep.subr.bf16.mxu0 %v1794
    %3079 = vmatpush1.bf16.msra.mxu0 %v1793
    %3080 = vmatprep.subr.bf16.mxu0 %v1786
    %3081 = vmatpush1.bf16.msra.mxu0 %v1785
    %3082 = vmatprep.subr.bf16.mxu0 %v1778
    %3083 = vmatpush1.bf16.msra.mxu0 %v1777
    %3084 = vmatprep.subr.bf16.mxu0 %v1898
    %3085 = vmatpush2.bf16.msra.mxu0 %v1897
    %3086 = vmatprep.subr.bf16.mxu0 %v1890
    %3087 = vmatpush2.bf16.msra.mxu0 %v1889
    %3088 = vmatprep.subr.bf16.mxu0 %v1882
    %3089 = vmatpush2.bf16.msra.mxu0 %v1881
    %3090 = vmatprep.subr.bf16.mxu0 %v1874
    %3091 = vmatpush2.bf16.msra.mxu0 %v1873
    %3092 = vmatprep.subr.bf16.mxu0 %v1866
    %3093 = vmatpush2.bf16.msra.mxu0 %v1865
    %3094 = vmatprep.subr.bf16.mxu0 %v1858
    %3095 = vmatpush2.bf16.msra.mxu0 %v1857
    %3096 = vmatprep.subr.bf16.mxu0 %v1850
    %3097 = vmatpush2.bf16.msra.mxu0 %v1849
    %3098 = vmatprep.subr.bf16.mxu0 %v1842
    %3099 = vmatpush2.bf16.msra.mxu0 %v1841
    %3100 = vmatprep.mubr.bf16.mxu0 %v583
    %3101 = vmatmul.mubr.bf16.gmra.mxu0 %v582
    %v3102 = vpop.f32.mrf.mxu0
    %v3103 = vadd.f32 %v558, %v3102
    %v3104 = vpop.f32.mrf.mxu0
    %v3105 = vadd.f32 %v562, %v3104
    %v3106 = vpop.f32.mrf.mxu0
    %v3107 = vpop.f32.mrf.mxu0
    %3108 = vdwg.mxu0
    %3109 = vmatprep.subr.bf16.mxu0 %v1962
    %3110 = vmatpush1.bf16.msra.mxu0 %v1961
    %3111 = vmatprep.subr.bf16.mxu0 %v1954
    %3112 = vmatpush1.bf16.msra.mxu0 %v1953
    %3113 = vmatprep.subr.bf16.mxu0 %v1946
    %3114 = vmatpush1.bf16.msra.mxu0 %v1945
    %3115 = vmatprep.subr.bf16.mxu0 %v1938
    %3116 = vmatpush1.bf16.msra.mxu0 %v1937
    %3117 = vmatprep.subr.bf16.mxu0 %v1930
    %3118 = vmatpush1.bf16.msra.mxu0 %v1929
    %3119 = vmatprep.subr.bf16.mxu0 %v1922
    %3120 = vmatpush1.bf16.msra.mxu0 %v1921
    %3121 = vmatprep.subr.bf16.mxu0 %v1914
    %3122 = vmatpush1.bf16.msra.mxu0 %v1913
    %3123 = vmatprep.subr.bf16.mxu0 %v1906
    %3124 = vmatpush1.bf16.msra.mxu0 %v1905
    %3125 = vmatprep.subr.bf16.mxu0 %v2026
    %3126 = vmatpush2.bf16.msra.mxu0 %v2025
    %3127 = vmatprep.subr.bf16.mxu0 %v2018
    %3128 = vmatpush2.bf16.msra.mxu0 %v2017
    %3129 = vmatprep.subr.bf16.mxu0 %v2010
    %3130 = vmatpush2.bf16.msra.mxu0 %v2009
    %3131 = vmatprep.subr.bf16.mxu0 %v2002
    %3132 = vmatpush2.bf16.msra.mxu0 %v2001
    %3133 = vmatprep.subr.bf16.mxu0 %v1994
    %3134 = vmatpush2.bf16.msra.mxu0 %v1993
    %3135 = vmatprep.subr.bf16.mxu0 %v1986
    %3136 = vmatpush2.bf16.msra.mxu0 %v1985
    %3137 = vmatprep.subr.bf16.mxu0 %v1978
    %3138 = vmatpush2.bf16.msra.mxu0 %v1977
    %3139 = vmatprep.subr.bf16.mxu0 %v1970
    %3140 = vmatpush2.bf16.msra.mxu0 %v1969
    %3141 = vmatprep.mubr.bf16.mxu0 %v585
    %3142 = vmatmul.mubr.bf16.gmra.mxu0 %v584
    %v3143 = vpop.f32.mrf.mxu0
    %v3144 = vadd.f32 %v3103, %v3143
    %v3145 = vpop.f32.mrf.mxu0
    %v3146 = vadd.f32 %v3105, %v3145
    %v3147 = vpop.f32.mrf.mxu0
    %v3148 = vpop.f32.mrf.mxu0
    %3149 = vdwg.mxu0
    %3150 = vmatprep.subr.bf16.mxu0 %v2090
    %3151 = vmatpush1.bf16.msra.mxu0 %v2089
    %3152 = vmatprep.subr.bf16.mxu0 %v2082
    %3153 = vmatpush1.bf16.msra.mxu0 %v2081
    %3154 = vmatprep.subr.bf16.mxu0 %v2074
    %3155 = vmatpush1.bf16.msra.mxu0 %v2073
    %3156 = vmatprep.subr.bf16.mxu0 %v2066
    %3157 = vmatpush1.bf16.msra.mxu0 %v2065
    %3158 = vmatprep.subr.bf16.mxu0 %v2058
    %3159 = vmatpush1.bf16.msra.mxu0 %v2057
    %3160 = vmatprep.subr.bf16.mxu0 %v2050
    %3161 = vmatpush1.bf16.msra.mxu0 %v2049
    %3162 = vmatprep.subr.bf16.mxu0 %v2042
    %3163 = vmatpush1.bf16.msra.mxu0 %v2041
    %3164 = vmatprep.subr.bf16.mxu0 %v2034
    %3165 = vmatpush1.bf16.msra.mxu0 %v2033
    %3166 = vmatprep.subr.bf16.mxu0 %v2154
    %3167 = vmatpush2.bf16.msra.mxu0 %v2153
    %3168 = vmatprep.subr.bf16.mxu0 %v2146
    %3169 = vmatpush2.bf16.msra.mxu0 %v2145
    %3170 = vmatprep.subr.bf16.mxu0 %v2138
    %3171 = vmatpush2.bf16.msra.mxu0 %v2137
    %3172 = vmatprep.subr.bf16.mxu0 %v2130
    %3173 = vmatpush2.bf16.msra.mxu0 %v2129
    %3174 = vmatprep.subr.bf16.mxu0 %v2122
    %3175 = vmatpush2.bf16.msra.mxu0 %v2121
    %3176 = vmatprep.subr.bf16.mxu0 %v2114
    %3177 = vmatpush2.bf16.msra.mxu0 %v2113
    %3178 = vmatprep.subr.bf16.mxu0 %v2106
    %3179 = vmatpush2.bf16.msra.mxu0 %v2105
    %3180 = vmatprep.subr.bf16.mxu0 %v2098
    %3181 = vmatpush2.bf16.msra.mxu0 %v2097
    %3182 = vmatprep.mubr.bf16.mxu0 %v587
    %3183 = vmatmul.mubr.bf16.gmra.mxu0 %v586
    %v3184 = vpop.f32.mrf.mxu0
    %v3185 = vadd.f32 %v3144, %v3184
    %v3186 = vpop.f32.mrf.mxu0
    %v3187 = vadd.f32 %v3146, %v3186
    %v3188 = vpop.f32.mrf.mxu0
    %v3189 = vpop.f32.mrf.mxu0
    %3190 = vdwg.mxu0
    %3191 = vmatprep.subr.bf16.mxu0 0
    %3192 = vmatpush1.bf16.msra.mxu0 0
    %3193 = vmatprep.subr.bf16.mxu0 0
    %3194 = vmatpush1.bf16.msra.mxu0 0
    %3195 = vmatprep.subr.bf16.mxu0 0
    %3196 = vmatpush1.bf16.msra.mxu0 0
    %3197 = vmatprep.subr.bf16.mxu0 0
    %3198 = vmatpush1.bf16.msra.mxu0 0
    %3199 = vmatprep.subr.bf16.mxu0 0
    %3200 = vmatpush1.bf16.msra.mxu0 0
    %3201 = vmatprep.subr.bf16.mxu0 0
    %3202 = vmatpush1.bf16.msra.mxu0 0
    %3203 = vmatprep.subr.bf16.mxu0 0
    %3204 = vmatpush1.bf16.msra.mxu0 0
    %3205 = vmatprep.subr.bf16.mxu0 %v2574
    %3206 = vmatpush1.bf16.msra.mxu0 %v2571
    %3207 = vmatprep.subr.bf16.mxu0 0
    %3208 = vmatpush2.bf16.msra.mxu0 0
    %3209 = vmatprep.subr.bf16.mxu0 0
    %3210 = vmatpush2.bf16.msra.mxu0 0
    %3211 = vmatprep.subr.bf16.mxu0 0
    %3212 = vmatpush2.bf16.msra.mxu0 0
    %3213 = vmatprep.subr.bf16.mxu0 0
    %3214 = vmatpush2.bf16.msra.mxu0 0
    %3215 = vmatprep.subr.bf16.mxu0 0
    %3216 = vmatpush2.bf16.msra.mxu0 0
    %3217 = vmatprep.subr.bf16.mxu0 0
    %3218 = vmatpush2.bf16.msra.mxu0 0
    %3219 = vmatprep.subr.bf16.mxu0 0
    %3220 = vmatpush2.bf16.msra.mxu0 0
    %3221 = vmatprep.subr.bf16.mxu0 0
    %3222 = vmatpush2.bf16.msra.mxu0 0
    %3223 = vmatprep.mubr.bf16.mxu0 0
    %3224 = vmatmul.mubr.bf16.gmra.mxu0 %v2549
    %v3225 = vpop.f32.mrf.mxu0
    %v3226 = vadd.f32 %v3185, %v3225
    %v3227 = vpop.f32.mrf.mxu0
    %v3228 = vadd.f32 %v3187, %v3227
    %v3229 = vpop.f32.mrf.mxu0
    %v3230 = vpop.f32.mrf.mxu0
    %3231 = vdwg.mxu0
    %v3232 = vmax.f32 %v2734, %v2736
    %v3233 = vmax.f32 %v3232, %v2898
    %v3234 = vmax.f32 %v3233, %v2900
    %v3235 = vmax.f32 %v3234, %v3062
    %v3236 = vmax.f32 %v3235, %v3064
    %v3237 = vmax.f32 %v3236, %v3226
    %v3238 = vmax.f32 %v3237, %v3228
    %v3239 = vmax.f32 %v3238, 0.0
    %v3240 = vpack.c.bf16 %v3239, %v3239
    %v3241 = vld [vmem:[%s3] sm:$0xf]
    %v3242 = vld [vmem:[%s3 + $0x4] sm:$0xf]
    %v3243 = vld [vmem:[%s3 + $0x8] sm:$0xf]
    %v3244 = vld [vmem:[%s3 + $0xc] sm:$0xf]
    %v3245 = vld [vmem:[%s3 + $0x10] sm:$0xf]
    %v3246 = vld [vmem:[%s3 + $0x14] sm:$0xf]
    %v3247 = vld [vmem:[%s3 + $0x18] sm:$0xf]
    %v3248 = vld [vmem:[%s3 + $0x1c] sm:$0xf]
    %v3249 = vld [vmem:[%s3 + $0x20] sm:$0xf]
    %v3250 = vld [vmem:[%s3 + $0x24] sm:$0xf]
    %v3251 = vld [vmem:[%s3 + $0x28] sm:$0xf]
    %v3252 = vld [vmem:[%s3 + $0x2c] sm:$0xf]
    %v3253 = vld [vmem:[%s3 + $0x30] sm:$0xf]
    %v3254 = vld [vmem:[%s3 + $0x34] sm:$0xf]
    %v3255 = vld [vmem:[%s3 + $0x38] sm:$0xf]
    %v3256 = vld [vmem:[%s3 + $0x3c] sm:$0xf]
    %v3257 = vld [vmem:[#allocation8] sm:$0x1]
    %v3259 = vlaneseq
    %v3260 = vshrl.u32 %v3259, 7
    %v3261 = vsub.s32 0, %v3260
    %v3262 = vrot.slane %v3257, %v3261
    %v3280 = vunpack.c.l.b16 %v3241
    %v3281 = vunpack.c.l.b16 %v3242
    %v3282 = vunpack.c.l.b16 %v3243
    %v3283 = vunpack.c.l.b16 %v3244
    %v3284 = vunpack.c.l.b16 %v3245
    %v3285 = vunpack.c.l.b16 %v3246
    %v3286 = vunpack.c.l.b16 %v3247
    %v3287 = vunpack.c.l.b16 %v3248
    %v3288 = vunpack.c.l.b16 %v3249
    %v3289 = vunpack.c.l.b16 %v3250
    %v3290 = vunpack.c.l.b16 %v3251
    %v3291 = vunpack.c.l.b16 %v3252
    %v3292 = vunpack.c.l.b16 %v3253
    %v3293 = vunpack.c.l.b16 %v3254
    %v3294 = vunpack.c.l.b16 %v3255
    %v3295 = vunpack.c.l.b16 %v3256
    %v3296 = vpack.c.b16 %v3281, %v3280
    %v3297 = vpack.c.b16 %v3283, %v3282
    %v3298 = vpack.c.b16 %v3285, %v3284
    %v3299 = vpack.c.b16 %v3287, %v3286
    %v3300 = vpack.c.b16 %v3289, %v3288
    %v3301 = vpack.c.b16 %v3291, %v3290
    %v3302 = vpack.c.b16 %v3293, %v3292
    %v3303 = vpack.c.b16 %v3295, %v3294
    %3312 = vmatprep.subr.bf16.mxu0 0
    %3313 = vmatpush1.bf16.msra.mxu0 %v3303
    %3314 = vmatprep.subr.bf16.mxu0 0
    %3315 = vmatpush1.bf16.msra.mxu0 %v3302
    %3316 = vmatprep.subr.bf16.mxu0 0
    %3317 = vmatpush1.bf16.msra.mxu0 %v3301
    %3318 = vmatprep.subr.bf16.mxu0 0
    %3319 = vmatpush1.bf16.msra.mxu0 %v3300
    %3320 = vmatprep.subr.bf16.mxu0 0
    %3321 = vmatpush1.bf16.msra.mxu0 %v3299
    %3322 = vmatprep.subr.bf16.mxu0 0
    %3323 = vmatpush1.bf16.msra.mxu0 %v3298
    %3324 = vmatprep.subr.bf16.mxu0 0
    %3325 = vmatpush1.bf16.msra.mxu0 %v3297
    %3326 = vmatprep.subr.bf16.mxu0 0
    %3327 = vmatpush1.bf16.msra.mxu0 %v3296
    %3328 = vmatprep.subr.bf16.mxu0 0
    %3329 = vmatpush2.bf16.msra.mxu0 0
    %3330 = vmatprep.subr.bf16.mxu0 0
    %3331 = vmatpush2.bf16.msra.mxu0 0
    %3332 = vmatprep.subr.bf16.mxu0 0
    %3333 = vmatpush2.bf16.msra.mxu0 0
    %3334 = vmatprep.subr.bf16.mxu0 0
    %3335 = vmatpush2.bf16.msra.mxu0 0
    %3336 = vmatprep.subr.bf16.mxu0 0
    %3337 = vmatpush2.bf16.msra.mxu0 0
    %3338 = vmatprep.subr.bf16.mxu0 0
    %3339 = vmatpush2.bf16.msra.mxu0 0
    %3340 = vmatprep.subr.bf16.mxu0 0
    %3341 = vmatpush2.bf16.msra.mxu0 0
    %3342 = vmatprep.subr.bf16.mxu0 0
    %3343 = vmatpush2.bf16.msra.mxu0 0
    %3344 = vmatprep.mubr.bf16.mxu0 0
    %3345 = vmatmul.mubr.bf16.gmra.mxu0 %v3240
    %v3346 = vpop.f32.mrf.mxu0
    %v3347 = vadd.f32 %v3262, %v3346
    %v3348 = vpop.f32.mrf.mxu0
    %v3349 = vpop.f32.mrf.mxu0
    %v3350 = vpop.f32.mrf.mxu0
    %3351 = vdwg.mxu0
    %v3352 = vmax.f32 %v3347, 0.0
    %v3353 = vpack.c.bf16 %v3352, %v3352
    %v3354 = vld [vmem:[#allocation10] sm:$0xff]
    %v3355 = vld [vmem:[#allocation10 + $0x8] sm:$0xff]
    %v3356 = vld [vmem:[#allocation10 + $0x10] sm:$0xf]
    %v3357 = vld [vmem:[#allocation10 + $0x14] sm:$0xff]
    %v3358 = vld [vmem:[#allocation10 + $0x1c] sm:$0xff]
    %v3359 = vld [vmem:[#allocation10 + $0x24] sm:$0xf]
    %v3360 = vld [vmem:[#allocation10 + $0x28] sm:$0xff]
    %v3361 = vld [vmem:[#allocation10 + $0x30] sm:$0xff]
    %v3362 = vld [vmem:[#allocation10 + $0x38] sm:$0xf]
    %v3363 = vld [vmem:[#allocation10 + $0x3c] sm:$0xff]
    %v3364 = vld [vmem:[#allocation10 + $0x44] sm:$0xff]
    %v3365 = vld [vmem:[#allocation10 + $0x4c] sm:$0xf]
    %v3366 = vld [vmem:[#allocation10 + $0x50] sm:$0xff]
    %v3367 = vld [vmem:[#allocation10 + $0x58] sm:$0xff]
    %v3368 = vld [vmem:[#allocation10 + $0x60] sm:$0xf]
    %v3369 = vld [vmem:[#allocation10 + $0x64] sm:$0xff]
    %v3370 = vld [vmem:[#allocation10 + $0x6c] sm:$0xff]
    %v3371 = vld [vmem:[#allocation10 + $0x74] sm:$0xf]
    %v3372 = vld [vmem:[#allocation10 + $0x78] sm:$0xff]
    %v3373 = vld [vmem:[#allocation10 + $0x80] sm:$0xff]
    %v3374 = vld [vmem:[#allocation10 + $0x88] sm:$0xf]
    %v3375 = vld [vmem:[#allocation10 + $0x8c] sm:$0xff]
    %v3376 = vld [vmem:[#allocation10 + $0x94] sm:$0xff]
    %v3377 = vld [vmem:[#allocation10 + $0x9c] sm:$0xf]
    %v3378 = vld [vmem:[#allocation10 + $0xa0] sm:$0xff]
    %v3379 = vld [vmem:[#allocation10 + $0xa8] sm:$0xff]
    %v3380 = vld [vmem:[#allocation10 + $0xb0] sm:$0xf]
    %v3381 = vld [vmem:[#allocation10 + $0xb4] sm:$0xff]
    %v3382 = vld [vmem:[#allocation10 + $0xbc] sm:$0xff]
    %v3383 = vld [vmem:[#allocation10 + $0xc4] sm:$0xf]
    %v3384 = vld [vmem:[#allocation10 + $0xc8] sm:$0xff]
    %v3385 = vld [vmem:[#allocation10 + $0xd0] sm:$0xff]
    %v3386 = vld [vmem:[#allocation10 + $0xd8] sm:$0xf]
    %v3387 = vld [vmem:[#allocation10 + $0xdc] sm:$0x11]
    %v3388 = vld [vmem:[#allocation10 + $0xe4] sm:$0x11]
    %v3389 = vld [vmem:[#allocation10 + $0xec] sm:$0x1]
    %v3390 = vld [vmem:[#allocation11] sm:$0x1f]
    %v3392 = vlaneseq
    %v3393 = vshrl.u32 %v3392, 7
    %v3394 = vsub.s32 0, %v3393
    %v3395 = vrot.slane %v3390, %v3394
    %v3396 = vlaneseq
    %v3397 = vshrl.u32 %v3396, 7
    %v3398 = vsub.s32 1, %v3397
    %v3399 = vrot.slane %v3390, %v3398
    %v3400 = vlaneseq
    %v3401 = vshrl.u32 %v3400, 7
    %v3402 = vsub.s32 2, %v3401
    %v3403 = vrot.slane %v3390, %v3402
    %v3404 = vlaneseq
    %v3405 = vshrl.u32 %v3404, 7
    %v3406 = vsub.s32 3, %v3405
    %v3407 = vrot.slane %v3390, %v3406
    %v3408 = vlaneseq
    %v3409 = vshrl.u32 %v3408, 7
    %v3410 = vsub.s32 4, %v3409
    %v3411 = vrot.slane %v3390, %v3410
    %v3453 = vunpack.c.l.b16 %v3354
    %v3454 = vunpack.c.h.b16 %v3354
    %v3455 = vunpack.c.l.b16 %v3355
    %v3456 = vunpack.c.h.b16 %v3355
    %v3457 = vunpack.c.l.b16 %v3356
    %v3458 = vunpack.c.l.b16 %v3357
    %v3459 = vunpack.c.h.b16 %v3357
    %v3460 = vunpack.c.l.b16 %v3358
    %v3461 = vunpack.c.h.b16 %v3358
    %v3462 = vunpack.c.l.b16 %v3359
    %v3463 = vunpack.c.l.b16 %v3360
    %v3464 = vunpack.c.h.b16 %v3360
    %v3465 = vunpack.c.l.b16 %v3361
    %v3466 = vunpack.c.h.b16 %v3361
    %v3467 = vunpack.c.l.b16 %v3362
    %v3468 = vunpack.c.l.b16 %v3363
    %v3469 = vunpack.c.h.b16 %v3363
    %v3470 = vunpack.c.l.b16 %v3364
    %v3471 = vunpack.c.h.b16 %v3364
    %v3472 = vunpack.c.l.b16 %v3365
    %v3473 = vunpack.c.l.b16 %v3366
    %v3474 = vunpack.c.h.b16 %v3366
    %v3475 = vunpack.c.l.b16 %v3367
    %v3476 = vunpack.c.h.b16 %v3367
    %v3477 = vunpack.c.l.b16 %v3368
    %v3478 = vunpack.c.l.b16 %v3369
    %v3479 = vunpack.c.h.b16 %v3369
    %v3480 = vunpack.c.l.b16 %v3370
    %v3481 = vunpack.c.h.b16 %v3370
    %v3482 = vunpack.c.l.b16 %v3371
    %v3483 = vunpack.c.l.b16 %v3372
    %v3484 = vunpack.c.h.b16 %v3372
    %v3485 = vunpack.c.l.b16 %v3373
    %v3486 = vunpack.c.h.b16 %v3373
    %v3487 = vunpack.c.l.b16 %v3374
    %v3488 = vunpack.c.l.b16 %v3375
    %v3489 = vunpack.c.h.b16 %v3375
    %v3490 = vunpack.c.l.b16 %v3376
    %v3491 = vunpack.c.h.b16 %v3376
    %v3492 = vunpack.c.l.b16 %v3377
    %v3493 = vunpack.c.l.b16 %v3378
    %v3494 = vunpack.c.h.b16 %v3378
    %v3495 = vunpack.c.l.b16 %v3379
    %v3496 = vunpack.c.h.b16 %v3379
    %v3497 = vunpack.c.l.b16 %v3380
    %v3498 = vunpack.c.l.b16 %v3381
    %v3499 = vunpack.c.h.b16 %v3381
    %v3500 = vunpack.c.l.b16 %v3382
    %v3501 = vunpack.c.h.b16 %v3382
    %v3502 = vunpack.c.l.b16 %v3383
    %v3503 = vunpack.c.l.b16 %v3384
    %v3504 = vunpack.c.h.b16 %v3384
    %v3505 = vunpack.c.l.b16 %v3385
    %v3506 = vunpack.c.h.b16 %v3385
    %v3507 = vunpack.c.l.b16 %v3386
    %v3508 = vunpack.c.l.b16 %v3387
    %v3509 = vunpack.c.h.b16 %v3387
    %v3510 = vunpack.c.l.b16 %v3388
    %v3511 = vunpack.c.h.b16 %v3388
    %v3512 = vunpack.c.l.b16 %v3389
    %v3513 = vpack.c.b16 %v3458, %v3453
    %v3514 = vpack.c.b16 %v3459, %v3454
    %v3515 = vpack.c.b16 %v3460, %v3455
    %v3516 = vpack.c.b16 %v3461, %v3456
    %v3517 = vpack.c.b16 %v3462, %v3457
    %v3518 = vpack.c.b16 %v3468, %v3463
    %v3519 = vpack.c.b16 %v3469, %v3464
    %v3520 = vpack.c.b16 %v3470, %v3465
    %v3521 = vpack.c.b16 %v3471, %v3466
    %v3522 = vpack.c.b16 %v3472, %v3467
    %v3523 = vpack.c.b16 %v3478, %v3473
    %v3524 = vpack.c.b16 %v3479, %v3474
    %v3525 = vpack.c.b16 %v3480, %v3475
    %v3526 = vpack.c.b16 %v3481, %v3476
    %v3527 = vpack.c.b16 %v3482, %v3477
    %v3528 = vpack.c.b16 %v3488, %v3483
    %v3529 = vpack.c.b16 %v3489, %v3484
    %v3530 = vpack.c.b16 %v3490, %v3485
    %v3531 = vpack.c.b16 %v3491, %v3486
    %v3532 = vpack.c.b16 %v3492, %v3487
    %v3533 = vpack.c.b16 %v3498, %v3493
    %v3534 = vpack.c.b16 %v3499, %v3494
    %v3535 = vpack.c.b16 %v3500, %v3495
    %v3536 = vpack.c.b16 %v3501, %v3496
    %v3537 = vpack.c.b16 %v3502, %v3497
    %v3538 = vpack.c.b16 %v3508, %v3503
    %v3539 = vpack.c.b16 %v3509, %v3504
    %v3540 = vpack.c.b16 %v3510, %v3505
    %v3541 = vpack.c.b16 %v3511, %v3506
    %v3542 = vpack.c.b16 %v3512, %v3507
    %vm3568 = vcmask 736256
    %v3570 = vsel %vm3568, %v3353, 0
    %vm3572 = vcmask 1044480
    %v3574 = vsel %vm3572, %v3538, 0
    %v3577 = vsel %vm3572, %v3539, 0
    %v3580 = vsel %vm3572, %v3540, 0
    %v3583 = vsel %vm3572, %v3541, 0
    %v3586 = vsel %vm3572, %v3542, 0
    %3588 = vmatprep.subr.bf16.mxu0 0
    %3589 = vmatpush1.bf16.msra.mxu0 0
    %3590 = vmatprep.subr.bf16.mxu0 0
    %3591 = vmatpush1.bf16.msra.mxu0 0
    %3592 = vmatprep.subr.bf16.mxu0 %v3577
    %3593 = vmatpush1.bf16.msra.mxu0 %v3574
    %3594 = vmatprep.subr.bf16.mxu0 %v3534
    %3595 = vmatpush1.bf16.msra.mxu0 %v3533
    %3596 = vmatprep.subr.bf16.mxu0 %v3529
    %3597 = vmatpush1.bf16.msra.mxu0 %v3528
    %3598 = vmatprep.subr.bf16.mxu0 %v3524
    %3599 = vmatpush1.bf16.msra.mxu0 %v3523
    %3600 = vmatprep.subr.bf16.mxu0 %v3519
    %3601 = vmatpush1.bf16.msra.mxu0 %v3518
    %3602 = vmatprep.subr.bf16.mxu0 %v3514
    %3603 = vmatpush1.bf16.msra.mxu0 %v3513
    %3604 = vmatprep.subr.bf16.mxu0 0
    %3605 = vmatpush2.bf16.msra.mxu0 0
    %3606 = vmatprep.subr.bf16.mxu0 0
    %3607 = vmatpush2.bf16.msra.mxu0 0
    %3608 = vmatprep.subr.bf16.mxu0 0
    %3609 = vmatpush2.bf16.msra.mxu0 0
    %3610 = vmatprep.subr.bf16.mxu0 0
    %3611 = vmatpush2.bf16.msra.mxu0 0
    %3612 = vmatprep.subr.bf16.mxu0 0
    %3613 = vmatpush2.bf16.msra.mxu0 0
    %3614 = vmatprep.subr.bf16.mxu0 0
    %3615 = vmatpush2.bf16.msra.mxu0 0
    %3616 = vmatprep.subr.bf16.mxu0 0
    %3617 = vmatpush2.bf16.msra.mxu0 0
    %3618 = vmatprep.subr.bf16.mxu0 0
    %3619 = vmatpush2.bf16.msra.mxu0 0
    %3620 = vmatprep.mubr.bf16.mxu0 0
    %3621 = vmatmul.mubr.bf16.gmra.mxu0 %v3570
    %v3622 = vpop.f32.mrf.mxu0
    %v3623 = vadd.f32 %v3395, %v3622
    %v3624 = vpop.f32.mrf.mxu0
    %v3625 = vadd.f32 %v3399, %v3624
    %v3626 = vpop.f32.mrf.mxu0
    %v3627 = vpop.f32.mrf.mxu0
    %3628 = vdwg.mxu0
    %3629 = vmatprep.subr.bf16.mxu0 0
    %3630 = vmatpush1.bf16.msra.mxu0 0
    %3631 = vmatprep.subr.bf16.mxu0 0
    %3632 = vmatpush1.bf16.msra.mxu0 0
    %3633 = vmatprep.subr.bf16.mxu0 %v3583
    %3634 = vmatpush1.bf16.msra.mxu0 %v3580
    %3635 = vmatprep.subr.bf16.mxu0 %v3536
    %3636 = vmatpush1.bf16.msra.mxu0 %v3535
    %3637 = vmatprep.subr.bf16.mxu0 %v3531
    %3638 = vmatpush1.bf16.msra.mxu0 %v3530
    %3639 = vmatprep.subr.bf16.mxu0 %v3526
    %3640 = vmatpush1.bf16.msra.mxu0 %v3525
    %3641 = vmatprep.subr.bf16.mxu0 %v3521
    %3642 = vmatpush1.bf16.msra.mxu0 %v3520
    %3643 = vmatprep.subr.bf16.mxu0 %v3516
    %3644 = vmatpush1.bf16.msra.mxu0 %v3515
    %3645 = vmatprep.subr.bf16.mxu0 0
    %3646 = vmatpush2.bf16.msra.mxu0 0
    %3647 = vmatprep.subr.bf16.mxu0 0
    %3648 = vmatpush2.bf16.msra.mxu0 0
    %3649 = vmatprep.subr.bf16.mxu0 0
    %3650 = vmatpush2.bf16.msra.mxu0 0
    %3651 = vmatprep.subr.bf16.mxu0 0
    %3652 = vmatpush2.bf16.msra.mxu0 0
    %3653 = vmatprep.subr.bf16.mxu0 0
    %3654 = vmatpush2.bf16.msra.mxu0 0
    %3655 = vmatprep.subr.bf16.mxu0 0
    %3656 = vmatpush2.bf16.msra.mxu0 0
    %3657 = vmatprep.subr.bf16.mxu0 0
    %3658 = vmatpush2.bf16.msra.mxu0 0
    %3659 = vmatprep.subr.bf16.mxu0 0
    %3660 = vmatpush2.bf16.msra.mxu0 0
    %3661 = vmatprep.mubr.bf16.mxu0 0
    %3662 = vmatmul.mubr.bf16.gmra.mxu0 %v3570
    %v3663 = vpop.f32.mrf.mxu0
    %v3664 = vadd.f32 %v3403, %v3663
    %v3665 = vpop.f32.mrf.mxu0
    %v3666 = vadd.f32 %v3407, %v3665
    %v3667 = vpop.f32.mrf.mxu0
    %v3668 = vpop.f32.mrf.mxu0
    %3669 = vdwg.mxu0
    %3670 = vmatprep.subr.bf16.mxu0 0
    %3671 = vmatpush1.bf16.msra.mxu0 0
    %3672 = vmatprep.subr.bf16.mxu0 0
    %3673 = vmatpush1.bf16.msra.mxu0 0
    %3674 = vmatprep.subr.bf16.mxu0 0
    %3675 = vmatpush1.bf16.msra.mxu0 %v3586
    %3676 = vmatprep.subr.bf16.mxu0 0
    %3677 = vmatpush1.bf16.msra.mxu0 %v3537
    %3678 = vmatprep.subr.bf16.mxu0 0
    %3679 = vmatpush1.bf16.msra.mxu0 %v3532
    %3680 = vmatprep.subr.bf16.mxu0 0
    %3681 = vmatpush1.bf16.msra.mxu0 %v3527
    %3682 = vmatprep.subr.bf16.mxu0 0
    %3683 = vmatpush1.bf16.msra.mxu0 %v3522
    %3684 = vmatprep.subr.bf16.mxu0 0
    %3685 = vmatpush1.bf16.msra.mxu0 %v3517
    %3686 = vmatprep.subr.bf16.mxu0 0
    %3687 = vmatpush2.bf16.msra.mxu0 0
    %3688 = vmatprep.subr.bf16.mxu0 0
    %3689 = vmatpush2.bf16.msra.mxu0 0
    %3690 = vmatprep.subr.bf16.mxu0 0
    %3691 = vmatpush2.bf16.msra.mxu0 0
    %3692 = vmatprep.subr.bf16.mxu0 0
    %3693 = vmatpush2.bf16.msra.mxu0 0
    %3694 = vmatprep.subr.bf16.mxu0 0
    %3695 = vmatpush2.bf16.msra.mxu0 0
    %3696 = vmatprep.subr.bf16.mxu0 0
    %3697 = vmatpush2.bf16.msra.mxu0 0
    %3698 = vmatprep.subr.bf16.mxu0 0
    %3699 = vmatpush2.bf16.msra.mxu0 0
    %3700 = vmatprep.subr.bf16.mxu0 0
    %3701 = vmatpush2.bf16.msra.mxu0 0
    %3702 = vmatprep.mubr.bf16.mxu0 0
    %3703 = vmatmul.mubr.bf16.gmra.mxu0 %v3570
    %v3704 = vpop.f32.mrf.mxu0
    %v3705 = vadd.f32 %v3411, %v3704
    %v3706 = vpop.f32.mrf.mxu0
    %v3707 = vpop.f32.mrf.mxu0
    %v3708 = vpop.f32.mrf.mxu0
    %3709 = vdwg.mxu0
    %v3710 = vpack.c.bf16 %v3623, %v3623
    %v3711 = vpack.c.bf16 %v3625, %v3625
    %v3712 = vpack.c.bf16 %v3664, %v3664
    %v3713 = vpack.c.bf16 %v3666, %v3666
    %v3714 = vpack.c.bf16 %v3705, %v3705
    %v3715 = vld [vmem:[#allocation13] sm:$0xf]
    %v3716 = vld [vmem:[#allocation13 + $0x4] sm:$0xf]
    %v3717 = vld [vmem:[#allocation13 + $0x8] sm:$0xf]
    %v3718 = vld [vmem:[#allocation13 + $0xc] sm:$0xf]
    %v3719 = vld [vmem:[#allocation13 + $0x10] sm:$0xf]
    %v3720 = vld [vmem:[#allocation13 + $0x14] sm:$0xf]
    %v3721 = vld [vmem:[#allocation13 + $0x18] sm:$0xf]
    %v3722 = vld [vmem:[#allocation13 + $0x1c] sm:$0xf]
    %v3723 = vld [vmem:[#allocation13 + $0x20] sm:$0xf]
    %v3724 = vld [vmem:[#allocation13 + $0x24] sm:$0xf]
    %v3725 = vld [vmem:[#allocation13 + $0x28] sm:$0xf]
    %v3726 = vld [vmem:[#allocation13 + $0x2c] sm:$0xf]
    %v3727 = vld [vmem:[#allocation13 + $0x30] sm:$0xf]
    %v3728 = vld [vmem:[#allocation13 + $0x34] sm:$0xf]
    %v3729 = vld [vmem:[#allocation13 + $0x38] sm:$0xf]
    %v3730 = vld [vmem:[#allocation13 + $0x3c] sm:$0xf]
    %v3731 = vld [vmem:[#allocation13 + $0x40] sm:$0xf]
    %v3732 = vld [vmem:[#allocation13 + $0x44] sm:$0xf]
    %v3733 = vld [vmem:[#allocation13 + $0x48] sm:$0xf]
    %v3734 = vld [vmem:[#allocation13 + $0x4c] sm:$0xf]
    %v3735 = vld [vmem:[#allocation13 + $0x50] sm:$0xf]
    %v3736 = vld [vmem:[#allocation13 + $0x54] sm:$0xf]
    %v3737 = vld [vmem:[#allocation13 + $0x58] sm:$0xf]
    %v3738 = vld [vmem:[#allocation13 + $0x5c] sm:$0xf]
    %v3739 = vld [vmem:[#allocation13 + $0x60] sm:$0xf]
    %v3740 = vld [vmem:[#allocation13 + $0x64] sm:$0xf]
    %v3741 = vld [vmem:[#allocation13 + $0x68] sm:$0xf]
    %v3742 = vld [vmem:[#allocation13 + $0x6c] sm:$0xf]
    %v3743 = vld [vmem:[#allocation13 + $0x70] sm:$0xf]
    %v3744 = vld [vmem:[#allocation13 + $0x74] sm:$0xf]
    %v3745 = vld [vmem:[#allocation13 + $0x78] sm:$0xf]
    %v3746 = vld [vmem:[#allocation13 + $0x7c] sm:$0xf]
    %v3747 = vld [vmem:[#allocation13 + $0x80] sm:$0xf]
    %v3748 = vld [vmem:[#allocation13 + $0x84] sm:$0xf]
    %v3749 = vld [vmem:[#allocation13 + $0x88] sm:$0xf]
    %v3750 = vld [vmem:[#allocation13 + $0x8c] sm:$0xf]
    %v3751 = vld [vmem:[#allocation13 + $0x90] sm:$0xf]
    %v3752 = vld [vmem:[#allocation13 + $0x94] sm:$0xf]
    %v3753 = vld [vmem:[#allocation13 + $0x98] sm:$0xf]
    %v3754 = vld [vmem:[#allocation13 + $0x9c] sm:$0xf]
    %v3755 = vld [vmem:[#allocation13 + $0xa0] sm:$0xf]
    %v3756 = vld [vmem:[#allocation13 + $0xa4] sm:$0xf]
    %v3757 = vld [vmem:[#allocation13 + $0xa8] sm:$0xf]
    %v3758 = vld [vmem:[#allocation13 + $0xac] sm:$0xf]
    %v3759 = vld [vmem:[#allocation13 + $0xb0] sm:$0xf]
    %v3760 = vld [vmem:[#allocation13 + $0xb4] sm:$0xf]
    %v3761 = vld [vmem:[#allocation13 + $0xb8] sm:$0xf]
    %v3762 = vld [vmem:[#allocation13 + $0xbc] sm:$0xf]
    %v3763 = vld [vmem:[#allocation13 + $0xc0] sm:$0xf]
    %v3764 = vld [vmem:[#allocation13 + $0xc4] sm:$0xf]
    %v3765 = vld [vmem:[#allocation13 + $0xc8] sm:$0xf]
    %v3766 = vld [vmem:[#allocation13 + $0xcc] sm:$0xf]
    %v3767 = vld [vmem:[#allocation13 + $0xd0] sm:$0xf]
    %v3768 = vld [vmem:[#allocation13 + $0xd4] sm:$0xf]
    %v3769 = vld [vmem:[#allocation13 + $0xd8] sm:$0xf]
    %v3770 = vld [vmem:[#allocation13 + $0xdc] sm:$0xf]
    %v3771 = vld [vmem:[#allocation13 + $0xe0] sm:$0xf]
    %v3772 = vld [vmem:[#allocation13 + $0xe4] sm:$0xf]
    %v3773 = vld [vmem:[#allocation13 + $0xe8] sm:$0xf]
    %v3774 = vld [vmem:[#allocation13 + $0xec] sm:$0xf]
    %v3775 = vld [vmem:[#allocation13 + $0xf0] sm:$0xf]
    %v3776 = vld [vmem:[#allocation13 + $0xf4] sm:$0xf]
    %v3777 = vld [vmem:[#allocation13 + $0xf8] sm:$0xf]
    %v3778 = vld [vmem:[#allocation13 + $0xfc] sm:$0xf]
    %v3779 = vld [vmem:[#allocation13 + $0x100] sm:$0xf]
    %v3780 = vld [vmem:[#allocation13 + $0x104] sm:$0xf]
    %v3781 = vld [vmem:[#allocation13 + $0x108] sm:$0xf]
    %v3782 = vld [vmem:[#allocation13 + $0x10c] sm:$0xf]
    %v3783 = vld [vmem:[#allocation13 + $0x110] sm:$0xf]
    %v3784 = vld [vmem:[#allocation13 + $0x114] sm:$0xf]
    %v3785 = vld [vmem:[#allocation13 + $0x118] sm:$0xf]
    %v3786 = vld [vmem:[#allocation13 + $0x11c] sm:$0xf]
    %v3787 = vld [vmem:[#allocation13 + $0x120] sm:$0xf]
    %v3788 = vld [vmem:[#allocation13 + $0x124] sm:$0xf]
    %v3789 = vld [vmem:[#allocation13 + $0x128] sm:$0xf]
    %v3790 = vld [vmem:[#allocation13 + $0x12c] sm:$0xf]
    %v3791 = vld [vmem:[#allocation13 + $0x130] sm:$0xf]
    %v3792 = vld [vmem:[#allocation13 + $0x134] sm:$0xf]
    %v3793 = vld [vmem:[#allocation13 + $0x138] sm:$0xf]
    %v3794 = vld [vmem:[#allocation13 + $0x13c] sm:$0x3]
    %v3795 = vld [vmem:[#allocation14] sm:$0x1]
    %v3797 = vlaneseq
    %v3798 = vshrl.u32 %v3797, 7
    %v3799 = vsub.s32 0, %v3798
    %v3800 = vrot.slane %v3795, %v3799
    %v3882 = vunpack.c.l.b16 %v3715
    %v3883 = vunpack.c.l.b16 %v3716
    %v3884 = vunpack.c.l.b16 %v3717
    %v3885 = vunpack.c.l.b16 %v3718
    %v3886 = vunpack.c.l.b16 %v3719
    %v3887 = vunpack.c.l.b16 %v3720
    %v3888 = vunpack.c.l.b16 %v3721
    %v3889 = vunpack.c.l.b16 %v3722
    %v3890 = vunpack.c.l.b16 %v3723
    %v3891 = vunpack.c.l.b16 %v3724
    %v3892 = vunpack.c.l.b16 %v3725
    %v3893 = vunpack.c.l.b16 %v3726
    %v3894 = vunpack.c.l.b16 %v3727
    %v3895 = vunpack.c.l.b16 %v3728
    %v3896 = vunpack.c.l.b16 %v3729
    %v3897 = vunpack.c.l.b16 %v3730
    %v3898 = vunpack.c.l.b16 %v3731
    %v3899 = vunpack.c.l.b16 %v3732
    %v3900 = vunpack.c.l.b16 %v3733
    %v3901 = vunpack.c.l.b16 %v3734
    %v3902 = vunpack.c.l.b16 %v3735
    %v3903 = vunpack.c.l.b16 %v3736
    %v3904 = vunpack.c.l.b16 %v3737
    %v3905 = vunpack.c.l.b16 %v3738
    %v3906 = vunpack.c.l.b16 %v3739
    %v3907 = vunpack.c.l.b16 %v3740
    %v3908 = vunpack.c.l.b16 %v3741
    %v3909 = vunpack.c.l.b16 %v3742
    %v3910 = vunpack.c.l.b16 %v3743
    %v3911 = vunpack.c.l.b16 %v3744
    %v3912 = vunpack.c.l.b16 %v3745
    %v3913 = vunpack.c.l.b16 %v3746
    %v3914 = vunpack.c.l.b16 %v3747
    %v3915 = vunpack.c.l.b16 %v3748
    %v3916 = vunpack.c.l.b16 %v3749
    %v3917 = vunpack.c.l.b16 %v3750
    %v3918 = vunpack.c.l.b16 %v3751
    %v3919 = vunpack.c.l.b16 %v3752
    %v3920 = vunpack.c.l.b16 %v3753
    %v3921 = vunpack.c.l.b16 %v3754
    %v3922 = vunpack.c.l.b16 %v3755
    %v3923 = vunpack.c.l.b16 %v3756
    %v3924 = vunpack.c.l.b16 %v3757
    %v3925 = vunpack.c.l.b16 %v3758
    %v3926 = vunpack.c.l.b16 %v3759
    %v3927 = vunpack.c.l.b16 %v3760
    %v3928 = vunpack.c.l.b16 %v3761
    %v3929 = vunpack.c.l.b16 %v3762
    %v3930 = vunpack.c.l.b16 %v3763
    %v3931 = vunpack.c.l.b16 %v3764
    %v3932 = vunpack.c.l.b16 %v3765
    %v3933 = vunpack.c.l.b16 %v3766
    %v3934 = vunpack.c.l.b16 %v3767
    %v3935 = vunpack.c.l.b16 %v3768
    %v3936 = vunpack.c.l.b16 %v3769
    %v3937 = vunpack.c.l.b16 %v3770
    %v3938 = vunpack.c.l.b16 %v3771
    %v3939 = vunpack.c.l.b16 %v3772
    %v3940 = vunpack.c.l.b16 %v3773
    %v3941 = vunpack.c.l.b16 %v3774
    %v3942 = vunpack.c.l.b16 %v3775
    %v3943 = vunpack.c.l.b16 %v3776
    %v3944 = vunpack.c.l.b16 %v3777
    %v3945 = vunpack.c.l.b16 %v3778
    %v3946 = vunpack.c.l.b16 %v3779
    %v3947 = vunpack.c.l.b16 %v3780
    %v3948 = vunpack.c.l.b16 %v3781
    %v3949 = vunpack.c.l.b16 %v3782
    %v3950 = vunpack.c.l.b16 %v3783
    %v3951 = vunpack.c.l.b16 %v3784
    %v3952 = vunpack.c.l.b16 %v3785
    %v3953 = vunpack.c.l.b16 %v3786
    %v3954 = vunpack.c.l.b16 %v3787
    %v3955 = vunpack.c.l.b16 %v3788
    %v3956 = vunpack.c.l.b16 %v3789
    %v3957 = vunpack.c.l.b16 %v3790
    %v3958 = vunpack.c.l.b16 %v3791
    %v3959 = vunpack.c.l.b16 %v3792
    %v3960 = vunpack.c.l.b16 %v3793
    %v3961 = vunpack.c.l.b16 %v3794
    %v3962 = vpack.c.b16 %v3883, %v3882
    %v3963 = vpack.c.b16 %v3885, %v3884
    %v3964 = vpack.c.b16 %v3887, %v3886
    %v3965 = vpack.c.b16 %v3889, %v3888
    %v3966 = vpack.c.b16 %v3891, %v3890
    %v3967 = vpack.c.b16 %v3893, %v3892
    %v3968 = vpack.c.b16 %v3895, %v3894
    %v3969 = vpack.c.b16 %v3897, %v3896
    %v3970 = vpack.c.b16 %v3899, %v3898
    %v3971 = vpack.c.b16 %v3901, %v3900
    %v3972 = vpack.c.b16 %v3903, %v3902
    %v3973 = vpack.c.b16 %v3905, %v3904
    %v3974 = vpack.c.b16 %v3907, %v3906
    %v3975 = vpack.c.b16 %v3909, %v3908
    %v3976 = vpack.c.b16 %v3911, %v3910
    %v3977 = vpack.c.b16 %v3913, %v3912
    %v3978 = vpack.c.b16 %v3915, %v3914
    %v3979 = vpack.c.b16 %v3917, %v3916
    %v3980 = vpack.c.b16 %v3919, %v3918
    %v3981 = vpack.c.b16 %v3921, %v3920
    %v3982 = vpack.c.b16 %v3923, %v3922
    %v3983 = vpack.c.b16 %v3925, %v3924
    %v3984 = vpack.c.b16 %v3927, %v3926
    %v3985 = vpack.c.b16 %v3929, %v3928
    %v3986 = vpack.c.b16 %v3931, %v3930
    %v3987 = vpack.c.b16 %v3933, %v3932
    %v3988 = vpack.c.b16 %v3935, %v3934
    %v3989 = vpack.c.b16 %v3937, %v3936
    %v3990 = vpack.c.b16 %v3939, %v3938
    %v3991 = vpack.c.b16 %v3941, %v3940
    %v3992 = vpack.c.b16 %v3943, %v3942
    %v3993 = vpack.c.b16 %v3945, %v3944
    %v3994 = vpack.c.b16 %v3947, %v3946
    %v3995 = vpack.c.b16 %v3949, %v3948
    %v3996 = vpack.c.b16 %v3951, %v3950
    %v3997 = vpack.c.b16 %v3953, %v3952
    %v3998 = vpack.c.b16 %v3955, %v3954
    %v3999 = vpack.c.b16 %v3957, %v3956
    %v4000 = vpack.c.b16 %v3959, %v3958
    %v4001 = vpack.c.b16 %v3961, %v3960
    %vm4041 = vcmask 1006592
    %v4043 = vsel %vm4041, %v3714, 0
    %v4045 = vsel %vm3572, 4294967295, 65535
    %v4046 = vsel %vm2551, %v4045, 0
    %v4048 = vand.u32 %v4001, %v4046
    %4050 = vmatprep.subr.bf16.mxu0 0
    %4051 = vmatpush1.bf16.msra.mxu0 %v3969
    %4052 = vmatprep.subr.bf16.mxu0 0
    %4053 = vmatpush1.bf16.msra.mxu0 %v3968
    %4054 = vmatprep.subr.bf16.mxu0 0
    %4055 = vmatpush1.bf16.msra.mxu0 %v3967
    %4056 = vmatprep.subr.bf16.mxu0 0
    %4057 = vmatpush1.bf16.msra.mxu0 %v3966
    %4058 = vmatprep.subr.bf16.mxu0 0
    %4059 = vmatpush1.bf16.msra.mxu0 %v3965
    %4060 = vmatprep.subr.bf16.mxu0 0
    %4061 = vmatpush1.bf16.msra.mxu0 %v3964
    %4062 = vmatprep.subr.bf16.mxu0 0
    %4063 = vmatpush1.bf16.msra.mxu0 %v3963
    %4064 = vmatprep.subr.bf16.mxu0 0
    %4065 = vmatpush1.bf16.msra.mxu0 %v3962
    %4066 = vmatprep.subr.bf16.mxu0 0
    %4067 = vmatpush2.bf16.msra.mxu0 %v3977
    %4068 = vmatprep.subr.bf16.mxu0 0
    %4069 = vmatpush2.bf16.msra.mxu0 %v3976
    %4070 = vmatprep.subr.bf16.mxu0 0
    %4071 = vmatpush2.bf16.msra.mxu0 %v3975
    %4072 = vmatprep.subr.bf16.mxu0 0
    %4073 = vmatpush2.bf16.msra.mxu0 %v3974
    %4074 = vmatprep.subr.bf16.mxu0 0
    %4075 = vmatpush2.bf16.msra.mxu0 %v3973
    %4076 = vmatprep.subr.bf16.mxu0 0
    %4077 = vmatpush2.bf16.msra.mxu0 %v3972
    %4078 = vmatprep.subr.bf16.mxu0 0
    %4079 = vmatpush2.bf16.msra.mxu0 %v3971
    %4080 = vmatprep.subr.bf16.mxu0 0
    %4081 = vmatpush2.bf16.msra.mxu0 %v3970
    %4082 = vmatprep.mubr.bf16.mxu0 %v3711
    %4083 = vmatmul.mubr.bf16.gmra.mxu0 %v3710
    %v4084 = vpop.f32.mrf.mxu0
    %v4085 = vadd.f32 %v3800, %v4084
    %v4086 = vpop.f32.mrf.mxu0
    %v4087 = vpop.f32.mrf.mxu0
    %v4088 = vpop.f32.mrf.mxu0
    %4089 = vdwg.mxu0
    %4090 = vmatprep.subr.bf16.mxu0 0
    %4091 = vmatpush1.bf16.msra.mxu0 %v3985
    %4092 = vmatprep.subr.bf16.mxu0 0
    %4093 = vmatpush1.bf16.msra.mxu0 %v3984
    %4094 = vmatprep.subr.bf16.mxu0 0
    %4095 = vmatpush1.bf16.msra.mxu0 %v3983
    %4096 = vmatprep.subr.bf16.mxu0 0
    %4097 = vmatpush1.bf16.msra.mxu0 %v3982
    %4098 = vmatprep.subr.bf16.mxu0 0
    %4099 = vmatpush1.bf16.msra.mxu0 %v3981
    %4100 = vmatprep.subr.bf16.mxu0 0
    %4101 = vmatpush1.bf16.msra.mxu0 %v3980
    %4102 = vmatprep.subr.bf16.mxu0 0
    %4103 = vmatpush1.bf16.msra.mxu0 %v3979
    %4104 = vmatprep.subr.bf16.mxu0 0
    %4105 = vmatpush1.bf16.msra.mxu0 %v3978
    %4106 = vmatprep.subr.bf16.mxu0 0
    %4107 = vmatpush2.bf16.msra.mxu0 %v3993
    %4108 = vmatprep.subr.bf16.mxu0 0
    %4109 = vmatpush2.bf16.msra.mxu0 %v3992
    %4110 = vmatprep.subr.bf16.mxu0 0
    %4111 = vmatpush2.bf16.msra.mxu0 %v3991
    %4112 = vmatprep.subr.bf16.mxu0 0
    %4113 = vmatpush2.bf16.msra.mxu0 %v3990
    %4114 = vmatprep.subr.bf16.mxu0 0
    %4115 = vmatpush2.bf16.msra.mxu0 %v3989
    %4116 = vmatprep.subr.bf16.mxu0 0
    %4117 = vmatpush2.bf16.msra.mxu0 %v3988
    %4118 = vmatprep.subr.bf16.mxu0 0
    %4119 = vmatpush2.bf16.msra.mxu0 %v3987
    %4120 = vmatprep.subr.bf16.mxu0 0
    %4121 = vmatpush2.bf16.msra.mxu0 %v3986
    %4122 = vmatprep.mubr.bf16.mxu0 %v3713
    %4123 = vmatmul.mubr.bf16.gmra.mxu0 %v3712
    %v4124 = vpop.f32.mrf.mxu0
    %v4125 = vadd.f32 %v4085, %v4124
    %v4126 = vpop.f32.mrf.mxu0
    %v4127 = vpop.f32.mrf.mxu0
    %v4128 = vpop.f32.mrf.mxu0
    %4129 = vdwg.mxu0
    %4130 = vmatprep.subr.bf16.mxu0 0
    %4131 = vmatpush1.bf16.msra.mxu0 %v4048
    %4132 = vmatprep.subr.bf16.mxu0 0
    %4133 = vmatpush1.bf16.msra.mxu0 %v4000
    %4134 = vmatprep.subr.bf16.mxu0 0
    %4135 = vmatpush1.bf16.msra.mxu0 %v3999
    %4136 = vmatprep.subr.bf16.mxu0 0
    %4137 = vmatpush1.bf16.msra.mxu0 %v3998
    %4138 = vmatprep.subr.bf16.mxu0 0
    %4139 = vmatpush1.bf16.msra.mxu0 %v3997
    %4140 = vmatprep.subr.bf16.mxu0 0
    %4141 = vmatpush1.bf16.msra.mxu0 %v3996
    %4142 = vmatprep.subr.bf16.mxu0 0
    %4143 = vmatpush1.bf16.msra.mxu0 %v3995
    %4144 = vmatprep.subr.bf16.mxu0 0
    %4145 = vmatpush1.bf16.msra.mxu0 %v3994
    %4146 = vmatprep.subr.bf16.mxu0 0
    %4147 = vmatpush2.bf16.msra.mxu0 0
    %4148 = vmatprep.subr.bf16.mxu0 0
    %4149 = vmatpush2.bf16.msra.mxu0 0
    %4150 = vmatprep.subr.bf16.mxu0 0
    %4151 = vmatpush2.bf16.msra.mxu0 0
    %4152 = vmatprep.subr.bf16.mxu0 0
    %4153 = vmatpush2.bf16.msra.mxu0 0
    %4154 = vmatprep.subr.bf16.mxu0 0
    %4155 = vmatpush2.bf16.msra.mxu0 0
    %4156 = vmatprep.subr.bf16.mxu0 0
    %4157 = vmatpush2.bf16.msra.mxu0 0
    %4158 = vmatprep.subr.bf16.mxu0 0
    %4159 = vmatpush2.bf16.msra.mxu0 0
    %4160 = vmatprep.subr.bf16.mxu0 0
    %4161 = vmatpush2.bf16.msra.mxu0 0
    %4162 = vmatprep.mubr.bf16.mxu0 0
    %4163 = vmatmul.mubr.bf16.gmra.mxu0 %v4043
    %v4164 = vpop.f32.mrf.mxu0
    %v4165 = vadd.f32 %v4125, %v4164
    %v4166 = vpop.f32.mrf.mxu0
    %v4167 = vpop.f32.mrf.mxu0
    %v4168 = vpop.f32.mrf.mxu0
    %4169 = vdwg.mxu0
    %4170 = vst [vmem:[#allocation16] sm:$0xff] %v4165
    // Predicated region
    $region70: #{tpu_custom_call.1} parent=1 // pred_check
      _
    $region71: #{tpu_custom_call.1} parent=1 // pred_check_branch
      %4172 = sbr.rel (0) target = $region73
    $region72: #{tpu_custom_call.1} parent=1 // pred_region
      %s4174 = ssub.s32 128, 128
      %4175 = vsyncadd [#allocation4], %s4174
      %s4177 = sshll.u32 [#allocation16], 4
      %s4178 = int_to_ptr.vmem [resolvable:$true] %s4177
      %4180 = dma.vmem_to_hbm [thread:$0]  %s4178, 128, %s9, [#allocation4]
    $region73: #{tpu_custom_call.1} parent=1 // pred_fallthru
      _
    // Predicated region
    $region74: #{tpu_custom_call.1} parent=1 // pred_check
      _
    $region75: #{tpu_custom_call.1} parent=1 // pred_check_branch
      %4182 = sbr.rel (0) target = $region77
    $region76: #{tpu_custom_call.1} parent=1 // pred_region
      %4183 = dma.done [#allocation4], 128
    $region77: #{tpu_custom_call.1} parent=1 // pred_fallthru
      _
    %4184 = vsyncpa [#allocation3], 1
    %4185 = vsyncpa [#allocation6], 1
    %4186 = vsyncpa [#allocation9], 1
    %4187 = vsyncpa [#allocation12], 1
    %4188 = vsyncpa [#allocation15], 1
    %4189 = vsyncpa [#allocation4], 1

</llo_original>
